<compile_context>
chip_gen: v6e
topology: v6e:2x2x1
jax: 0.10.0
libtpu: 0.0.40
codegen_flags: <defaults>
</compile_context>

<pallas_src>
import functools

import jax
import jax.numpy as jnp
from jax import lax
from jax.experimental import pallas as pl
from jax.experimental.pallas import tpu as pltpu

HYPERBOLIC_EPSILON = 1e-5
RMS_EPS = float(jnp.finfo(jnp.float32).eps)   # F.rms_norm default eps for f32


# ----------------------------------------------------------------------------
# Single fused kernel: whole CausalSelfAttention forward in VMEM
# ----------------------------------------------------------------------------
def fused_csa_kernel(
    x_ref, ve_ref, qkv_wt_ref, proj_wt_ref, lambdas_ref, cos_ref, sin_ref,
    y_ref, refpt_ref, attn_ref,
    *, num_heads, head_dim, curvature, scale, map_back_after_attention,
    mxu_dtype,
):
    c = max(float(curvature), HYPERBOLIC_EPSILON)
    sqrt_c = c ** 0.5

    x = x_ref[...]                                         # (T, C) f32
    t, _ = x.shape

    # ---- reference point: x shifted down by one row, row 0 zeroed (XLU) ----
    rolled = pltpu.roll(x, shift=1, axis=0)
    row_ids = lax.broadcasted_iota(jnp.int32, x.shape, 0)
    ref = jnp.where(row_ids == 0, jnp.float32(0.0), rolled)
    refpt_ref[...] = ref.astype(refpt_ref.dtype)

    # ---- logmap(ref, x, c): mobius_add(-ref, x, c) -> tangent vector ----
    x_nsq = jnp.sum(x * x, axis=-1, keepdims=True)
    ref_nsq = jnp.sum(ref * ref, axis=-1, keepdims=True)   # == |-ref|^2
    # TODO(synk): ref_nsq could be a sublane roll of x_nsq, but a (T,1) 1-lane
    # sublane roll has layout/lowering risk, so the explicit reduce is kept.
    inner = -jnp.sum(ref * x, axis=-1, keepdims=True)      # <-ref, x>, (T,1)
    coef_a = 1.0 + 2.0 * c * inner + c * x_nsq             # multiplies (-ref)
    num = (-coef_a) * ref + (1.0 - c * ref_nsq) * x
    den = 1.0 + 2.0 * c * inner + (c * c) * ref_nsq * x_nsq
    mob = num * pl.reciprocal(den + HYPERBOLIC_EPSILON)
    mob_norm = jnp.sqrt(jnp.sum(mob * mob, axis=-1, keepdims=True))
    max_norm = 1.0 / sqrt_c - HYPERBOLIC_EPSILON
    arg = jnp.clip(sqrt_c * jnp.clip(mob_norm, 0.0, max_norm),
                   0.0, 1.0 - HYPERBOLIC_EPSILON)
    arctanh_val = 0.5 * jnp.log((1.0 + arg) * pl.reciprocal(1.0 - arg))
    # Matches the PyTorch reference scaling_factor(): 2 / (1 + c*||x||^2 + eps)
    lam_ref = 2.0 * pl.reciprocal(1.0 + c * ref_nsq + HYPERBOLIC_EPSILON)
    const = 2.0 * pl.reciprocal(lam_ref * sqrt_c + HYPERBOLIC_EPSILON)
    # combine all (T,1) factors, then ONE (T,C) broadcast multiply
    x_tan = mob * (const * arctanh_val
                   * pl.reciprocal(mob_norm + HYPERBOLIC_EPSILON))

    # ---- fused QKV projection (weights arrive already in mxu_dtype) ----
    qkv = jnp.dot(x_tan.astype(mxu_dtype), qkv_wt_ref[...],
                  preferred_element_type=jnp.float32)      # (T, 3*H*D) f32

    cos = cos_ref[...]                                     # (T, D)
    sin = sin_ref[...]                                     # (T, D) = [+sin | -sin]
    ve = ve_ref[...]                                       # (T, H*D)
    lam0 = lambdas_ref[0]
    lam1 = lambdas_ref[1]

    # causal mask, hoisted out of the per-head loop
    rq = lax.broadcasted_iota(jnp.int32, (t, t), 0)
    ck = lax.broadcasted_iota(jnp.int32, (t, t), 1)
    causal = rq >= ck

    hd = num_heads * head_dim
    half = head_dim // 2
    # TODO(synk): on v7x (2 TensorCores) a 2-point "parallel" grid over heads /
    # q-row halves could use the second core; at T=128 the fully fused single
    # call (zero HBM round trips, one launch) still wins, so it stays 1-core.
    # TODO(synk): if T is ever raised, switch the (T,T) score tiles to a
    # flash-style grid over q-blocks (footprint grows O(T^2)).
    for h in range(num_heads):
        q = qkv[:, h * head_dim:(h + 1) * head_dim]                    # (T, D)
        k = qkv[:, hd + h * head_dim:hd + (h + 1) * head_dim]
        v = qkv[:, 2 * hd + h * head_dim:2 * hd + (h + 1) * head_dim]
        ve_h = ve[:, h * head_dim:(h + 1) * head_dim]

        # RMS-norm over head_dim; attention scale folded into q (RoPE is linear)
        q = q * (lax.rsqrt(jnp.mean(q * q, axis=-1, keepdims=True) + RMS_EPS)
                 * scale)
        k = k * lax.rsqrt(jnp.mean(k * k, axis=-1, keepdims=True) + RMS_EPS)

        # RoPE, lane-dense:  y = x*[cos|cos] + roll(x, D/2)*[+sin | -sin]
        q = q * cos + pltpu.roll(q, shift=half, axis=1) * sin
        k = k * cos + pltpu.roll(k, shift=half, axis=1) * sin

        # value mixing with the learned lambdas
        v = lam0 * v + lam1 * ve_h

        # scores: contract dim 1 of both operands -> q @ k^T, no f32 transpose
        s = lax.dot_general(q.astype(mxu_dtype), k.astype(mxu_dtype),
                            dimension_numbers=(((1,), (1,)), ((), ())),
                            preferred_element_type=jnp.float32)        # (T, T)
        m = jnp.max(s, axis=-1, keepdims=True)
        p = jnp.where(causal, jnp.exp(s - m), jnp.float32(0.0))
        l = jnp.sum(p, axis=-1, keepdims=True)
        o = jnp.dot(p.astype(mxu_dtype), v.astype(mxu_dtype),
                    preferred_element_type=jnp.float32)                # (T, D)
        attn_ref[:, h * head_dim:(h + 1) * head_dim] = (
            o * pl.reciprocal(l, approx=True)).astype(attn_ref.dtype)

    # ---- output projection straight from the mxu_dtype scratch slab ----
    y = jnp.dot(attn_ref[...], proj_wt_ref[...],
                preferred_element_type=jnp.float32)                    # (T, C)

    # ---- expmap(ref, y, c) ----
    if map_back_after_attention:
        v_norm = jnp.sqrt(jnp.sum(y * y, axis=-1, keepdims=True))
        coeff = (1.0 / sqrt_c) * jnp.tanh(sqrt_c * lam_ref * v_norm * 0.5)
        second = y * (coeff * pl.reciprocal(v_norm + HYPERBOLIC_EPSILON))
        s_nsq = jnp.sum(second * second, axis=-1, keepdims=True)
        inner2 = jnp.sum(ref * second, axis=-1, keepdims=True)
        num2 = ((1.0 + 2.0 * c * inner2 + c * s_nsq) * ref
                + (1.0 - c * ref_nsq) * second)
        den2 = 1.0 + 2.0 * c * inner2 + (c * c) * ref_nsq * s_nsq
        y = num2 * pl.reciprocal(den2 + HYPERBOLIC_EPSILON)

    y_ref[...] = y.astype(y_ref.dtype)


# ----------------------------------------------------------------------------
# Wrapper: one pallas_call for the whole forward pass
# ----------------------------------------------------------------------------
def causal_self_attention_forward(
    x, ve, qkv_wT, c_proj_wT, lambdas, cos, sin,
    num_heads, head_dim, curvature=1.0, map_back_after_attention=True,
    mxu_dtype=jnp.bfloat16,
):
    B, T, C = x.shape
    assert B == 1, "Must use batch size = 1 (matches the FlexAttention module)"
    hdim = num_heads * head_dim

    # Full-lane-width RoPE tables; the sign of the rotated half is folded into
    # the sin table so the kernel only needs one lane roll + two multiplies.
    cos_full = jnp.concatenate([cos, cos], axis=-1).astype(jnp.float32)      # (T, D)
    sin_signed = jnp.concatenate([sin, -sin], axis=-1).astype(jnp.float32)   # (T, D)

    ve2 = (jnp.zeros((T, hdim), jnp.float32) if ve is None
           else ve.reshape(T, hdim).astype(jnp.float32))

    vmem = pl.BlockSpec(memory_space=pltpu.MemorySpace.VMEM)
    smem = pl.BlockSpec(memory_space=pltpu.MemorySpace.SMEM)

    kernel = functools.partial(
        fused_csa_kernel,
        num_heads=num_heads, head_dim=head_dim,
        curvature=float(curvature), scale=0.12,
        map_back_after_attention=map_back_after_attention,
        mxu_dtype=mxu_dtype,
    )

    y2, ref2 = pl.pallas_call(
        kernel,
        out_shape=(jax.ShapeDtypeStruct((T, C), jnp.float32),   # y
                   jax.ShapeDtypeStruct((T, C), jnp.float32)),  # reference_point
        in_specs=[vmem, vmem, vmem, vmem, smem, vmem, vmem],
        out_specs=(vmem, vmem),
        scratch_shapes=[pltpu.VMEM((T, hdim), mxu_dtype)],      # attn slab
    )(x[0].astype(jnp.float32), ve2,
      # the two largest operands travel HBM->VMEM already in MXU dtype
      qkv_wT.astype(mxu_dtype), c_proj_wT.astype(mxu_dtype),
      lambdas.astype(jnp.float32), cos_full, sin_signed)

    return y2[None], ref2[None]


# ----------------------------------------------------------------------------
# Pure-JAX float32 reference of the PyTorch module (for verification)
# ----------------------------------------------------------------------------
def reference_forward(x, ve, qkv_wT, c_proj_wT, lambdas, cos, sin,
                      num_heads, head_dim, curvature=1.0,
                      map_back_after_attention=True):
    B, T, C = x.shape
    c = max(float(curvature), HYPERBOLIC_EPSILON)
    sqrt_c = c ** 0.5
    hdim = num_heads * head_dim

    ref = jnp.pad(x[:, :-1, :], ((0, 0), (1, 0), (0, 0)))

    def mobius_add(a, b):
        a_nsq = jnp.sum(a * a, -1, keepdims=True)
        b_nsq = jnp.sum(b * b, -1, keepdims=True)
        ip = jnp.sum(a * b, -1, keepdims=True)
        num = (1 + 2 * c * ip + c * b_nsq) * a + (1 - c * a_nsq) * b
        den = 1 + 2 * c * ip + c * c * a_nsq * b_nsq
        return num / (den + HYPERBOLIC_EPSILON)

    def scaling(a):
        return 2.0 / (1.0 + c * jnp.sum(a * a, -1, keepdims=True)
                      + HYPERBOLIC_EPSILON)

    def logmap(a, u):
        mob = mobius_add(-a, u)
        mob_norm = jnp.sqrt(jnp.sum(mob * mob, -1, keepdims=True))
        max_norm = 1.0 / sqrt_c - HYPERBOLIC_EPSILON
        arg = jnp.clip(sqrt_c * jnp.clip(mob_norm, 0.0, max_norm),
                       0.0, 1.0 - HYPERBOLIC_EPSILON)
        const = 2.0 / (scaling(a) * sqrt_c + HYPERBOLIC_EPSILON)
        return const * jnp.arctanh(arg) * (mob / (mob_norm + HYPERBOLIC_EPSILON))

    def expmap(a, v):
        v_norm = jnp.sqrt(jnp.sum(v * v, -1, keepdims=True))
        coeff = (1.0 / sqrt_c) * jnp.tanh(sqrt_c * scaling(a) * v_norm / 2.0)
        second = coeff * (v / (v_norm + HYPERBOLIC_EPSILON))
        return mobius_add(a, second)

    x_tan = logmap(ref, x)
    qkv = x_tan @ qkv_wT                                     # (B, T, 3*hdim)
    q = qkv[..., 0 * hdim:1 * hdim].reshape(B, T, num_heads, head_dim)
    k = qkv[..., 1 * hdim:2 * hdim].reshape(B, T, num_heads, head_dim)
    v = qkv[..., 2 * hdim:3 * hdim].reshape(B, T, num_heads, head_dim)

    def rms(a):
        return a * lax.rsqrt(jnp.mean(a * a, -1, keepdims=True) + RMS_EPS)

    def rope(a):
        half = head_dim // 2
        a1, a2 = a[..., :half], a[..., half:]
        cs = cos[None, :, None, :]
        sn = sin[None, :, None, :]
        return jnp.concatenate([a1 * cs + a2 * sn, -a1 * sn + a2 * cs], -1)

    q, k = rope(rms(q)), rope(rms(k))
    v = lambdas[0] * v + lambdas[1] * ve.reshape(B, T, num_heads, head_dim)

    s = jnp.einsum('bthd,bshd->bhts', q, k) * 0.12
    mask = jnp.tril(jnp.ones((T, T), dtype=bool))
    s = jnp.where(mask[None, None], s, -jnp.inf)
    p = jax.nn.softmax(s, axis=-1)
    o = jnp.einsum('bhts,bshd->bthd', p, v).reshape(B, T, hdim)
    y = o @ c_proj_wT
    if map_back_after_attention:
        y = expmap(ref, y)
    return y, ref


# ----------------------------------------------------------------------------
# Deterministic parameter / input construction + run + verification
# ----------------------------------------------------------------------------
if __name__ == "__main__":
    B, T, DIM = 1, 128, 128
    NUM_HEADS, HEAD_DIM = 2, 128
    HDIM = NUM_HEADS * HEAD_DIM
    CURVATURE = 1.0

    key = jax.random.PRNGKey(0)
    k_x, k_ve, k_qkv, k_proj = jax.random.split(key, 4)

    x = 0.02 * jax.random.normal(k_x, (B, T, DIM), dtype=jnp.float32)
    ve = 0.02 * jax.random.normal(k_ve, (B, T, HDIM), dtype=jnp.float32)

    # qkv_w: (3*hdim, dim) uniform(-bound, bound), bound = sqrt(3)*0.5*dim**-0.5
    bound = (3.0 ** 0.5) * 0.5 * DIM ** (-0.5)
    qkv_w = jax.random.uniform(k_qkv, (3 * HDIM, DIM), jnp.float32, -bound, bound)
    qkv_wT = qkv_w.T                                   # (dim, 3*hdim) for x @ W^T

    # c_proj weight: the reference module zero-initializes it.
    c_proj_wT_zero = jnp.zeros((HDIM, DIM), jnp.float32)
    # A second, non-zero c_proj to numerically exercise the full pipeline.
    c_proj_wT_rand = 0.1 * jax.random.uniform(
        k_proj, (HDIM, DIM), jnp.float32, -1.0, 1.0)

    lambdas = jnp.array([0.5, 0.5], dtype=jnp.float32)

    # Rotary tables (Rotary.__init__), max_seq_len = T
    quarter = HEAD_DIM // 4
    angular_freq = (1.0 / 1024.0) ** jnp.linspace(0.0, 1.0, quarter,
                                                  dtype=jnp.float32)
    angular_freq = jnp.concatenate([angular_freq, jnp.zeros(quarter, jnp.float32)])
    theta = jnp.outer(jnp.arange(T, dtype=jnp.float32), angular_freq)  # (T, D//2)
    cos_tab = jnp.cos(theta)
    sin_tab = jnp.sin(theta)

    common = dict(num_heads=NUM_HEADS, head_dim=HEAD_DIM,
                  curvature=CURVATURE, map_back_after_attention=True)
    fwd_bf16 = jax.jit(functools.partial(causal_self_attention_forward,
                                         mxu_dtype=jnp.bfloat16, **common))
    fwd_f32 = jax.jit(functools.partial(causal_self_attention_forward,
                                        mxu_dtype=jnp.float32, **common))

    # Run 1: module-faithful init (c_proj zeroed) — structural self-checks.
    y, ref_point = fwd_bf16(x, ve, qkv_wT, c_proj_wT_zero, lambdas,
                            cos_tab, sin_tab)
    y = jax.block_until_ready(y)
    ref_point = jax.block_until_ready(ref_point)

    assert y.shape == (B, T, DIM) and ref_point.shape == (B, T, DIM)
    assert bool(jnp.all(jnp.isfinite(y))) and bool(jnp.all(jnp.isfinite(ref_point)))
    expected_ref = jnp.pad(x[:, :-1, :], ((0, 0), (1, 0), (0, 0)))
    assert bool(jnp.allclose(ref_point, expected_ref, atol=1e-7))
    # With c_proj == 0:  y == expmap(ref, 0) == ref / (1 + eps)
    assert bool(jnp.allclose(y, ref_point / (1.0 + HYPERBOLIC_EPSILON),
                             rtol=1e-5, atol=1e-6))

    # Run 2: non-zero c_proj vs a pure-JAX float32 reference of the module.
    y_ref, _ = reference_forward(x, ve, qkv_wT, c_proj_wT_rand, lambdas,
                                 cos_tab, sin_tab, **common)

    y_f32, _ = fwd_f32(x, ve, qkv_wT, c_proj_wT_rand, lambdas, cos_tab, sin_tab)
    y_f32 = jax.block_until_ready(y_f32)
    assert bool(jnp.all(jnp.isfinite(y_f32)))
    assert bool(jnp.allclose(y_f32, y_ref, rtol=1e-2, atol=2e-4)), (
        "f32 kernel mismatch, max abs diff = %g"
        % float(jnp.max(jnp.abs(y_f32 - y_ref))))

    y_bf16, _ = fwd_bf16(x, ve, qkv_wT, c_proj_wT_rand, lambdas, cos_tab, sin_tab)
    y_bf16 = jax.block_until_ready(y_bf16)
    assert bool(jnp.all(jnp.isfinite(y_bf16)))
    assert bool(jnp.allclose(y_bf16, y_ref, rtol=3e-2, atol=1e-3)), (
        "bf16 kernel mismatch, max abs diff = %g"
        % float(jnp.max(jnp.abs(y_bf16 - y_ref))))

    print("KERNEL_OK")
</pallas_src>

<mosaic_0001>
module attributes {stable_mosaic.version = 11 : i64} {
  func.func @fused_csa_kernel(%arg0: memref<128x128xf32, #tpu.memory_space<vmem>>, %arg1: memref<128x256xf32, #tpu.memory_space<vmem>>, %arg2: memref<128x768xbf16, #tpu.memory_space<vmem>>, %arg3: memref<256x128xbf16, #tpu.memory_space<vmem>>, %arg4: memref<2xf32, #tpu.memory_space<smem>>, %arg5: memref<128x128xf32, #tpu.memory_space<vmem>>, %arg6: memref<128x128xf32, #tpu.memory_space<vmem>>, %arg7: memref<128x128xf32, #tpu.memory_space<vmem>>, %arg8: memref<128x128xf32, #tpu.memory_space<vmem>>, %arg9: memref<128x256xbf16, #tpu.memory_space<vmem>>) attributes {dimension_semantics = [], scalar_prefetch = 0 : i64, scratch_operands = 1 : i64, tpu.core_type = #tpu.core_type<tc>} {
    %c0 = arith.constant 0 : index
    %c0_0 = arith.constant 0 : index
    %0 = vector.load %arg0[%c0, %c0_0] : memref<128x128xf32, #tpu.memory_space<vmem>>, vector<128x128xf32>
    %c1_i32 = arith.constant 1 : i32
    %1 = tpu.dynamic_rotate %0 by %c1_i32 dim 0 : vector<128x128xf32>, i32 -> vector<128x128xf32>
    %2 = tpu.iota {dimensions = array<i32: 0>} : vector<128x128xi32>
    %c0_i32 = arith.constant 0 : i32
    %3 = vector.broadcast %c0_i32 : i32 to vector<128x128xi32>
    %4 = arith.cmpi eq, %2, %3 : vector<128x128xi32>
    %cst = arith.constant 0.000000e+00 : f32
    %5 = vector.broadcast %cst : f32 to vector<128x128xf32>
    %6 = arith.select %4, %5, %1 : vector<128x128xi1>, vector<128x128xf32>
    %c0_1 = arith.constant 0 : index
    %c0_2 = arith.constant 0 : index
    %7 = vector.load %arg8[%c0_1, %c0_2] : memref<128x128xf32, #tpu.memory_space<vmem>>, vector<128x128xf32>
    tpu.vector_store %arg8[%c0_1, %c0_2], %6 {strides = array<i32>} : memref<128x128xf32, #tpu.memory_space<vmem>>, vector<128x128xf32>,
    %8 = arith.mulf %0, %0 : vector<128x128xf32>
    %cst_3 = arith.constant dense<0.000000e+00> : vector<128xf32>
    %9 = vector.multi_reduction <add>, %8, %cst_3 [1] : vector<128x128xf32> to vector<128xf32>
    %10 = vector.shape_cast %9 : vector<128xf32> to vector<128x1xf32>
    %11 = arith.mulf %6, %6 : vector<128x128xf32>
    %cst_4 = arith.constant dense<0.000000e+00> : vector<128xf32>
    %12 = vector.multi_reduction <add>, %11, %cst_4 [1] : vector<128x128xf32> to vector<128xf32>
    %13 = vector.shape_cast %12 : vector<128xf32> to vector<128x1xf32>
    %14 = arith.mulf %6, %0 : vector<128x128xf32>
    %cst_5 = arith.constant dense<0.000000e+00> : vector<128xf32>
    %15 = vector.multi_reduction <add>, %14, %cst_5 [1] : vector<128x128xf32> to vector<128xf32>
    %16 = vector.shape_cast %15 : vector<128xf32> to vector<128x1xf32>
    %cst_6 = arith.constant 0.000000e+00 : f32
    %17 = vector.broadcast %cst_6 : f32 to vector<128x1xf32>
    %18 = arith.subf %17, %16 : vector<128x1xf32>
    %cst_7 = arith.constant 2.000000e+00 : f32
    %19 = vector.broadcast %cst_7 : f32 to vector<128x1xf32>
    %20 = arith.mulf %19, %18 : vector<128x1xf32>
    %cst_8 = arith.constant 1.000000e+00 : f32
    %21 = vector.broadcast %cst_8 : f32 to vector<128x1xf32>
    %22 = arith.addf %21, %20 : vector<128x1xf32>
    %cst_9 = arith.constant 1.000000e+00 : f32
    %23 = vector.broadcast %cst_9 : f32 to vector<128x1xf32>
    %24 = arith.mulf %23, %10 : vector<128x1xf32>
    %25 = arith.addf %22, %24 : vector<128x1xf32>
    %cst_10 = arith.constant 0.000000e+00 : f32
    %26 = vector.broadcast %cst_10 : f32 to vector<128x1xf32>
    %27 = arith.subf %26, %25 : vector<128x1xf32>
    %28 = vector.broadcast %27 : vector<128x1xf32> to vector<128x128xf32>
    %29 = arith.mulf %28, %6 : vector<128x128xf32>
    %cst_11 = arith.constant 1.000000e+00 : f32
    %30 = vector.broadcast %cst_11 : f32 to vector<128x1xf32>
    %31 = arith.mulf %30, %13 : vector<128x1xf32>
    %cst_12 = arith.constant 1.000000e+00 : f32
    %32 = vector.broadcast %cst_12 : f32 to vector<128x1xf32>
    %33 = arith.subf %32, %31 : vector<128x1xf32>
    %34 = vector.broadcast %33 : vector<128x1xf32> to vector<128x128xf32>
    %35 = arith.mulf %34, %0 : vector<128x128xf32>
    %36 = arith.addf %29, %35 : vector<128x128xf32>
    %cst_13 = arith.constant 2.000000e+00 : f32
    %37 = vector.broadcast %cst_13 : f32 to vector<128x1xf32>
    %38 = arith.mulf %37, %18 : vector<128x1xf32>
    %cst_14 = arith.constant 1.000000e+00 : f32
    %39 = vector.broadcast %cst_14 : f32 to vector<128x1xf32>
    %40 = arith.addf %39, %38 : vector<128x1xf32>
    %cst_15 = arith.constant 1.000000e+00 : f32
    %41 = vector.broadcast %cst_15 : f32 to vector<128x1xf32>
    %42 = arith.mulf %41, %13 : vector<128x1xf32>
    %43 = arith.mulf %42, %10 : vector<128x1xf32>
    %44 = arith.addf %40, %43 : vector<128x1xf32>
    %cst_16 = arith.constant 9.99999974E-6 : f32
    %45 = vector.broadcast %cst_16 : f32 to vector<128x1xf32>
    %46 = arith.addf %44, %45 : vector<128x1xf32>
    %47 = tpu.reciprocal %46 : vector<128x1xf32> -> vector<128x1xf32>
    %48 = vector.broadcast %47 : vector<128x1xf32> to vector<128x128xf32>
    %49 = arith.mulf %36, %48 : vector<128x128xf32>
    %50 = arith.mulf %49, %49 : vector<128x128xf32>
    %cst_17 = arith.constant dense<0.000000e+00> : vector<128xf32>
    %51 = vector.multi_reduction <add>, %50, %cst_17 [1] : vector<128x128xf32> to vector<128xf32>
    %52 = vector.shape_cast %51 : vector<128xf32> to vector<128x1xf32>
    %53 = math.sqrt %52 : vector<128x1xf32>
    %cst_18 = arith.constant 0.000000e+00 : f32
    %cst_19 = arith.constant 0.999989986 : f32
    %54 = vector.broadcast %cst_18 : f32 to vector<128x1xf32>
    %55 = arith.maximumf %54, %53 : vector<128x1xf32>
    %56 = vector.broadcast %cst_19 : f32 to vector<128x1xf32>
    %57 = arith.minimumf %56, %55 : vector<128x1xf32>
    %cst_20 = arith.constant 1.000000e+00 : f32
    %58 = vector.broadcast %cst_20 : f32 to vector<128x1xf32>
    %59 = arith.mulf %58, %57 : vector<128x1xf32>
    %cst_21 = arith.constant 0.000000e+00 : f32
    %cst_22 = arith.constant 0.999989986 : f32
    %60 = vector.broadcast %cst_21 : f32 to vector<128x1xf32>
    %61 = arith.maximumf %60, %59 : vector<128x1xf32>
    %62 = vector.broadcast %cst_22 : f32 to vector<128x1xf32>
    %63 = arith.minimumf %62, %61 : vector<128x1xf32>
    %cst_23 = arith.constant 1.000000e+00 : f32
    %64 = vector.broadcast %cst_23 : f32 to vector<128x1xf32>
    %65 = arith.addf %64, %63 : vector<128x1xf32>
    %cst_24 = arith.constant 1.000000e+00 : f32
    %66 = vector.broadcast %cst_24 : f32 to vector<128x1xf32>
    %67 = arith.subf %66, %63 : vector<128x1xf32>
    %68 = tpu.reciprocal %67 : vector<128x1xf32> -> vector<128x1xf32>
    %69 = arith.mulf %65, %68 : vector<128x1xf32>
    %70 = math.log %69 : vector<128x1xf32>
    %cst_25 = arith.constant 5.000000e-01 : f32
    %71 = vector.broadcast %cst_25 : f32 to vector<128x1xf32>
    %72 = arith.mulf %71, %70 : vector<128x1xf32>
    %cst_26 = arith.constant 1.000000e+00 : f32
    %73 = vector.broadcast %cst_26 : f32 to vector<128x1xf32>
    %74 = arith.mulf %73, %13 : vector<128x1xf32>
    %cst_27 = arith.constant 1.000000e+00 : f32
    %75 = vector.broadcast %cst_27 : f32 to vector<128x1xf32>
    %76 = arith.addf %75, %74 : vector<128x1xf32>
    %cst_28 = arith.constant 9.99999974E-6 : f32
    %77 = vector.broadcast %cst_28 : f32 to vector<128x1xf32>
    %78 = arith.addf %76, %77 : vector<128x1xf32>
    %79 = tpu.reciprocal %78 : vector<128x1xf32> -> vector<128x1xf32>
    %cst_29 = arith.constant 2.000000e+00 : f32
    %80 = vector.broadcast %cst_29 : f32 to vector<128x1xf32>
    %81 = arith.mulf %80, %79 : vector<128x1xf32>
    %cst_30 = arith.constant 1.000000e+00 : f32
    %82 = vector.broadcast %cst_30 : f32 to vector<128x1xf32>
    %83 = arith.mulf %81, %82 : vector<128x1xf32>
    %cst_31 = arith.constant 9.99999974E-6 : f32
    %84 = vector.broadcast %cst_31 : f32 to vector<128x1xf32>
    %85 = arith.addf %83, %84 : vector<128x1xf32>
    %86 = tpu.reciprocal %85 : vector<128x1xf32> -> vector<128x1xf32>
    %cst_32 = arith.constant 2.000000e+00 : f32
    %87 = vector.broadcast %cst_32 : f32 to vector<128x1xf32>
    %88 = arith.mulf %87, %86 : vector<128x1xf32>
    %89 = arith.mulf %88, %72 : vector<128x1xf32>
    %cst_33 = arith.constant 9.99999974E-6 : f32
    %90 = vector.broadcast %cst_33 : f32 to vector<128x1xf32>
    %91 = arith.addf %53, %90 : vector<128x1xf32>
    %92 = tpu.reciprocal %91 : vector<128x1xf32> -> vector<128x1xf32>
    %93 = arith.mulf %89, %92 : vector<128x1xf32>
    %94 = vector.broadcast %93 : vector<128x1xf32> to vector<128x128xf32>
    %95 = arith.mulf %49, %94 : vector<128x128xf32>
    %96 = arith.truncf %95 : vector<128x128xf32> to vector<128x128xbf16>
    %c0_34 = arith.constant 0 : index
    %c0_35 = arith.constant 0 : index
    %97 = vector.load %arg2[%c0_34, %c0_35] : memref<128x768xbf16, #tpu.memory_space<vmem>>, vector<128x768xbf16>
    %cst_36 = arith.constant dense<0.000000e+00> : vector<128x768xf32>
    %98 = tpu.matmul %96, %97, %cst_36 {dimension_numbers = #tpu.dot_dimension_numbers<[1], [0], [0], [1], [0, 0, 1, 1], [], []>} : vector<128x128xbf16>, vector<128x768xbf16>, vector<128x768xf32> -> vector<128x768xf32>
    %c0_37 = arith.constant 0 : index
    %c0_38 = arith.constant 0 : index
    %99 = vector.load %arg5[%c0_37, %c0_38] : memref<128x128xf32, #tpu.memory_space<vmem>>, vector<128x128xf32>
    %c0_39 = arith.constant 0 : index
    %c0_40 = arith.constant 0 : index
    %100 = vector.load %arg6[%c0_39, %c0_40] : memref<128x128xf32, #tpu.memory_space<vmem>>, vector<128x128xf32>
    %c0_41 = arith.constant 0 : index
    %c0_42 = arith.constant 0 : index
    %101 = vector.load %arg1[%c0_41, %c0_42] : memref<128x256xf32, #tpu.memory_space<vmem>>, vector<128x256xf32>
    %c0_43 = arith.constant 0 : index
    %102 = memref.load %arg4[%c0_43] : memref<2xf32, #tpu.memory_space<smem>>
    %c1 = arith.constant 1 : index
    %103 = memref.load %arg4[%c1] : memref<2xf32, #tpu.memory_space<smem>>
    %104 = tpu.iota {dimensions = array<i32: 0>} : vector<128x128xi32>
    %105 = tpu.iota {dimensions = array<i32: 1>} : vector<128x128xi32>
    %106 = arith.cmpi sge, %104, %105 : vector<128x128xi32>
    %107 = vector.extract_strided_slice %98 {offsets = [0, 0], sizes = [128, 128], strides = [1, 1]} : vector<128x768xf32> to vector<128x128xf32>
    %108 = vector.extract_strided_slice %98 {offsets = [0, 256], sizes = [128, 128], strides = [1, 1]} : vector<128x768xf32> to vector<128x128xf32>
    %109 = vector.extract_strided_slice %98 {offsets = [0, 512], sizes = [128, 128], strides = [1, 1]} : vector<128x768xf32> to vector<128x128xf32>
    %110 = vector.extract_strided_slice %101 {offsets = [0, 0], sizes = [128, 128], strides = [1, 1]} : vector<128x256xf32> to vector<128x128xf32>
    %111 = arith.mulf %107, %107 : vector<128x128xf32>
    %cst_44 = arith.constant dense<0.000000e+00> : vector<128xf32>
    %112 = vector.multi_reduction <add>, %111, %cst_44 [1] : vector<128x128xf32> to vector<128xf32>
    %113 = vector.shape_cast %112 : vector<128xf32> to vector<128x1xf32>
    %cst_45 = arith.constant 1.280000e+02 : f32
    %114 = vector.broadcast %cst_45 : f32 to vector<128x1xf32>
    %115 = arith.divf %113, %114 : vector<128x1xf32>
    %cst_46 = arith.constant 1.1920929E-7 : f32
    %116 = vector.broadcast %cst_46 : f32 to vector<128x1xf32>
    %117 = arith.addf %115, %116 : vector<128x1xf32>
    %118 = math.rsqrt %117 : vector<128x1xf32>
    %cst_47 = arith.constant 1.200000e-01 : f32
    %119 = vector.broadcast %cst_47 : f32 to vector<128x1xf32>
    %120 = arith.mulf %118, %119 : vector<128x1xf32>
    %121 = vector.broadcast %120 : vector<128x1xf32> to vector<128x128xf32>
    %122 = arith.mulf %107, %121 : vector<128x128xf32>
    %123 = arith.mulf %108, %108 : vector<128x128xf32>
    %cst_48 = arith.constant dense<0.000000e+00> : vector<128xf32>
    %124 = vector.multi_reduction <add>, %123, %cst_48 [1] : vector<128x128xf32> to vector<128xf32>
    %125 = vector.shape_cast %124 : vector<128xf32> to vector<128x1xf32>
    %cst_49 = arith.constant 1.280000e+02 : f32
    %126 = vector.broadcast %cst_49 : f32 to vector<128x1xf32>
    %127 = arith.divf %125, %126 : vector<128x1xf32>
    %cst_50 = arith.constant 1.1920929E-7 : f32
    %128 = vector.broadcast %cst_50 : f32 to vector<128x1xf32>
    %129 = arith.addf %127, %128 : vector<128x1xf32>
    %130 = math.rsqrt %129 : vector<128x1xf32>
    %131 = vector.broadcast %130 : vector<128x1xf32> to vector<128x128xf32>
    %132 = arith.mulf %108, %131 : vector<128x128xf32>
    %133 = arith.mulf %122, %99 : vector<128x128xf32>
    %c64_i32 = arith.constant 64 : i32
    %134 = tpu.dynamic_rotate %122 by %c64_i32 dim 1 : vector<128x128xf32>, i32 -> vector<128x128xf32>
    %135 = arith.mulf %134, %100 : vector<128x128xf32>
    %136 = arith.addf %133, %135 : vector<128x128xf32>
    %137 = arith.mulf %132, %99 : vector<128x128xf32>
    %c64_i32_51 = arith.constant 64 : i32
    %138 = tpu.dynamic_rotate %132 by %c64_i32_51 dim 1 : vector<128x128xf32>, i32 -> vector<128x128xf32>
    %139 = arith.mulf %138, %100 : vector<128x128xf32>
    %140 = arith.addf %137, %139 : vector<128x128xf32>
    %141 = vector.broadcast %102 : f32 to vector<128x128xf32>
    %142 = arith.mulf %141, %109 : vector<128x128xf32>
    %143 = vector.broadcast %103 : f32 to vector<128x128xf32>
    %144 = arith.mulf %143, %110 : vector<128x128xf32>
    %145 = arith.addf %142, %144 : vector<128x128xf32>
    %146 = arith.truncf %136 : vector<128x128xf32> to vector<128x128xbf16>
    %147 = arith.truncf %140 : vector<128x128xf32> to vector<128x128xbf16>
    %cst_52 = arith.constant dense<0.000000e+00> : vector<128x128xf32>
    %148 = tpu.matmul %146, %147, %cst_52 {dimension_numbers = #tpu.dot_dimension_numbers<[1], [1], [0], [0], [0, 0, 1, 0], [], []>} : vector<128x128xbf16>, vector<128x128xbf16>, vector<128x128xf32> -> vector<128x128xf32>
    %cst_53 = arith.constant dense<0xFF800000> : vector<128xf32>
    %149 = vector.multi_reduction <maximumf>, %148, %cst_53 [1] : vector<128x128xf32> to vector<128xf32>
    %150 = vector.shape_cast %149 : vector<128xf32> to vector<128x1xf32>
    %151 = vector.broadcast %150 : vector<128x1xf32> to vector<128x128xf32>
    %152 = arith.subf %148, %151 : vector<128x128xf32>
    %153 = math.exp %152 : vector<128x128xf32>
    %cst_54 = arith.constant 0.000000e+00 : f32
    %154 = vector.broadcast %cst_54 : f32 to vector<128x128xf32>
    %155 = arith.select %106, %153, %154 : vector<128x128xi1>, vector<128x128xf32>
    %cst_55 = arith.constant dense<0.000000e+00> : vector<128xf32>
    %156 = vector.multi_reduction <add>, %155, %cst_55 [1] : vector<128x128xf32> to vector<128xf32>
    %157 = vector.shape_cast %156 : vector<128xf32> to vector<128x1xf32>
    %158 = arith.truncf %155 : vector<128x128xf32> to vector<128x128xbf16>
    %159 = arith.truncf %145 : vector<128x128xf32> to vector<128x128xbf16>
    %cst_56 = arith.constant dense<0.000000e+00> : vector<128x128xf32>
    %160 = tpu.matmul %158, %159, %cst_56 {dimension_numbers = #tpu.dot_dimension_numbers<[1], [0], [0], [1], [0, 0, 1, 1], [], []>} : vector<128x128xbf16>, vector<128x128xbf16>, vector<128x128xf32> -> vector<128x128xf32>
    %161 = tpu.reciprocal %157 {approx = true} : vector<128x1xf32> -> vector<128x1xf32>
    %162 = vector.broadcast %161 : vector<128x1xf32> to vector<128x128xf32>
    %163 = arith.mulf %160, %162 : vector<128x128xf32>
    %164 = arith.truncf %163 : vector<128x128xf32> to vector<128x128xbf16>
    %c0_57 = arith.constant 0 : index
    %c0_58 = arith.constant 0 : index
    %165 = vector.load %arg9[%c0_57, %c0_58] : memref<128x256xbf16, #tpu.memory_space<vmem>>, vector<128x128xbf16>
    tpu.vector_store %arg9[%c0_57, %c0_58], %164 {strides = array<i32>} : memref<128x256xbf16, #tpu.memory_space<vmem>>, vector<128x128xbf16>,
    %166 = vector.extract_strided_slice %98 {offsets = [0, 128], sizes = [128, 128], strides = [1, 1]} : vector<128x768xf32> to vector<128x128xf32>
    %167 = vector.extract_strided_slice %98 {offsets = [0, 384], sizes = [128, 128], strides = [1, 1]} : vector<128x768xf32> to vector<128x128xf32>
    %168 = vector.extract_strided_slice %98 {offsets = [0, 640], sizes = [128, 128], strides = [1, 1]} : vector<128x768xf32> to vector<128x128xf32>
    %169 = vector.extract_strided_slice %101 {offsets = [0, 128], sizes = [128, 128], strides = [1, 1]} : vector<128x256xf32> to vector<128x128xf32>
    %170 = arith.mulf %166, %166 : vector<128x128xf32>
    %cst_59 = arith.constant dense<0.000000e+00> : vector<128xf32>
    %171 = vector.multi_reduction <add>, %170, %cst_59 [1] : vector<128x128xf32> to vector<128xf32>
    %172 = vector.shape_cast %171 : vector<128xf32> to vector<128x1xf32>
    %cst_60 = arith.constant 1.280000e+02 : f32
    %173 = vector.broadcast %cst_60 : f32 to vector<128x1xf32>
    %174 = arith.divf %172, %173 : vector<128x1xf32>
    %cst_61 = arith.constant 1.1920929E-7 : f32
    %175 = vector.broadcast %cst_61 : f32 to vector<128x1xf32>
    %176 = arith.addf %174, %175 : vector<128x1xf32>
    %177 = math.rsqrt %176 : vector<128x1xf32>
    %cst_62 = arith.constant 1.200000e-01 : f32
    %178 = vector.broadcast %cst_62 : f32 to vector<128x1xf32>
    %179 = arith.mulf %177, %178 : vector<128x1xf32>
    %180 = vector.broadcast %179 : vector<128x1xf32> to vector<128x128xf32>
    %181 = arith.mulf %166, %180 : vector<128x128xf32>
    %182 = arith.mulf %167, %167 : vector<128x128xf32>
    %cst_63 = arith.constant dense<0.000000e+00> : vector<128xf32>
    %183 = vector.multi_reduction <add>, %182, %cst_63 [1] : vector<128x128xf32> to vector<128xf32>
    %184 = vector.shape_cast %183 : vector<128xf32> to vector<128x1xf32>
    %cst_64 = arith.constant 1.280000e+02 : f32
    %185 = vector.broadcast %cst_64 : f32 to vector<128x1xf32>
    %186 = arith.divf %184, %185 : vector<128x1xf32>
    %cst_65 = arith.constant 1.1920929E-7 : f32
    %187 = vector.broadcast %cst_65 : f32 to vector<128x1xf32>
    %188 = arith.addf %186, %187 : vector<128x1xf32>
    %189 = math.rsqrt %188 : vector<128x1xf32>
    %190 = vector.broadcast %189 : vector<128x1xf32> to vector<128x128xf32>
    %191 = arith.mulf %167, %190 : vector<128x128xf32>
    %192 = arith.mulf %181, %99 : vector<128x128xf32>
    %c64_i32_66 = arith.constant 64 : i32
    %193 = tpu.dynamic_rotate %181 by %c64_i32_66 dim 1 : vector<128x128xf32>, i32 -> vector<128x128xf32>
    %194 = arith.mulf %193, %100 : vector<128x128xf32>
    %195 = arith.addf %192, %194 : vector<128x128xf32>
    %196 = arith.mulf %191, %99 : vector<128x128xf32>
    %c64_i32_67 = arith.constant 64 : i32
    %197 = tpu.dynamic_rotate %191 by %c64_i32_67 dim 1 : vector<128x128xf32>, i32 -> vector<128x128xf32>
    %198 = arith.mulf %197, %100 : vector<128x128xf32>
    %199 = arith.addf %196, %198 : vector<128x128xf32>
    %200 = vector.broadcast %102 : f32 to vector<128x128xf32>
    %201 = arith.mulf %200, %168 : vector<128x128xf32>
    %202 = vector.broadcast %103 : f32 to vector<128x128xf32>
    %203 = arith.mulf %202, %169 : vector<128x128xf32>
    %204 = arith.addf %201, %203 : vector<128x128xf32>
    %205 = arith.truncf %195 : vector<128x128xf32> to vector<128x128xbf16>
    %206 = arith.truncf %199 : vector<128x128xf32> to vector<128x128xbf16>
    %cst_68 = arith.constant dense<0.000000e+00> : vector<128x128xf32>
    %207 = tpu.matmul %205, %206, %cst_68 {dimension_numbers = #tpu.dot_dimension_numbers<[1], [1], [0], [0], [0, 0, 1, 0], [], []>} : vector<128x128xbf16>, vector<128x128xbf16>, vector<128x128xf32> -> vector<128x128xf32>
    %cst_69 = arith.constant dense<0xFF800000> : vector<128xf32>
    %208 = vector.multi_reduction <maximumf>, %207, %cst_69 [1] : vector<128x128xf32> to vector<128xf32>
    %209 = vector.shape_cast %208 : vector<128xf32> to vector<128x1xf32>
    %210 = vector.broadcast %209 : vector<128x1xf32> to vector<128x128xf32>
    %211 = arith.subf %207, %210 : vector<128x128xf32>
    %212 = math.exp %211 : vector<128x128xf32>
    %cst_70 = arith.constant 0.000000e+00 : f32
    %213 = vector.broadcast %cst_70 : f32 to vector<128x128xf32>
    %214 = arith.select %106, %212, %213 : vector<128x128xi1>, vector<128x128xf32>
    %cst_71 = arith.constant dense<0.000000e+00> : vector<128xf32>
    %215 = vector.multi_reduction <add>, %214, %cst_71 [1] : vector<128x128xf32> to vector<128xf32>
    %216 = vector.shape_cast %215 : vector<128xf32> to vector<128x1xf32>
    %217 = arith.truncf %214 : vector<128x128xf32> to vector<128x128xbf16>
    %218 = arith.truncf %204 : vector<128x128xf32> to vector<128x128xbf16>
    %cst_72 = arith.constant dense<0.000000e+00> : vector<128x128xf32>
    %219 = tpu.matmul %217, %218, %cst_72 {dimension_numbers = #tpu.dot_dimension_numbers<[1], [0], [0], [1], [0, 0, 1, 1], [], []>} : vector<128x128xbf16>, vector<128x128xbf16>, vector<128x128xf32> -> vector<128x128xf32>
    %220 = tpu.reciprocal %216 {approx = true} : vector<128x1xf32> -> vector<128x1xf32>
    %221 = vector.broadcast %220 : vector<128x1xf32> to vector<128x128xf32>
    %222 = arith.mulf %219, %221 : vector<128x128xf32>
    %223 = arith.truncf %222 : vector<128x128xf32> to vector<128x128xbf16>
    %c0_73 = arith.constant 0 : index
    %c128 = arith.constant 128 : index
    %224 = vector.load %arg9[%c0_73, %c128] : memref<128x256xbf16, #tpu.memory_space<vmem>>, vector<128x128xbf16>
    tpu.vector_store %arg9[%c0_73, %c128], %223 {strides = array<i32>} : memref<128x256xbf16, #tpu.memory_space<vmem>>, vector<128x128xbf16>,
    %c0_74 = arith.constant 0 : index
    %c0_75 = arith.constant 0 : index
    %225 = vector.load %arg9[%c0_74, %c0_75] : memref<128x256xbf16, #tpu.memory_space<vmem>>, vector<128x256xbf16>
    %c0_76 = arith.constant 0 : index
    %c0_77 = arith.constant 0 : index
    %226 = vector.load %arg3[%c0_76, %c0_77] : memref<256x128xbf16, #tpu.memory_space<vmem>>, vector<256x128xbf16>
    %cst_78 = arith.constant dense<0.000000e+00> : vector<128x128xf32>
    %227 = tpu.matmul %225, %226, %cst_78 {dimension_numbers = #tpu.dot_dimension_numbers<[1], [0], [0], [1], [0, 0, 1, 1], [], []>} : vector<128x256xbf16>, vector<256x128xbf16>, vector<128x128xf32> -> vector<128x128xf32>
    %228 = arith.mulf %227, %227 : vector<128x128xf32>
    %cst_79 = arith.constant dense<0.000000e+00> : vector<128xf32>
    %229 = vector.multi_reduction <add>, %228, %cst_79 [1] : vector<128x128xf32> to vector<128xf32>
    %230 = vector.shape_cast %229 : vector<128xf32> to vector<128x1xf32>
    %231 = math.sqrt %230 : vector<128x1xf32>
    %cst_80 = arith.constant 1.000000e+00 : f32
    %232 = vector.broadcast %cst_80 : f32 to vector<128x1xf32>
    %233 = arith.mulf %232, %81 : vector<128x1xf32>
    %234 = arith.mulf %233, %231 : vector<128x1xf32>
    %cst_81 = arith.constant 5.000000e-01 : f32
    %235 = vector.broadcast %cst_81 : f32 to vector<128x1xf32>
    %236 = arith.mulf %234, %235 : vector<128x1xf32>
    %237 = math.tanh %236 : vector<128x1xf32>
    %cst_82 = arith.constant 1.000000e+00 : f32
    %238 = vector.broadcast %cst_82 : f32 to vector<128x1xf32>
    %239 = arith.mulf %238, %237 : vector<128x1xf32>
    %cst_83 = arith.constant 9.99999974E-6 : f32
    %240 = vector.broadcast %cst_83 : f32 to vector<128x1xf32>
    %241 = arith.addf %231, %240 : vector<128x1xf32>
    %242 = tpu.reciprocal %241 : vector<128x1xf32> -> vector<128x1xf32>
    %243 = arith.mulf %239, %242 : vector<128x1xf32>
    %244 = vector.broadcast %243 : vector<128x1xf32> to vector<128x128xf32>
    %245 = arith.mulf %227, %244 : vector<128x128xf32>
    %246 = arith.mulf %245, %245 : vector<128x128xf32>
    %cst_84 = arith.constant dense<0.000000e+00> : vector<128xf32>
    %247 = vector.multi_reduction <add>, %246, %cst_84 [1] : vector<128x128xf32> to vector<128xf32>
    %248 = vector.shape_cast %247 : vector<128xf32> to vector<128x1xf32>
    %249 = arith.mulf %6, %245 : vector<128x128xf32>
    %cst_85 = arith.constant dense<0.000000e+00> : vector<128xf32>
    %250 = vector.multi_reduction <add>, %249, %cst_85 [1] : vector<128x128xf32> to vector<128xf32>
    %251 = vector.shape_cast %250 : vector<128xf32> to vector<128x1xf32>
    %cst_86 = arith.constant 2.000000e+00 : f32
    %252 = vector.broadcast %cst_86 : f32 to vector<128x1xf32>
    %253 = arith.mulf %252, %251 : vector<128x1xf32>
    %cst_87 = arith.constant 1.000000e+00 : f32
    %254 = vector.broadcast %cst_87 : f32 to vector<128x1xf32>
    %255 = arith.addf %254, %253 : vector<128x1xf32>
    %cst_88 = arith.constant 1.000000e+00 : f32
    %256 = vector.broadcast %cst_88 : f32 to vector<128x1xf32>
    %257 = arith.mulf %256, %248 : vector<128x1xf32>
    %258 = arith.addf %255, %257 : vector<128x1xf32>
    %259 = vector.broadcast %258 : vector<128x1xf32> to vector<128x128xf32>
    %260 = arith.mulf %259, %6 : vector<128x128xf32>
    %cst_89 = arith.constant 1.000000e+00 : f32
    %261 = vector.broadcast %cst_89 : f32 to vector<128x1xf32>
    %262 = arith.mulf %261, %13 : vector<128x1xf32>
    %cst_90 = arith.constant 1.000000e+00 : f32
    %263 = vector.broadcast %cst_90 : f32 to vector<128x1xf32>
    %264 = arith.subf %263, %262 : vector<128x1xf32>
    %265 = vector.broadcast %264 : vector<128x1xf32> to vector<128x128xf32>
    %266 = arith.mulf %265, %245 : vector<128x128xf32>
    %267 = arith.addf %260, %266 : vector<128x128xf32>
    %cst_91 = arith.constant 2.000000e+00 : f32
    %268 = vector.broadcast %cst_91 : f32 to vector<128x1xf32>
    %269 = arith.mulf %268, %251 : vector<128x1xf32>
    %cst_92 = arith.constant 1.000000e+00 : f32
    %270 = vector.broadcast %cst_92 : f32 to vector<128x1xf32>
    %271 = arith.addf %270, %269 : vector<128x1xf32>
    %cst_93 = arith.constant 1.000000e+00 : f32
    %272 = vector.broadcast %cst_93 : f32 to vector<128x1xf32>
    %273 = arith.mulf %272, %13 : vector<128x1xf32>
    %274 = arith.mulf %273, %248 : vector<128x1xf32>
    %275 = arith.addf %271, %274 : vector<128x1xf32>
    %cst_94 = arith.constant 9.99999974E-6 : f32
    %276 = vector.broadcast %cst_94 : f32 to vector<128x1xf32>
    %277 = arith.addf %275, %276 : vector<128x1xf32>
    %278 = tpu.reciprocal %277 : vector<128x1xf32> -> vector<128x1xf32>
    %279 = vector.broadcast %278 : vector<128x1xf32> to vector<128x128xf32>
    %280 = arith.mulf %267, %279 : vector<128x128xf32>
    %c0_95 = arith.constant 0 : index
    %c0_96 = arith.constant 0 : index
    %281 = vector.load %arg7[%c0_95, %c0_96] : memref<128x128xf32, #tpu.memory_space<vmem>>, vector<128x128xf32>
    tpu.vector_store %arg7[%c0_95, %c0_96], %280 {strides = array<i32>} : memref<128x128xf32, #tpu.memory_space<vmem>>, vector<128x128xf32>,
    return
  }
}

</mosaic_0001>

<llo_original>
// kernel: neg.1
$region0: #{neg.1}
  #allocation2 [shape = 's32[1]{0}', space=sflag, size = 0x4, scoped, tag = 'scoped memory for neg.1']
  %s0 = inlined_call_operand.hbm [shape: f32[128,64], index: 0, kind: input, shape index: {}]
  %s1 = inlined_call_operand.vmem [shape: f32[128,64], index: 1, kind: output, shape index: {}]
  $region1: #{neg.1} parent=0
    #allocation0 [shape = 'u8[32768]{0}', space=vmem, size = 0x8000, scoped, tag = 'operand span for operand 0']
    #allocation1 [shape = 's32[1]{0}', space=sflag, size = 0x4, scoped, tag = 'scoped memory for neg.1']
    %2 = vsyncpa [#allocation1], 0
    %s4 = ssub.s32 1024, 1024
    %5 = vsyncadd [#allocation1], %s4
    %s6 = sshll.u32 [#allocation0], 4
    %s7 = int_to_ptr.vmem [resolvable:$true] %s6
    %12 = dma.hbm_to_vmem [thread:$0]  %s0, 1024, %s7, [#allocation1], 128, 128, 8
    %13 = dma.done [#allocation1], 1024
    %v14 = vld [vmem:[#allocation0] sm:$0xff]
    %15 = xla_tuple %v14
    %16 = xla_tuple %15
    %v17 = vxor.u32 %v14, 2147483648
    %18 = xla_tuple %v17
    %19 = vst [vmem:[%s1] sm:$0xff] %v17
    %s20 = scalar_lea.vmem [#allocation0], 8
    %v21 = vld [vmem:[%s20] sm:$0xff]
    %22 = xla_tuple %v21
    %23 = xla_tuple %22
    %v24 = vxor.u32 %v21, 2147483648
    %25 = xla_tuple %v24
    %s26 = scalar_lea.vmem %s1, 8
    %27 = vst [vmem:[%s26] sm:$0xff] %v24
    %s28 = scalar_lea.vmem [#allocation0], 16
    %v29 = vld [vmem:[%s28] sm:$0xff]
    %30 = xla_tuple %v29
    %31 = xla_tuple %30
    %v32 = vxor.u32 %v29, 2147483648
    %33 = xla_tuple %v32
    %s34 = scalar_lea.vmem %s1, 16
    %35 = vst [vmem:[%s34] sm:$0xff] %v32
    %s36 = scalar_lea.vmem [#allocation0], 24
    %v37 = vld [vmem:[%s36] sm:$0xff]
    %38 = xla_tuple %v37
    %39 = xla_tuple %38
    %v40 = vxor.u32 %v37, 2147483648
    %41 = xla_tuple %v40
    %s42 = scalar_lea.vmem %s1, 24
    %43 = vst [vmem:[%s42] sm:$0xff] %v40
    %s44 = scalar_lea.vmem [#allocation0], 32
    %v45 = vld [vmem:[%s44] sm:$0xff]
    %46 = xla_tuple %v45
    %47 = xla_tuple %46
    %v48 = vxor.u32 %v45, 2147483648
    %49 = xla_tuple %v48
    %s50 = scalar_lea.vmem %s1, 32
    %51 = vst [vmem:[%s50] sm:$0xff] %v48
    %s52 = scalar_lea.vmem [#allocation0], 40
    %v53 = vld [vmem:[%s52] sm:$0xff]
    %54 = xla_tuple %v53
    %55 = xla_tuple %54
    %v56 = vxor.u32 %v53, 2147483648
    %57 = xla_tuple %v56
    %s58 = scalar_lea.vmem %s1, 40
    %59 = vst [vmem:[%s58] sm:$0xff] %v56
    %s60 = scalar_lea.vmem [#allocation0], 48
    %v61 = vld [vmem:[%s60] sm:$0xff]
    %62 = xla_tuple %v61
    %63 = xla_tuple %62
    %v64 = vxor.u32 %v61, 2147483648
    %65 = xla_tuple %v64
    %s66 = scalar_lea.vmem %s1, 48
    %67 = vst [vmem:[%s66] sm:$0xff] %v64
    %s68 = scalar_lea.vmem [#allocation0], 56
    %v69 = vld [vmem:[%s68] sm:$0xff]
    %70 = xla_tuple %v69
    %71 = xla_tuple %70
    %v72 = vxor.u32 %v69, 2147483648
    %73 = xla_tuple %v72
    %s74 = scalar_lea.vmem %s1, 56
    %75 = vst [vmem:[%s74] sm:$0xff] %v72
    %76 = vsyncpa [#allocation1], 1

// kernel: causal_self_attention_forward.1
$region0: #{causal_self_attention_forward.1}
  #allocation0 [shape = 'u32[]', space=smem, size = 0x4, offset = 0x4, fixed_abs, tag = 'smem constant byte address 0x4 - core index']
  #allocation1 [shape = 'u32[144,128]{1,0:T(1,128)}', space=vmem, size = 0x12000, scoped, tag = 'internal scratch']
  #allocation2 [shape = 'bf16[128,256]{1,0:T(8,128)(2,1)}', space=vmem, size = 0x10000, scoped, tag = 'scratch operand']
  %s0 = inlined_call_operand.vmem [shape: f32[128,128], index: 0, kind: input, shape index: {}]
  %s1 = inlined_call_operand.vmem [shape: f32[128,256], index: 1, kind: input, shape index: {}]
  %s2 = inlined_call_operand.vmem [shape: bf16[128,768], index: 2, kind: input, shape index: {}]
  %s3 = inlined_call_operand.vmem [shape: bf16[256,128], index: 3, kind: input, shape index: {}]
  %s4 = inlined_call_operand.vmem [shape: f32[2], index: 4, kind: input, shape index: {}]
  %s5 = inlined_call_operand.vmem [shape: f32[128,128], index: 5, kind: input, shape index: {}]
  %s6 = inlined_call_operand.vmem [shape: f32[128,128], index: 6, kind: input, shape index: {}]
  %s7 = inlined_call_operand.hbm [shape: f32[128,128], index: 7, kind: output, shape index: {0}]
  %s8 = inlined_call_operand.hbm [shape: f32[128,128], index: 8, kind: output, shape index: {1}]
  %9 = xla_tuple %s7, %s8
  %s10 = sld [smem:[#allocation0]]
  $region50: #{causal_self_attention_forward.1} parent=0
    _
  %s12 = ssub.s32 1, %s10
  %s13 = scalar_select 0, %s12, %s10
  $region1: #{causal_self_attention_forward.1} parent=0
    #allocation3 [shape = 'u8[512]{0}', space=smem, size = 0x200, scoped, tag = 'input window, operand 4, single buffered']
    #allocation4 [shape = 's32[1]{0}', space=sflag, size = 0x4, scoped, tag = 'scoped memory for causal_self_attention_forward.1']
    #allocation5 [shape = 's32[1]{0}', space=sflag, size = 0x4, scoped, tag = 'scoped memory for causal_self_attention_forward.1']
    #allocation6 [shape = 'u8[65536]{0}', space=vmem, size = 0x10000, scoped, tag = 'output window, operand 0, single buffered']
    #allocation7 [shape = 'u8[65536]{0}', space=vmem, size = 0x10000, scoped, tag = 'output window, operand 1, single buffered']
    #allocation8 [shape = 's32[1]{0}', space=sflag, size = 0x4, scoped, tag = 'scoped memory for causal_self_attention_forward.1']
    %14 = vsyncpa [#allocation5], 0
    %15 = vsyncpa [#allocation4], 0
    %16 = vsyncpa [#allocation8], 0
    // Predicated region
    $region2: #{causal_self_attention_forward.1} parent=1 // pred_check
      _
    $region3: #{causal_self_attention_forward.1} parent=1 // pred_check_branch
      %18 = sbr.rel (0) target = $region5
    $region4: #{causal_self_attention_forward.1} parent=1 // pred_region
      _
    $region5: #{causal_self_attention_forward.1} parent=1 // pred_fallthru
      _
    // Predicated region
    $region6: #{causal_self_attention_forward.1} parent=1 // pred_check
      _
    $region7: #{causal_self_attention_forward.1} parent=1 // pred_check_branch
      %20 = sbr.rel (0) target = $region9
    $region8: #{causal_self_attention_forward.1} parent=1 // pred_region
      _
    $region9: #{causal_self_attention_forward.1} parent=1 // pred_fallthru
      _
    // Predicated region
    $region10: #{causal_self_attention_forward.1} parent=1 // pred_check
      _
    $region11: #{causal_self_attention_forward.1} parent=1 // pred_check_branch
      %22 = sbr.rel (0) target = $region13
    $region12: #{causal_self_attention_forward.1} parent=1 // pred_region
      _
    $region13: #{causal_self_attention_forward.1} parent=1 // pred_fallthru
      _
    // Predicated region
    $region14: #{causal_self_attention_forward.1} parent=1 // pred_check
      _
    $region15: #{causal_self_attention_forward.1} parent=1 // pred_check_branch
      %24 = sbr.rel (0) target = $region17
    $region16: #{causal_self_attention_forward.1} parent=1 // pred_region
      _
    $region17: #{causal_self_attention_forward.1} parent=1 // pred_fallthru
      _
    // Predicated region
    $region18: #{causal_self_attention_forward.1} parent=1 // pred_check
      _
    $region19: #{causal_self_attention_forward.1} parent=1 // pred_check_branch
      %26 = sbr.rel (0) target = $region21
    $region20: #{causal_self_attention_forward.1} parent=1 // pred_region
      %s28 = ssub.s32 16, 16
      %29 = vsyncadd [#allocation5], %s28
      %s31 = sshll.u32 %s4, 4
      %s32 = int_to_ptr.vmem [resolvable:$true] %s31
      %34 = dma.vmem_to_smem %s32, 16, [#allocation3], [#allocation5]
    $region21: #{causal_self_attention_forward.1} parent=1 // pred_fallthru
      _
    // Predicated region
    $region22: #{causal_self_attention_forward.1} parent=1 // pred_check
      _
    $region23: #{causal_self_attention_forward.1} parent=1 // pred_check_branch
      %36 = sbr.rel (0) target = $region25
    $region24: #{causal_self_attention_forward.1} parent=1 // pred_region
      _
    $region25: #{causal_self_attention_forward.1} parent=1 // pred_fallthru
      _
    // Predicated region
    $region26: #{causal_self_attention_forward.1} parent=1 // pred_check
      _
    $region27: #{causal_self_attention_forward.1} parent=1 // pred_check_branch
      %38 = sbr.rel (0) target = $region29
    $region28: #{causal_self_attention_forward.1} parent=1 // pred_region
      _
    $region29: #{causal_self_attention_forward.1} parent=1 // pred_fallthru
      _
    // Predicated region
    $region30: #{causal_self_attention_forward.1} parent=1 // pred_check
      _
    $region31: #{causal_self_attention_forward.1} parent=1 // pred_check_branch
      %40 = sbr.rel (0) target = $region33
    $region32: #{causal_self_attention_forward.1} parent=1 // pred_region
      %41 = dma.done [#allocation5], 16
    $region33: #{causal_self_attention_forward.1} parent=1 // pred_fallthru
      _
    %42 = sfence
    %v44 = vld [vmem:[%s0] sm:$0xff]
    %v45 = vld [vmem:[%s0 + $0x8] sm:$0xff]
    %v46 = vld [vmem:[%s0 + $0x10] sm:$0xff]
    %v47 = vld [vmem:[%s0 + $0x18] sm:$0xff]
    %v48 = vld [vmem:[%s0 + $0x20] sm:$0xff]
    %v49 = vld [vmem:[%s0 + $0x28] sm:$0xff]
    %v50 = vld [vmem:[%s0 + $0x30] sm:$0xff]
    %v51 = vld [vmem:[%s0 + $0x38] sm:$0xff]
    %v52 = vld [vmem:[%s0 + $0x40] sm:$0xff]
    %v53 = vld [vmem:[%s0 + $0x48] sm:$0xff]
    %v54 = vld [vmem:[%s0 + $0x50] sm:$0xff]
    %v55 = vld [vmem:[%s0 + $0x58] sm:$0xff]
    %v56 = vld [vmem:[%s0 + $0x60] sm:$0xff]
    %v57 = vld [vmem:[%s0 + $0x68] sm:$0xff]
    %v58 = vld [vmem:[%s0 + $0x70] sm:$0xff]
    %v59 = vld [vmem:[%s0 + $0x78] sm:$0xff]
    %v60 = vrot.slane %v44, 7
    %v61 = vrot.slane %v45, 7
    %v62 = vrot.slane %v46, 7
    %v63 = vrot.slane %v47, 7
    %v64 = vrot.slane %v48, 7
    %v65 = vrot.slane %v49, 7
    %v66 = vrot.slane %v50, 7
    %v67 = vrot.slane %v51, 7
    %v68 = vrot.slane %v52, 7
    %v69 = vrot.slane %v53, 7
    %v70 = vrot.slane %v54, 7
    %v71 = vrot.slane %v55, 7
    %v72 = vrot.slane %v56, 7
    %v73 = vrot.slane %v57, 7
    %v74 = vrot.slane %v58, 7
    %v75 = vrot.slane %v59, 7
    %v76 = vlaneseq
    %v77 = vshrl.u32 %v76, 7
    %vm78 = vcmp.lt.s32.totalorder %v77, 1
    %v79 = vsel %vm78, %v74, %v75
    %v80 = vsel %vm78, %v73, %v74
    %v81 = vsel %vm78, %v72, %v73
    %v82 = vsel %vm78, %v71, %v72
    %v83 = vsel %vm78, %v70, %v71
    %v84 = vsel %vm78, %v69, %v70
    %v85 = vsel %vm78, %v68, %v69
    %v86 = vsel %vm78, %v67, %v68
    %v87 = vsel %vm78, %v66, %v67
    %v88 = vsel %vm78, %v65, %v66
    %v89 = vsel %vm78, %v64, %v65
    %v90 = vsel %vm78, %v63, %v64
    %v91 = vsel %vm78, %v62, %v63
    %v92 = vsel %vm78, %v61, %v62
    %v93 = vsel %vm78, %v60, %v61
    %v94 = vsel %vm78, %v75, %v60
    %v95 = vadd.s32 %v77, 8
    %v96 = vadd.s32 %v77, 16
    %v97 = vadd.s32 %v77, 24
    %v98 = vadd.s32 %v77, 32
    %v99 = vadd.s32 %v77, 40
    %v100 = vadd.s32 %v77, 48
    %v101 = vadd.s32 %v77, 56
    %v102 = vadd.s32 %v77, 64
    %v103 = vadd.s32 %v77, 72
    %v104 = vadd.s32 %v77, 80
    %v105 = vadd.s32 %v77, 88
    %v106 = vadd.s32 %v77, 96
    %v107 = vadd.s32 %v77, 104
    %v108 = vadd.s32 %v77, 112
    %v109 = vadd.s32 %v77, 120
    %vm110 = vcmp.eq.s32.totalorder %v77, 0
    %vm111 = vcmp.eq.s32.totalorder %v95, 0
    %vm112 = vcmp.eq.s32.totalorder %v96, 0
    %vm113 = vcmp.eq.s32.totalorder %v97, 0
    %vm114 = vcmp.eq.s32.totalorder %v98, 0
    %vm115 = vcmp.eq.s32.totalorder %v99, 0
    %vm116 = vcmp.eq.s32.totalorder %v100, 0
    %vm117 = vcmp.eq.s32.totalorder %v101, 0
    %vm118 = vcmp.eq.s32.totalorder %v102, 0
    %vm119 = vcmp.eq.s32.totalorder %v103, 0
    %vm120 = vcmp.eq.s32.totalorder %v104, 0
    %vm121 = vcmp.eq.s32.totalorder %v105, 0
    %vm122 = vcmp.eq.s32.totalorder %v106, 0
    %vm123 = vcmp.eq.s32.totalorder %v107, 0
    %vm124 = vcmp.eq.s32.totalorder %v108, 0
    %vm125 = vcmp.eq.s32.totalorder %v109, 0
    %v126 = vsel %vm110, 0.0, %v94
    %v127 = vsel %vm111, 0.0, %v93
    %v128 = vsel %vm112, 0.0, %v92
    %v129 = vsel %vm113, 0.0, %v91
    %v130 = vsel %vm114, 0.0, %v90
    %v131 = vsel %vm115, 0.0, %v89
    %v132 = vsel %vm116, 0.0, %v88
    %v133 = vsel %vm117, 0.0, %v87
    %v134 = vsel %vm118, 0.0, %v86
    %v135 = vsel %vm119, 0.0, %v85
    %v136 = vsel %vm120, 0.0, %v84
    %v137 = vsel %vm121, 0.0, %v83
    %v138 = vsel %vm122, 0.0, %v82
    %v139 = vsel %vm123, 0.0, %v81
    %v140 = vsel %vm124, 0.0, %v80
    %v141 = vsel %vm125, 0.0, %v79
    %142 = vst [vmem:[#allocation7] sm:$0xff] %v126
    %143 = vst [vmem:[#allocation7 + $0x8] sm:$0xff] %v127
    %144 = vst [vmem:[#allocation7 + $0x10] sm:$0xff] %v128
    %145 = vst [vmem:[#allocation7 + $0x18] sm:$0xff] %v129
    %146 = vst [vmem:[#allocation7 + $0x20] sm:$0xff] %v130
    %147 = vst [vmem:[#allocation7 + $0x28] sm:$0xff] %v131
    %148 = vst [vmem:[#allocation7 + $0x30] sm:$0xff] %v132
    %149 = vst [vmem:[#allocation7 + $0x38] sm:$0xff] %v133
    %150 = vst [vmem:[#allocation7 + $0x40] sm:$0xff] %v134
    %151 = vst [vmem:[#allocation7 + $0x48] sm:$0xff] %v135
    %152 = vst [vmem:[#allocation7 + $0x50] sm:$0xff] %v136
    %153 = vst [vmem:[#allocation7 + $0x58] sm:$0xff] %v137
    %154 = vst [vmem:[#allocation7 + $0x60] sm:$0xff] %v138
    %155 = vst [vmem:[#allocation7 + $0x68] sm:$0xff] %v139
    %156 = vst [vmem:[#allocation7 + $0x70] sm:$0xff] %v140
    %157 = vst [vmem:[#allocation7 + $0x78] sm:$0xff] %v141
    %v158 = vmul.f32 %v44, %v44
    %v159 = vmul.f32 %v45, %v45
    %v160 = vmul.f32 %v46, %v46
    %v161 = vmul.f32 %v47, %v47
    %v162 = vmul.f32 %v48, %v48
    %v163 = vmul.f32 %v49, %v49
    %v164 = vmul.f32 %v50, %v50
    %v165 = vmul.f32 %v51, %v51
    %v166 = vmul.f32 %v52, %v52
    %v167 = vmul.f32 %v53, %v53
    %v168 = vmul.f32 %v54, %v54
    %v169 = vmul.f32 %v55, %v55
    %v170 = vmul.f32 %v56, %v56
    %v171 = vmul.f32 %v57, %v57
    %v172 = vmul.f32 %v58, %v58
    %v173 = vmul.f32 %v59, %v59
    %174 = vadd.xlane.f32.xlu0 %v158
    %v175 = vpop.xlane.xlu0 %174
    %176 = vadd.xlane.f32.xlu0 %v159
    %v177 = vpop.xlane.xlu0 %176
    %178 = vadd.xlane.f32.xlu0 %v160
    %v179 = vpop.xlane.xlu0 %178
    %180 = vadd.xlane.f32.xlu0 %v161
    %v181 = vpop.xlane.xlu0 %180
    %182 = vadd.xlane.f32.xlu0 %v162
    %v183 = vpop.xlane.xlu0 %182
    %184 = vadd.xlane.f32.xlu0 %v163
    %v185 = vpop.xlane.xlu0 %184
    %186 = vadd.xlane.f32.xlu0 %v164
    %v187 = vpop.xlane.xlu0 %186
    %188 = vadd.xlane.f32.xlu0 %v165
    %v189 = vpop.xlane.xlu0 %188
    %190 = vadd.xlane.f32.xlu0 %v166
    %v191 = vpop.xlane.xlu0 %190
    %192 = vadd.xlane.f32.xlu0 %v167
    %v193 = vpop.xlane.xlu0 %192
    %194 = vadd.xlane.f32.xlu0 %v168
    %v195 = vpop.xlane.xlu0 %194
    %196 = vadd.xlane.f32.xlu0 %v169
    %v197 = vpop.xlane.xlu0 %196
    %198 = vadd.xlane.f32.xlu0 %v170
    %v199 = vpop.xlane.xlu0 %198
    %200 = vadd.xlane.f32.xlu0 %v171
    %v201 = vpop.xlane.xlu0 %200
    %202 = vadd.xlane.f32.xlu0 %v172
    %v203 = vpop.xlane.xlu0 %202
    %204 = vadd.xlane.f32.xlu0 %v173
    %v205 = vpop.xlane.xlu0 %204
    %v206 = vmul.f32 %v126, %v126
    %v207 = vmul.f32 %v127, %v127
    %v208 = vmul.f32 %v128, %v128
    %v209 = vmul.f32 %v129, %v129
    %v210 = vmul.f32 %v130, %v130
    %v211 = vmul.f32 %v131, %v131
    %v212 = vmul.f32 %v132, %v132
    %v213 = vmul.f32 %v133, %v133
    %v214 = vmul.f32 %v134, %v134
    %v215 = vmul.f32 %v135, %v135
    %v216 = vmul.f32 %v136, %v136
    %v217 = vmul.f32 %v137, %v137
    %v218 = vmul.f32 %v138, %v138
    %v219 = vmul.f32 %v139, %v139
    %v220 = vmul.f32 %v140, %v140
    %v221 = vmul.f32 %v141, %v141
    %222 = vadd.xlane.f32.xlu0 %v206
    %v223 = vpop.xlane.xlu0 %222
    %224 = vadd.xlane.f32.xlu0 %v207
    %v225 = vpop.xlane.xlu0 %224
    %226 = vadd.xlane.f32.xlu0 %v208
    %v227 = vpop.xlane.xlu0 %226
    %228 = vadd.xlane.f32.xlu0 %v209
    %v229 = vpop.xlane.xlu0 %228
    %230 = vadd.xlane.f32.xlu0 %v210
    %v231 = vpop.xlane.xlu0 %230
    %232 = vadd.xlane.f32.xlu0 %v211
    %v233 = vpop.xlane.xlu0 %232
    %234 = vadd.xlane.f32.xlu0 %v212
    %v235 = vpop.xlane.xlu0 %234
    %236 = vadd.xlane.f32.xlu0 %v213
    %v237 = vpop.xlane.xlu0 %236
    %238 = vadd.xlane.f32.xlu0 %v214
    %v239 = vpop.xlane.xlu0 %238
    %240 = vadd.xlane.f32.xlu0 %v215
    %v241 = vpop.xlane.xlu0 %240
    %242 = vadd.xlane.f32.xlu0 %v216
    %v243 = vpop.xlane.xlu0 %242
    %244 = vadd.xlane.f32.xlu0 %v217
    %v245 = vpop.xlane.xlu0 %244
    %246 = vadd.xlane.f32.xlu0 %v218
    %v247 = vpop.xlane.xlu0 %246
    %248 = vadd.xlane.f32.xlu0 %v219
    %v249 = vpop.xlane.xlu0 %248
    %250 = vadd.xlane.f32.xlu0 %v220
    %v251 = vpop.xlane.xlu0 %250
    %252 = vadd.xlane.f32.xlu0 %v221
    %v253 = vpop.xlane.xlu0 %252
    %v254 = vmul.f32 %v126, %v44
    %v255 = vmul.f32 %v127, %v45
    %v256 = vmul.f32 %v128, %v46
    %v257 = vmul.f32 %v129, %v47
    %v258 = vmul.f32 %v130, %v48
    %v259 = vmul.f32 %v131, %v49
    %v260 = vmul.f32 %v132, %v50
    %v261 = vmul.f32 %v133, %v51
    %v262 = vmul.f32 %v134, %v52
    %v263 = vmul.f32 %v135, %v53
    %v264 = vmul.f32 %v136, %v54
    %v265 = vmul.f32 %v137, %v55
    %v266 = vmul.f32 %v138, %v56
    %v267 = vmul.f32 %v139, %v57
    %v268 = vmul.f32 %v140, %v58
    %v269 = vmul.f32 %v141, %v59
    %270 = vadd.xlane.f32.xlu0 %v254
    %v271 = vpop.xlane.xlu0 %270
    %272 = vadd.xlane.f32.xlu0 %v255
    %v273 = vpop.xlane.xlu0 %272
    %274 = vadd.xlane.f32.xlu0 %v256
    %v275 = vpop.xlane.xlu0 %274
    %276 = vadd.xlane.f32.xlu0 %v257
    %v277 = vpop.xlane.xlu0 %276
    %278 = vadd.xlane.f32.xlu0 %v258
    %v279 = vpop.xlane.xlu0 %278
    %280 = vadd.xlane.f32.xlu0 %v259
    %v281 = vpop.xlane.xlu0 %280
    %282 = vadd.xlane.f32.xlu0 %v260
    %v283 = vpop.xlane.xlu0 %282
    %284 = vadd.xlane.f32.xlu0 %v261
    %v285 = vpop.xlane.xlu0 %284
    %286 = vadd.xlane.f32.xlu0 %v262
    %v287 = vpop.xlane.xlu0 %286
    %288 = vadd.xlane.f32.xlu0 %v263
    %v289 = vpop.xlane.xlu0 %288
    %290 = vadd.xlane.f32.xlu0 %v264
    %v291 = vpop.xlane.xlu0 %290
    %292 = vadd.xlane.f32.xlu0 %v265
    %v293 = vpop.xlane.xlu0 %292
    %294 = vadd.xlane.f32.xlu0 %v266
    %v295 = vpop.xlane.xlu0 %294
    %296 = vadd.xlane.f32.xlu0 %v267
    %v297 = vpop.xlane.xlu0 %296
    %298 = vadd.xlane.f32.xlu0 %v268
    %v299 = vpop.xlane.xlu0 %298
    %300 = vadd.xlane.f32.xlu0 %v269
    %v301 = vpop.xlane.xlu0 %300
    %v302 = vsub.f32 0.0, %v271
    %v303 = vsub.f32 0.0, %v273
    %v304 = vsub.f32 0.0, %v275
    %v305 = vsub.f32 0.0, %v277
    %v306 = vsub.f32 0.0, %v279
    %v307 = vsub.f32 0.0, %v281
    %v308 = vsub.f32 0.0, %v283
    %v309 = vsub.f32 0.0, %v285
    %v310 = vsub.f32 0.0, %v287
    %v311 = vsub.f32 0.0, %v289
    %v312 = vsub.f32 0.0, %v291
    %v313 = vsub.f32 0.0, %v293
    %v314 = vsub.f32 0.0, %v295
    %v315 = vsub.f32 0.0, %v297
    %v316 = vsub.f32 0.0, %v299
    %v317 = vsub.f32 0.0, %v301
    %v318 = vmul.f32 %v302, 2.0
    %v319 = vmul.f32 %v303, 2.0
    %v320 = vmul.f32 %v304, 2.0
    %v321 = vmul.f32 %v305, 2.0
    %v322 = vmul.f32 %v306, 2.0
    %v323 = vmul.f32 %v307, 2.0
    %v324 = vmul.f32 %v308, 2.0
    %v325 = vmul.f32 %v309, 2.0
    %v326 = vmul.f32 %v310, 2.0
    %v327 = vmul.f32 %v311, 2.0
    %v328 = vmul.f32 %v312, 2.0
    %v329 = vmul.f32 %v313, 2.0
    %v330 = vmul.f32 %v314, 2.0
    %v331 = vmul.f32 %v315, 2.0
    %v332 = vmul.f32 %v316, 2.0
    %v333 = vmul.f32 %v317, 2.0
    %v334 = vadd.f32 %v318, 1.0
    %v335 = vadd.f32 %v319, 1.0
    %v336 = vadd.f32 %v320, 1.0
    %v337 = vadd.f32 %v321, 1.0
    %v338 = vadd.f32 %v322, 1.0
    %v339 = vadd.f32 %v323, 1.0
    %v340 = vadd.f32 %v324, 1.0
    %v341 = vadd.f32 %v325, 1.0
    %v342 = vadd.f32 %v326, 1.0
    %v343 = vadd.f32 %v327, 1.0
    %v344 = vadd.f32 %v328, 1.0
    %v345 = vadd.f32 %v329, 1.0
    %v346 = vadd.f32 %v330, 1.0
    %v347 = vadd.f32 %v331, 1.0
    %v348 = vadd.f32 %v332, 1.0
    %v349 = vadd.f32 %v333, 1.0
    %v350 = vadd.f32 %v334, %v175
    %v351 = vadd.f32 %v335, %v177
    %v352 = vadd.f32 %v336, %v179
    %v353 = vadd.f32 %v337, %v181
    %v354 = vadd.f32 %v338, %v183
    %v355 = vadd.f32 %v339, %v185
    %v356 = vadd.f32 %v340, %v187
    %v357 = vadd.f32 %v341, %v189
    %v358 = vadd.f32 %v342, %v191
    %v359 = vadd.f32 %v343, %v193
    %v360 = vadd.f32 %v344, %v195
    %v361 = vadd.f32 %v345, %v197
    %v362 = vadd.f32 %v346, %v199
    %v363 = vadd.f32 %v347, %v201
    %v364 = vadd.f32 %v348, %v203
    %v365 = vadd.f32 %v349, %v205
    %v366 = vsub.f32 0.0, %v350
    %v367 = vsub.f32 0.0, %v351
    %v368 = vsub.f32 0.0, %v352
    %v369 = vsub.f32 0.0, %v353
    %v370 = vsub.f32 0.0, %v354
    %v371 = vsub.f32 0.0, %v355
    %v372 = vsub.f32 0.0, %v356
    %v373 = vsub.f32 0.0, %v357
    %v374 = vsub.f32 0.0, %v358
    %v375 = vsub.f32 0.0, %v359
    %v376 = vsub.f32 0.0, %v360
    %v377 = vsub.f32 0.0, %v361
    %v378 = vsub.f32 0.0, %v362
    %v379 = vsub.f32 0.0, %v363
    %v380 = vsub.f32 0.0, %v364
    %v381 = vsub.f32 0.0, %v365
    %v382 = vmul.f32 %v366, %v126
    %v383 = vmul.f32 %v367, %v127
    %v384 = vmul.f32 %v368, %v128
    %v385 = vmul.f32 %v369, %v129
    %v386 = vmul.f32 %v370, %v130
    %v387 = vmul.f32 %v371, %v131
    %v388 = vmul.f32 %v372, %v132
    %v389 = vmul.f32 %v373, %v133
    %v390 = vmul.f32 %v374, %v134
    %v391 = vmul.f32 %v375, %v135
    %v392 = vmul.f32 %v376, %v136
    %v393 = vmul.f32 %v377, %v137
    %v394 = vmul.f32 %v378, %v138
    %v395 = vmul.f32 %v379, %v139
    %v396 = vmul.f32 %v380, %v140
    %v397 = vmul.f32 %v381, %v141
    %v398 = vsub.f32 1.0, %v223
    %v399 = vsub.f32 1.0, %v225
    %v400 = vsub.f32 1.0, %v227
    %v401 = vsub.f32 1.0, %v229
    %v402 = vsub.f32 1.0, %v231
    %v403 = vsub.f32 1.0, %v233
    %v404 = vsub.f32 1.0, %v235
    %v405 = vsub.f32 1.0, %v237
    %v406 = vsub.f32 1.0, %v239
    %v407 = vsub.f32 1.0, %v241
    %v408 = vsub.f32 1.0, %v243
    %v409 = vsub.f32 1.0, %v245
    %v410 = vsub.f32 1.0, %v247
    %v411 = vsub.f32 1.0, %v249
    %v412 = vsub.f32 1.0, %v251
    %v413 = vsub.f32 1.0, %v253
    %v414 = vmul.f32 %v398, %v44
    %v415 = vmul.f32 %v399, %v45
    %v416 = vmul.f32 %v400, %v46
    %v417 = vmul.f32 %v401, %v47
    %v418 = vmul.f32 %v402, %v48
    %v419 = vmul.f32 %v403, %v49
    %v420 = vmul.f32 %v404, %v50
    %v421 = vmul.f32 %v405, %v51
    %v422 = vmul.f32 %v406, %v52
    %v423 = vmul.f32 %v407, %v53
    %v424 = vmul.f32 %v408, %v54
    %v425 = vmul.f32 %v409, %v55
    %v426 = vmul.f32 %v410, %v56
    %v427 = vmul.f32 %v411, %v57
    %v428 = vmul.f32 %v412, %v58
    %v429 = vmul.f32 %v413, %v59
    %v430 = vadd.f32 %v382, %v414
    %v431 = vadd.f32 %v383, %v415
    %v432 = vadd.f32 %v384, %v416
    %v433 = vadd.f32 %v385, %v417
    %v434 = vadd.f32 %v386, %v418
    %v435 = vadd.f32 %v387, %v419
    %v436 = vadd.f32 %v388, %v420
    %v437 = vadd.f32 %v389, %v421
    %v438 = vadd.f32 %v390, %v422
    %v439 = vadd.f32 %v391, %v423
    %v440 = vadd.f32 %v392, %v424
    %v441 = vadd.f32 %v393, %v425
    %v442 = vadd.f32 %v394, %v426
    %v443 = vadd.f32 %v395, %v427
    %v444 = vadd.f32 %v396, %v428
    %v445 = vadd.f32 %v397, %v429
    %v446 = vmul.f32 %v223, %v175
    %v447 = vmul.f32 %v225, %v177
    %v448 = vmul.f32 %v227, %v179
    %v449 = vmul.f32 %v229, %v181
    %v450 = vmul.f32 %v231, %v183
    %v451 = vmul.f32 %v233, %v185
    %v452 = vmul.f32 %v235, %v187
    %v453 = vmul.f32 %v237, %v189
    %v454 = vmul.f32 %v239, %v191
    %v455 = vmul.f32 %v241, %v193
    %v456 = vmul.f32 %v243, %v195
    %v457 = vmul.f32 %v245, %v197
    %v458 = vmul.f32 %v247, %v199
    %v459 = vmul.f32 %v249, %v201
    %v460 = vmul.f32 %v251, %v203
    %v461 = vmul.f32 %v253, %v205
    %v462 = vadd.f32 %v334, %v446
    %v463 = vadd.f32 %v335, %v447
    %v464 = vadd.f32 %v336, %v448
    %v465 = vadd.f32 %v337, %v449
    %v466 = vadd.f32 %v338, %v450
    %v467 = vadd.f32 %v339, %v451
    %v468 = vadd.f32 %v340, %v452
    %v469 = vadd.f32 %v341, %v453
    %v470 = vadd.f32 %v342, %v454
    %v471 = vadd.f32 %v343, %v455
    %v472 = vadd.f32 %v344, %v456
    %v473 = vadd.f32 %v345, %v457
    %v474 = vadd.f32 %v346, %v458
    %v475 = vadd.f32 %v347, %v459
    %v476 = vadd.f32 %v348, %v460
    %v477 = vadd.f32 %v349, %v461
    %v478 = vadd.f32 %v462, 1e-05
    %v479 = vadd.f32 %v463, 1e-05
    %v480 = vadd.f32 %v464, 1e-05
    %v481 = vadd.f32 %v465, 1e-05
    %v482 = vadd.f32 %v466, 1e-05
    %v483 = vadd.f32 %v467, 1e-05
    %v484 = vadd.f32 %v468, 1e-05
    %v485 = vadd.f32 %v469, 1e-05
    %v486 = vadd.f32 %v470, 1e-05
    %v487 = vadd.f32 %v471, 1e-05
    %v488 = vadd.f32 %v472, 1e-05
    %v489 = vadd.f32 %v473, 1e-05
    %v490 = vadd.f32 %v474, 1e-05
    %v491 = vadd.f32 %v475, 1e-05
    %v492 = vadd.f32 %v476, 1e-05
    %v493 = vadd.f32 %v477, 1e-05
    %v494 = vrcp.pop %v478
    %v495 = vrcp.pop %v479
    %v496 = vrcp.pop %v480
    %v497 = vrcp.pop %v481
    %v498 = vrcp.pop %v482
    %v499 = vrcp.pop %v483
    %v500 = vrcp.pop %v484
    %v501 = vrcp.pop %v485
    %v502 = vrcp.pop %v486
    %v503 = vrcp.pop %v487
    %v504 = vrcp.pop %v488
    %v505 = vrcp.pop %v489
    %v506 = vrcp.pop %v490
    %v507 = vrcp.pop %v491
    %v508 = vrcp.pop %v492
    %v509 = vrcp.pop %v493
    %v510 = vmul.f32 %v430, %v494
    %v511 = vmul.f32 %v431, %v495
    %v512 = vmul.f32 %v432, %v496
    %v513 = vmul.f32 %v433, %v497
    %v514 = vmul.f32 %v434, %v498
    %v515 = vmul.f32 %v435, %v499
    %v516 = vmul.f32 %v436, %v500
    %v517 = vmul.f32 %v437, %v501
    %v518 = vmul.f32 %v438, %v502
    %v519 = vmul.f32 %v439, %v503
    %v520 = vmul.f32 %v440, %v504
    %v521 = vmul.f32 %v441, %v505
    %v522 = vmul.f32 %v442, %v506
    %v523 = vmul.f32 %v443, %v507
    %v524 = vmul.f32 %v444, %v508
    %v525 = vmul.f32 %v445, %v509
    %v526 = vmul.f32 %v510, %v510
    %v527 = vmul.f32 %v511, %v511
    %v528 = vmul.f32 %v512, %v512
    %v529 = vmul.f32 %v513, %v513
    %v530 = vmul.f32 %v514, %v514
    %v531 = vmul.f32 %v515, %v515
    %v532 = vmul.f32 %v516, %v516
    %v533 = vmul.f32 %v517, %v517
    %v534 = vmul.f32 %v518, %v518
    %v535 = vmul.f32 %v519, %v519
    %v536 = vmul.f32 %v520, %v520
    %v537 = vmul.f32 %v521, %v521
    %v538 = vmul.f32 %v522, %v522
    %v539 = vmul.f32 %v523, %v523
    %v540 = vmul.f32 %v524, %v524
    %v541 = vmul.f32 %v525, %v525
    %542 = vadd.xlane.f32.xlu0 %v526
    %v543 = vpop.xlane.xlu0 %542
    %544 = vadd.xlane.f32.xlu0 %v527
    %v545 = vpop.xlane.xlu0 %544
    %546 = vadd.xlane.f32.xlu0 %v528
    %v547 = vpop.xlane.xlu0 %546
    %548 = vadd.xlane.f32.xlu0 %v529
    %v549 = vpop.xlane.xlu0 %548
    %550 = vadd.xlane.f32.xlu0 %v530
    %v551 = vpop.xlane.xlu0 %550
    %552 = vadd.xlane.f32.xlu0 %v531
    %v553 = vpop.xlane.xlu0 %552
    %554 = vadd.xlane.f32.xlu0 %v532
    %v555 = vpop.xlane.xlu0 %554
    %556 = vadd.xlane.f32.xlu0 %v533
    %v557 = vpop.xlane.xlu0 %556
    %558 = vadd.xlane.f32.xlu0 %v534
    %v559 = vpop.xlane.xlu0 %558
    %560 = vadd.xlane.f32.xlu0 %v535
    %v561 = vpop.xlane.xlu0 %560
    %562 = vadd.xlane.f32.xlu0 %v536
    %v563 = vpop.xlane.xlu0 %562
    %564 = vadd.xlane.f32.xlu0 %v537
    %v565 = vpop.xlane.xlu0 %564
    %566 = vadd.xlane.f32.xlu0 %v538
    %v567 = vpop.xlane.xlu0 %566
    %568 = vadd.xlane.f32.xlu0 %v539
    %v569 = vpop.xlane.xlu0 %568
    %570 = vadd.xlane.f32.xlu0 %v540
    %v571 = vpop.xlane.xlu0 %570
    %572 = vadd.xlane.f32.xlu0 %v541
    %v573 = vpop.xlane.xlu0 %572
    %v574 = vrsqrt.pop %v543
    %v575 = vmul.f32 %v543, %v574
    %vm576 = vcmp.eq.f32.partialorder %v543, inf
    %v577 = vsel %vm576, %v543, %v575
    %vm578 = vcmp.eq.f32.partialorder %v543, 0.0
    %v579 = vand.u32 %v543, 2147483648
    %v580 = vsel %vm578, %v579, %v577
    %v581 = vrsqrt.pop %v545
    %v582 = vmul.f32 %v545, %v581
    %vm583 = vcmp.eq.f32.partialorder %v545, inf
    %v584 = vsel %vm583, %v545, %v582
    %vm585 = vcmp.eq.f32.partialorder %v545, 0.0
    %v586 = vand.u32 %v545, 2147483648
    %v587 = vsel %vm585, %v586, %v584
    %v588 = vrsqrt.pop %v547
    %v589 = vmul.f32 %v547, %v588
    %vm590 = vcmp.eq.f32.partialorder %v547, inf
    %v591 = vsel %vm590, %v547, %v589
    %vm592 = vcmp.eq.f32.partialorder %v547, 0.0
    %v593 = vand.u32 %v547, 2147483648
    %v594 = vsel %vm592, %v593, %v591
    %v595 = vrsqrt.pop %v549
    %v596 = vmul.f32 %v549, %v595
    %vm597 = vcmp.eq.f32.partialorder %v549, inf
    %v598 = vsel %vm597, %v549, %v596
    %vm599 = vcmp.eq.f32.partialorder %v549, 0.0
    %v600 = vand.u32 %v549, 2147483648
    %v601 = vsel %vm599, %v600, %v598
    %v602 = vrsqrt.pop %v551
    %v603 = vmul.f32 %v551, %v602
    %vm604 = vcmp.eq.f32.partialorder %v551, inf
    %v605 = vsel %vm604, %v551, %v603
    %vm606 = vcmp.eq.f32.partialorder %v551, 0.0
    %v607 = vand.u32 %v551, 2147483648
    %v608 = vsel %vm606, %v607, %v605
    %v609 = vrsqrt.pop %v553
    %v610 = vmul.f32 %v553, %v609
    %vm611 = vcmp.eq.f32.partialorder %v553, inf
    %v612 = vsel %vm611, %v553, %v610
    %vm613 = vcmp.eq.f32.partialorder %v553, 0.0
    %v614 = vand.u32 %v553, 2147483648
    %v615 = vsel %vm613, %v614, %v612
    %v616 = vrsqrt.pop %v555
    %v617 = vmul.f32 %v555, %v616
    %vm618 = vcmp.eq.f32.partialorder %v555, inf
    %v619 = vsel %vm618, %v555, %v617
    %vm620 = vcmp.eq.f32.partialorder %v555, 0.0
    %v621 = vand.u32 %v555, 2147483648
    %v622 = vsel %vm620, %v621, %v619
    %v623 = vrsqrt.pop %v557
    %v624 = vmul.f32 %v557, %v623
    %vm625 = vcmp.eq.f32.partialorder %v557, inf
    %v626 = vsel %vm625, %v557, %v624
    %vm627 = vcmp.eq.f32.partialorder %v557, 0.0
    %v628 = vand.u32 %v557, 2147483648
    %v629 = vsel %vm627, %v628, %v626
    %v630 = vrsqrt.pop %v559
    %v631 = vmul.f32 %v559, %v630
    %vm632 = vcmp.eq.f32.partialorder %v559, inf
    %v633 = vsel %vm632, %v559, %v631
    %vm634 = vcmp.eq.f32.partialorder %v559, 0.0
    %v635 = vand.u32 %v559, 2147483648
    %v636 = vsel %vm634, %v635, %v633
    %v637 = vrsqrt.pop %v561
    %v638 = vmul.f32 %v561, %v637
    %vm639 = vcmp.eq.f32.partialorder %v561, inf
    %v640 = vsel %vm639, %v561, %v638
    %vm641 = vcmp.eq.f32.partialorder %v561, 0.0
    %v642 = vand.u32 %v561, 2147483648
    %v643 = vsel %vm641, %v642, %v640
    %v644 = vrsqrt.pop %v563
    %v645 = vmul.f32 %v563, %v644
    %vm646 = vcmp.eq.f32.partialorder %v563, inf
    %v647 = vsel %vm646, %v563, %v645
    %vm648 = vcmp.eq.f32.partialorder %v563, 0.0
    %v649 = vand.u32 %v563, 2147483648
    %v650 = vsel %vm648, %v649, %v647
    %v651 = vrsqrt.pop %v565
    %v652 = vmul.f32 %v565, %v651
    %vm653 = vcmp.eq.f32.partialorder %v565, inf
    %v654 = vsel %vm653, %v565, %v652
    %vm655 = vcmp.eq.f32.partialorder %v565, 0.0
    %v656 = vand.u32 %v565, 2147483648
    %v657 = vsel %vm655, %v656, %v654
    %v658 = vrsqrt.pop %v567
    %v659 = vmul.f32 %v567, %v658
    %vm660 = vcmp.eq.f32.partialorder %v567, inf
    %v661 = vsel %vm660, %v567, %v659
    %vm662 = vcmp.eq.f32.partialorder %v567, 0.0
    %v663 = vand.u32 %v567, 2147483648
    %v664 = vsel %vm662, %v663, %v661
    %v665 = vrsqrt.pop %v569
    %v666 = vmul.f32 %v569, %v665
    %vm667 = vcmp.eq.f32.partialorder %v569, inf
    %v668 = vsel %vm667, %v569, %v666
    %vm669 = vcmp.eq.f32.partialorder %v569, 0.0
    %v670 = vand.u32 %v569, 2147483648
    %v671 = vsel %vm669, %v670, %v668
    %v672 = vrsqrt.pop %v571
    %v673 = vmul.f32 %v571, %v672
    %vm674 = vcmp.eq.f32.partialorder %v571, inf
    %v675 = vsel %vm674, %v571, %v673
    %vm676 = vcmp.eq.f32.partialorder %v571, 0.0
    %v677 = vand.u32 %v571, 2147483648
    %v678 = vsel %vm676, %v677, %v675
    %v679 = vrsqrt.pop %v573
    %v680 = vmul.f32 %v573, %v679
    %vm681 = vcmp.eq.f32.partialorder %v573, inf
    %v682 = vsel %vm681, %v573, %v680
    %vm683 = vcmp.eq.f32.partialorder %v573, 0.0
    %v684 = vand.u32 %v573, 2147483648
    %v685 = vsel %vm683, %v684, %v682
    %v686 = vmax.f32 %v580, 0.0
    %v687 = vmax.f32 %v587, 0.0
    %v688 = vmax.f32 %v594, 0.0
    %v689 = vmax.f32 %v601, 0.0
    %v690 = vmax.f32 %v608, 0.0
    %v691 = vmax.f32 %v615, 0.0
    %v692 = vmax.f32 %v622, 0.0
    %v693 = vmax.f32 %v629, 0.0
    %v694 = vmax.f32 %v636, 0.0
    %v695 = vmax.f32 %v643, 0.0
    %v696 = vmax.f32 %v650, 0.0
    %v697 = vmax.f32 %v657, 0.0
    %v698 = vmax.f32 %v664, 0.0
    %v699 = vmax.f32 %v671, 0.0
    %v700 = vmax.f32 %v678, 0.0
    %v701 = vmax.f32 %v685, 0.0
    %v702 = vmin.f32 %v686, 0.99999
    %v703 = vmin.f32 %v687, 0.99999
    %v704 = vmin.f32 %v688, 0.99999
    %v705 = vmin.f32 %v689, 0.99999
    %v706 = vmin.f32 %v690, 0.99999
    %v707 = vmin.f32 %v691, 0.99999
    %v708 = vmin.f32 %v692, 0.99999
    %v709 = vmin.f32 %v693, 0.99999
    %v710 = vmin.f32 %v694, 0.99999
    %v711 = vmin.f32 %v695, 0.99999
    %v712 = vmin.f32 %v696, 0.99999
    %v713 = vmin.f32 %v697, 0.99999
    %v714 = vmin.f32 %v698, 0.99999
    %v715 = vmin.f32 %v699, 0.99999
    %v716 = vmin.f32 %v700, 0.99999
    %v717 = vmin.f32 %v701, 0.99999
    %v718 = vmax.f32 %v702, 0.0
    %v719 = vmax.f32 %v703, 0.0
    %v720 = vmax.f32 %v704, 0.0
    %v721 = vmax.f32 %v705, 0.0
    %v722 = vmax.f32 %v706, 0.0
    %v723 = vmax.f32 %v707, 0.0
    %v724 = vmax.f32 %v708, 0.0
    %v725 = vmax.f32 %v709, 0.0
    %v726 = vmax.f32 %v710, 0.0
    %v727 = vmax.f32 %v711, 0.0
    %v728 = vmax.f32 %v712, 0.0
    %v729 = vmax.f32 %v713, 0.0
    %v730 = vmax.f32 %v714, 0.0
    %v731 = vmax.f32 %v715, 0.0
    %v732 = vmax.f32 %v716, 0.0
    %v733 = vmax.f32 %v717, 0.0
    %v734 = vmin.f32 %v718, 0.99999
    %v735 = vmin.f32 %v719, 0.99999
    %v736 = vmin.f32 %v720, 0.99999
    %v737 = vmin.f32 %v721, 0.99999
    %v738 = vmin.f32 %v722, 0.99999
    %v739 = vmin.f32 %v723, 0.99999
    %v740 = vmin.f32 %v724, 0.99999
    %v741 = vmin.f32 %v725, 0.99999
    %v742 = vmin.f32 %v726, 0.99999
    %v743 = vmin.f32 %v727, 0.99999
    %v744 = vmin.f32 %v728, 0.99999
    %v745 = vmin.f32 %v729, 0.99999
    %v746 = vmin.f32 %v730, 0.99999
    %v747 = vmin.f32 %v731, 0.99999
    %v748 = vmin.f32 %v732, 0.99999
    %v749 = vmin.f32 %v733, 0.99999
    %v750 = vadd.f32 %v734, 1.0
    %v751 = vadd.f32 %v735, 1.0
    %v752 = vadd.f32 %v736, 1.0
    %v753 = vadd.f32 %v737, 1.0
    %v754 = vadd.f32 %v738, 1.0
    %v755 = vadd.f32 %v739, 1.0
    %v756 = vadd.f32 %v740, 1.0
    %v757 = vadd.f32 %v741, 1.0
    %v758 = vadd.f32 %v742, 1.0
    %v759 = vadd.f32 %v743, 1.0
    %v760 = vadd.f32 %v744, 1.0
    %v761 = vadd.f32 %v745, 1.0
    %v762 = vadd.f32 %v746, 1.0
    %v763 = vadd.f32 %v747, 1.0
    %v764 = vadd.f32 %v748, 1.0
    %v765 = vadd.f32 %v749, 1.0
    %v766 = vsub.f32 1.0, %v734
    %v767 = vsub.f32 1.0, %v735
    %v768 = vsub.f32 1.0, %v736
    %v769 = vsub.f32 1.0, %v737
    %v770 = vsub.f32 1.0, %v738
    %v771 = vsub.f32 1.0, %v739
    %v772 = vsub.f32 1.0, %v740
    %v773 = vsub.f32 1.0, %v741
    %v774 = vsub.f32 1.0, %v742
    %v775 = vsub.f32 1.0, %v743
    %v776 = vsub.f32 1.0, %v744
    %v777 = vsub.f32 1.0, %v745
    %v778 = vsub.f32 1.0, %v746
    %v779 = vsub.f32 1.0, %v747
    %v780 = vsub.f32 1.0, %v748
    %v781 = vsub.f32 1.0, %v749
    %v782 = vrcp.pop %v766
    %v783 = vrcp.pop %v767
    %v784 = vrcp.pop %v768
    %v785 = vrcp.pop %v769
    %v786 = vrcp.pop %v770
    %v787 = vrcp.pop %v771
    %v788 = vrcp.pop %v772
    %v789 = vrcp.pop %v773
    %v790 = vrcp.pop %v774
    %v791 = vrcp.pop %v775
    %v792 = vrcp.pop %v776
    %v793 = vrcp.pop %v777
    %v794 = vrcp.pop %v778
    %v795 = vrcp.pop %v779
    %v796 = vrcp.pop %v780
    %v797 = vrcp.pop %v781
    %v798 = vmul.f32 %v750, %v782
    %v799 = vmul.f32 %v751, %v783
    %v800 = vmul.f32 %v752, %v784
    %v801 = vmul.f32 %v753, %v785
    %v802 = vmul.f32 %v754, %v786
    %v803 = vmul.f32 %v755, %v787
    %v804 = vmul.f32 %v756, %v788
    %v805 = vmul.f32 %v757, %v789
    %v806 = vmul.f32 %v758, %v790
    %v807 = vmul.f32 %v759, %v791
    %v808 = vmul.f32 %v760, %v792
    %v809 = vmul.f32 %v761, %v793
    %v810 = vmul.f32 %v762, %v794
    %v811 = vmul.f32 %v763, %v795
    %v812 = vmul.f32 %v764, %v796
    %v813 = vmul.f32 %v765, %v797
    %v814 = vlog2.pop %v798
    %v815 = vmul.f32 %v814, 0.6931472
    %v816 = vlog2.pop %v799
    %v817 = vmul.f32 %v816, 0.6931472
    %v818 = vlog2.pop %v800
    %v819 = vmul.f32 %v818, 0.6931472
    %v820 = vlog2.pop %v801
    %v821 = vmul.f32 %v820, 0.6931472
    %v822 = vlog2.pop %v802
    %v823 = vmul.f32 %v822, 0.6931472
    %v824 = vlog2.pop %v803
    %v825 = vmul.f32 %v824, 0.6931472
    %v826 = vlog2.pop %v804
    %v827 = vmul.f32 %v826, 0.6931472
    %v828 = vlog2.pop %v805
    %v829 = vmul.f32 %v828, 0.6931472
    %v830 = vlog2.pop %v806
    %v831 = vmul.f32 %v830, 0.6931472
    %v832 = vlog2.pop %v807
    %v833 = vmul.f32 %v832, 0.6931472
    %v834 = vlog2.pop %v808
    %v835 = vmul.f32 %v834, 0.6931472
    %v836 = vlog2.pop %v809
    %v837 = vmul.f32 %v836, 0.6931472
    %v838 = vlog2.pop %v810
    %v839 = vmul.f32 %v838, 0.6931472
    %v840 = vlog2.pop %v811
    %v841 = vmul.f32 %v840, 0.6931472
    %v842 = vlog2.pop %v812
    %v843 = vmul.f32 %v842, 0.6931472
    %v844 = vlog2.pop %v813
    %v845 = vmul.f32 %v844, 0.6931472
    %v846 = vmul.f32 %v815, 0.5
    %v847 = vmul.f32 %v817, 0.5
    %v848 = vmul.f32 %v819, 0.5
    %v849 = vmul.f32 %v821, 0.5
    %v850 = vmul.f32 %v823, 0.5
    %v851 = vmul.f32 %v825, 0.5
    %v852 = vmul.f32 %v827, 0.5
    %v853 = vmul.f32 %v829, 0.5
    %v854 = vmul.f32 %v831, 0.5
    %v855 = vmul.f32 %v833, 0.5
    %v856 = vmul.f32 %v835, 0.5
    %v857 = vmul.f32 %v837, 0.5
    %v858 = vmul.f32 %v839, 0.5
    %v859 = vmul.f32 %v841, 0.5
    %v860 = vmul.f32 %v843, 0.5
    %v861 = vmul.f32 %v845, 0.5
    %v862 = vadd.f32 %v223, 1.0
    %v863 = vadd.f32 %v225, 1.0
    %v864 = vadd.f32 %v227, 1.0
    %v865 = vadd.f32 %v229, 1.0
    %v866 = vadd.f32 %v231, 1.0
    %v867 = vadd.f32 %v233, 1.0
    %v868 = vadd.f32 %v235, 1.0
    %v869 = vadd.f32 %v237, 1.0
    %v870 = vadd.f32 %v239, 1.0
    %v871 = vadd.f32 %v241, 1.0
    %v872 = vadd.f32 %v243, 1.0
    %v873 = vadd.f32 %v245, 1.0
    %v874 = vadd.f32 %v247, 1.0
    %v875 = vadd.f32 %v249, 1.0
    %v876 = vadd.f32 %v251, 1.0
    %v877 = vadd.f32 %v253, 1.0
    %v878 = vadd.f32 %v862, 1e-05
    %v879 = vadd.f32 %v863, 1e-05
    %v880 = vadd.f32 %v864, 1e-05
    %v881 = vadd.f32 %v865, 1e-05
    %v882 = vadd.f32 %v866, 1e-05
    %v883 = vadd.f32 %v867, 1e-05
    %v884 = vadd.f32 %v868, 1e-05
    %v885 = vadd.f32 %v869, 1e-05
    %v886 = vadd.f32 %v870, 1e-05
    %v887 = vadd.f32 %v871, 1e-05
    %v888 = vadd.f32 %v872, 1e-05
    %v889 = vadd.f32 %v873, 1e-05
    %v890 = vadd.f32 %v874, 1e-05
    %v891 = vadd.f32 %v875, 1e-05
    %v892 = vadd.f32 %v876, 1e-05
    %v893 = vadd.f32 %v877, 1e-05
    %v894 = vrcp.pop %v878
    %v895 = vrcp.pop %v879
    %v896 = vrcp.pop %v880
    %v897 = vrcp.pop %v881
    %v898 = vrcp.pop %v882
    %v899 = vrcp.pop %v883
    %v900 = vrcp.pop %v884
    %v901 = vrcp.pop %v885
    %v902 = vrcp.pop %v886
    %v903 = vrcp.pop %v887
    %v904 = vrcp.pop %v888
    %v905 = vrcp.pop %v889
    %v906 = vrcp.pop %v890
    %v907 = vrcp.pop %v891
    %v908 = vrcp.pop %v892
    %v909 = vrcp.pop %v893
    %v910 = vmul.f32 %v894, 2.0
    %v911 = vmul.f32 %v895, 2.0
    %v912 = vmul.f32 %v896, 2.0
    %v913 = vmul.f32 %v897, 2.0
    %v914 = vmul.f32 %v898, 2.0
    %v915 = vmul.f32 %v899, 2.0
    %v916 = vmul.f32 %v900, 2.0
    %v917 = vmul.f32 %v901, 2.0
    %v918 = vmul.f32 %v902, 2.0
    %v919 = vmul.f32 %v903, 2.0
    %v920 = vmul.f32 %v904, 2.0
    %v921 = vmul.f32 %v905, 2.0
    %v922 = vmul.f32 %v906, 2.0
    %v923 = vmul.f32 %v907, 2.0
    %v924 = vmul.f32 %v908, 2.0
    %v925 = vmul.f32 %v909, 2.0
    %v926 = vadd.f32 %v910, 1e-05
    %v927 = vadd.f32 %v911, 1e-05
    %v928 = vadd.f32 %v912, 1e-05
    %v929 = vadd.f32 %v913, 1e-05
    %v930 = vadd.f32 %v914, 1e-05
    %v931 = vadd.f32 %v915, 1e-05
    %v932 = vadd.f32 %v916, 1e-05
    %v933 = vadd.f32 %v917, 1e-05
    %v934 = vadd.f32 %v918, 1e-05
    %v935 = vadd.f32 %v919, 1e-05
    %v936 = vadd.f32 %v920, 1e-05
    %v937 = vadd.f32 %v921, 1e-05
    %v938 = vadd.f32 %v922, 1e-05
    %v939 = vadd.f32 %v923, 1e-05
    %v940 = vadd.f32 %v924, 1e-05
    %v941 = vadd.f32 %v925, 1e-05
    %v942 = vrcp.pop %v926
    %v943 = vrcp.pop %v927
    %v944 = vrcp.pop %v928
    %v945 = vrcp.pop %v929
    %v946 = vrcp.pop %v930
    %v947 = vrcp.pop %v931
    %v948 = vrcp.pop %v932
    %v949 = vrcp.pop %v933
    %v950 = vrcp.pop %v934
    %v951 = vrcp.pop %v935
    %v952 = vrcp.pop %v936
    %v953 = vrcp.pop %v937
    %v954 = vrcp.pop %v938
    %v955 = vrcp.pop %v939
    %v956 = vrcp.pop %v940
    %v957 = vrcp.pop %v941
    %v958 = vmul.f32 %v942, 2.0
    %v959 = vmul.f32 %v943, 2.0
    %v960 = vmul.f32 %v944, 2.0
    %v961 = vmul.f32 %v945, 2.0
    %v962 = vmul.f32 %v946, 2.0
    %v963 = vmul.f32 %v947, 2.0
    %v964 = vmul.f32 %v948, 2.0
    %v965 = vmul.f32 %v949, 2.0
    %v966 = vmul.f32 %v950, 2.0
    %v967 = vmul.f32 %v951, 2.0
    %v968 = vmul.f32 %v952, 2.0
    %v969 = vmul.f32 %v953, 2.0
    %v970 = vmul.f32 %v954, 2.0
    %v971 = vmul.f32 %v955, 2.0
    %v972 = vmul.f32 %v956, 2.0
    %v973 = vmul.f32 %v957, 2.0
    %v974 = vmul.f32 %v958, %v846
    %v975 = vmul.f32 %v959, %v847
    %v976 = vmul.f32 %v960, %v848
    %v977 = vmul.f32 %v961, %v849
    %v978 = vmul.f32 %v962, %v850
    %v979 = vmul.f32 %v963, %v851
    %v980 = vmul.f32 %v964, %v852
    %v981 = vmul.f32 %v965, %v853
    %v982 = vmul.f32 %v966, %v854
    %v983 = vmul.f32 %v967, %v855
    %v984 = vmul.f32 %v968, %v856
    %v985 = vmul.f32 %v969, %v857
    %v986 = vmul.f32 %v970, %v858
    %v987 = vmul.f32 %v971, %v859
    %v988 = vmul.f32 %v972, %v860
    %v989 = vmul.f32 %v973, %v861
    %v990 = vadd.f32 %v580, 1e-05
    %v991 = vadd.f32 %v587, 1e-05
    %v992 = vadd.f32 %v594, 1e-05
    %v993 = vadd.f32 %v601, 1e-05
    %v994 = vadd.f32 %v608, 1e-05
    %v995 = vadd.f32 %v615, 1e-05
    %v996 = vadd.f32 %v622, 1e-05
    %v997 = vadd.f32 %v629, 1e-05
    %v998 = vadd.f32 %v636, 1e-05
    %v999 = vadd.f32 %v643, 1e-05
    %v1000 = vadd.f32 %v650, 1e-05
    %v1001 = vadd.f32 %v657, 1e-05
    %v1002 = vadd.f32 %v664, 1e-05
    %v1003 = vadd.f32 %v671, 1e-05
    %v1004 = vadd.f32 %v678, 1e-05
    %v1005 = vadd.f32 %v685, 1e-05
    %v1006 = vrcp.pop %v990
    %v1007 = vrcp.pop %v991
    %v1008 = vrcp.pop %v992
    %v1009 = vrcp.pop %v993
    %v1010 = vrcp.pop %v994
    %v1011 = vrcp.pop %v995
    %v1012 = vrcp.pop %v996
    %v1013 = vrcp.pop %v997
    %v1014 = vrcp.pop %v998
    %v1015 = vrcp.pop %v999
    %v1016 = vrcp.pop %v1000
    %v1017 = vrcp.pop %v1001
    %v1018 = vrcp.pop %v1002
    %v1019 = vrcp.pop %v1003
    %v1020 = vrcp.pop %v1004
    %v1021 = vrcp.pop %v1005
    %v1022 = vmul.f32 %v974, %v1006
    %v1023 = vmul.f32 %v975, %v1007
    %v1024 = vmul.f32 %v976, %v1008
    %v1025 = vmul.f32 %v977, %v1009
    %v1026 = vmul.f32 %v978, %v1010
    %v1027 = vmul.f32 %v979, %v1011
    %v1028 = vmul.f32 %v980, %v1012
    %v1029 = vmul.f32 %v981, %v1013
    %v1030 = vmul.f32 %v982, %v1014
    %v1031 = vmul.f32 %v983, %v1015
    %v1032 = vmul.f32 %v984, %v1016
    %v1033 = vmul.f32 %v985, %v1017
    %v1034 = vmul.f32 %v986, %v1018
    %v1035 = vmul.f32 %v987, %v1019
    %v1036 = vmul.f32 %v988, %v1020
    %v1037 = vmul.f32 %v989, %v1021
    %v1038 = vmul.f32 %v510, %v1022
    %v1039 = vmul.f32 %v511, %v1023
    %v1040 = vmul.f32 %v512, %v1024
    %v1041 = vmul.f32 %v513, %v1025
    %v1042 = vmul.f32 %v514, %v1026
    %v1043 = vmul.f32 %v515, %v1027
    %v1044 = vmul.f32 %v516, %v1028
    %v1045 = vmul.f32 %v517, %v1029
    %v1046 = vmul.f32 %v518, %v1030
    %v1047 = vmul.f32 %v519, %v1031
    %v1048 = vmul.f32 %v520, %v1032
    %v1049 = vmul.f32 %v521, %v1033
    %v1050 = vmul.f32 %v522, %v1034
    %v1051 = vmul.f32 %v523, %v1035
    %v1052 = vmul.f32 %v524, %v1036
    %v1053 = vmul.f32 %v525, %v1037
    %v1054 = vpack.c.bf16 %v1039, %v1038
    %v1055 = vpack.c.bf16 %v1041, %v1040
    %v1056 = vpack.c.bf16 %v1043, %v1042
    %v1057 = vpack.c.bf16 %v1045, %v1044
    %v1058 = vpack.c.bf16 %v1047, %v1046
    %v1059 = vpack.c.bf16 %v1049, %v1048
    %v1060 = vpack.c.bf16 %v1051, %v1050
    %v1061 = vpack.c.bf16 %v1053, %v1052
    %v1062 = vld [vmem:[%s2] sm:$0xff]
    %v1063 = vld [vmem:[%s2 + $0x8] sm:$0xff]
    %v1064 = vld [vmem:[%s2 + $0x10] sm:$0xff]
    %v1065 = vld [vmem:[%s2 + $0x18] sm:$0xff]
    %v1066 = vld [vmem:[%s2 + $0x20] sm:$0xff]
    %v1067 = vld [vmem:[%s2 + $0x28] sm:$0xff]
    %v1068 = vld [vmem:[%s2 + $0x30] sm:$0xff]
    %v1069 = vld [vmem:[%s2 + $0x38] sm:$0xff]
    %v1070 = vld [vmem:[%s2 + $0x40] sm:$0xff]
    %v1071 = vld [vmem:[%s2 + $0x48] sm:$0xff]
    %v1072 = vld [vmem:[%s2 + $0x50] sm:$0xff]
    %v1073 = vld [vmem:[%s2 + $0x58] sm:$0xff]
    %v1074 = vld [vmem:[%s2 + $0x60] sm:$0xff]
    %v1075 = vld [vmem:[%s2 + $0x68] sm:$0xff]
    %v1076 = vld [vmem:[%s2 + $0x70] sm:$0xff]
    %v1077 = vld [vmem:[%s2 + $0x78] sm:$0xff]
    %v1078 = vld [vmem:[%s2 + $0x80] sm:$0xff]
    %v1079 = vld [vmem:[%s2 + $0x88] sm:$0xff]
    %v1080 = vld [vmem:[%s2 + $0x90] sm:$0xff]
    %v1081 = vld [vmem:[%s2 + $0x98] sm:$0xff]
    %v1082 = vld [vmem:[%s2 + $0xa0] sm:$0xff]
    %v1083 = vld [vmem:[%s2 + $0xa8] sm:$0xff]
    %v1084 = vld [vmem:[%s2 + $0xb0] sm:$0xff]
    %v1085 = vld [vmem:[%s2 + $0xb8] sm:$0xff]
    %v1086 = vld [vmem:[%s2 + $0xc0] sm:$0xff]
    %v1087 = vld [vmem:[%s2 + $0xc8] sm:$0xff]
    %v1088 = vld [vmem:[%s2 + $0xd0] sm:$0xff]
    %v1089 = vld [vmem:[%s2 + $0xd8] sm:$0xff]
    %v1090 = vld [vmem:[%s2 + $0xe0] sm:$0xff]
    %v1091 = vld [vmem:[%s2 + $0xe8] sm:$0xff]
    %v1092 = vld [vmem:[%s2 + $0xf0] sm:$0xff]
    %v1093 = vld [vmem:[%s2 + $0xf8] sm:$0xff]
    %v1094 = vld [vmem:[%s2 + $0x100] sm:$0xff]
    %v1095 = vld [vmem:[%s2 + $0x108] sm:$0xff]
    %v1096 = vld [vmem:[%s2 + $0x110] sm:$0xff]
    %v1097 = vld [vmem:[%s2 + $0x118] sm:$0xff]
    %v1098 = vld [vmem:[%s2 + $0x120] sm:$0xff]
    %v1099 = vld [vmem:[%s2 + $0x128] sm:$0xff]
    %v1100 = vld [vmem:[%s2 + $0x130] sm:$0xff]
    %v1101 = vld [vmem:[%s2 + $0x138] sm:$0xff]
    %v1102 = vld [vmem:[%s2 + $0x140] sm:$0xff]
    %v1103 = vld [vmem:[%s2 + $0x148] sm:$0xff]
    %v1104 = vld [vmem:[%s2 + $0x150] sm:$0xff]
    %v1105 = vld [vmem:[%s2 + $0x158] sm:$0xff]
    %v1106 = vld [vmem:[%s2 + $0x160] sm:$0xff]
    %v1107 = vld [vmem:[%s2 + $0x168] sm:$0xff]
    %v1108 = vld [vmem:[%s2 + $0x170] sm:$0xff]
    %v1109 = vld [vmem:[%s2 + $0x178] sm:$0xff]
    %v1158 = vunpack.c.l.b16 %v1062
    %v1159 = vunpack.c.h.b16 %v1062
    %v1160 = vunpack.c.l.b16 %v1063
    %v1161 = vunpack.c.h.b16 %v1063
    %v1162 = vunpack.c.l.b16 %v1064
    %v1163 = vunpack.c.h.b16 %v1064
    %v1164 = vunpack.c.l.b16 %v1065
    %v1165 = vunpack.c.h.b16 %v1065
    %v1166 = vunpack.c.l.b16 %v1066
    %v1167 = vunpack.c.h.b16 %v1066
    %v1168 = vunpack.c.l.b16 %v1067
    %v1169 = vunpack.c.h.b16 %v1067
    %v1170 = vunpack.c.l.b16 %v1068
    %v1171 = vunpack.c.h.b16 %v1068
    %v1172 = vunpack.c.l.b16 %v1069
    %v1173 = vunpack.c.h.b16 %v1069
    %v1174 = vunpack.c.l.b16 %v1070
    %v1175 = vunpack.c.h.b16 %v1070
    %v1176 = vunpack.c.l.b16 %v1071
    %v1177 = vunpack.c.h.b16 %v1071
    %v1178 = vunpack.c.l.b16 %v1072
    %v1179 = vunpack.c.h.b16 %v1072
    %v1180 = vunpack.c.l.b16 %v1073
    %v1181 = vunpack.c.h.b16 %v1073
    %v1182 = vunpack.c.l.b16 %v1074
    %v1183 = vunpack.c.h.b16 %v1074
    %v1184 = vunpack.c.l.b16 %v1075
    %v1185 = vunpack.c.h.b16 %v1075
    %v1186 = vunpack.c.l.b16 %v1076
    %v1187 = vunpack.c.h.b16 %v1076
    %v1188 = vunpack.c.l.b16 %v1077
    %v1189 = vunpack.c.h.b16 %v1077
    %v1190 = vunpack.c.l.b16 %v1078
    %v1191 = vunpack.c.h.b16 %v1078
    %v1192 = vunpack.c.l.b16 %v1079
    %v1193 = vunpack.c.h.b16 %v1079
    %v1194 = vunpack.c.l.b16 %v1080
    %v1195 = vunpack.c.h.b16 %v1080
    %v1196 = vunpack.c.l.b16 %v1081
    %v1197 = vunpack.c.h.b16 %v1081
    %v1198 = vunpack.c.l.b16 %v1082
    %v1199 = vunpack.c.h.b16 %v1082
    %v1200 = vunpack.c.l.b16 %v1083
    %v1201 = vunpack.c.h.b16 %v1083
    %v1202 = vunpack.c.l.b16 %v1084
    %v1203 = vunpack.c.h.b16 %v1084
    %v1204 = vunpack.c.l.b16 %v1085
    %v1205 = vunpack.c.h.b16 %v1085
    %v1206 = vunpack.c.l.b16 %v1086
    %v1207 = vunpack.c.h.b16 %v1086
    %v1208 = vunpack.c.l.b16 %v1087
    %v1209 = vunpack.c.h.b16 %v1087
    %v1210 = vunpack.c.l.b16 %v1088
    %v1211 = vunpack.c.h.b16 %v1088
    %v1212 = vunpack.c.l.b16 %v1089
    %v1213 = vunpack.c.h.b16 %v1089
    %v1214 = vunpack.c.l.b16 %v1090
    %v1215 = vunpack.c.h.b16 %v1090
    %v1216 = vunpack.c.l.b16 %v1091
    %v1217 = vunpack.c.h.b16 %v1091
    %v1218 = vunpack.c.l.b16 %v1092
    %v1219 = vunpack.c.h.b16 %v1092
    %v1220 = vunpack.c.l.b16 %v1093
    %v1221 = vunpack.c.h.b16 %v1093
    %v1222 = vunpack.c.l.b16 %v1094
    %v1223 = vunpack.c.h.b16 %v1094
    %v1224 = vunpack.c.l.b16 %v1095
    %v1225 = vunpack.c.h.b16 %v1095
    %v1226 = vunpack.c.l.b16 %v1096
    %v1227 = vunpack.c.h.b16 %v1096
    %v1228 = vunpack.c.l.b16 %v1097
    %v1229 = vunpack.c.h.b16 %v1097
    %v1230 = vunpack.c.l.b16 %v1098
    %v1231 = vunpack.c.h.b16 %v1098
    %v1232 = vunpack.c.l.b16 %v1099
    %v1233 = vunpack.c.h.b16 %v1099
    %v1234 = vunpack.c.l.b16 %v1100
    %v1235 = vunpack.c.h.b16 %v1100
    %v1236 = vunpack.c.l.b16 %v1101
    %v1237 = vunpack.c.h.b16 %v1101
    %v1238 = vunpack.c.l.b16 %v1102
    %v1239 = vunpack.c.h.b16 %v1102
    %v1240 = vunpack.c.l.b16 %v1103
    %v1241 = vunpack.c.h.b16 %v1103
    %v1242 = vunpack.c.l.b16 %v1104
    %v1243 = vunpack.c.h.b16 %v1104
    %v1244 = vunpack.c.l.b16 %v1105
    %v1245 = vunpack.c.h.b16 %v1105
    %v1246 = vunpack.c.l.b16 %v1106
    %v1247 = vunpack.c.h.b16 %v1106
    %v1248 = vunpack.c.l.b16 %v1107
    %v1249 = vunpack.c.h.b16 %v1107
    %v1250 = vunpack.c.l.b16 %v1108
    %v1251 = vunpack.c.h.b16 %v1108
    %v1252 = vunpack.c.l.b16 %v1109
    %v1253 = vunpack.c.h.b16 %v1109
    %v1254 = vpack.c.b16 %v1164, %v1158
    %v1255 = vpack.c.b16 %v1165, %v1159
    %v1256 = vpack.c.b16 %v1166, %v1160
    %v1257 = vpack.c.b16 %v1167, %v1161
    %v1258 = vpack.c.b16 %v1168, %v1162
    %v1259 = vpack.c.b16 %v1169, %v1163
    %v1260 = vpack.c.b16 %v1176, %v1170
    %v1261 = vpack.c.b16 %v1177, %v1171
    %v1262 = vpack.c.b16 %v1178, %v1172
    %v1263 = vpack.c.b16 %v1179, %v1173
    %v1264 = vpack.c.b16 %v1180, %v1174
    %v1265 = vpack.c.b16 %v1181, %v1175
    %v1266 = vpack.c.b16 %v1188, %v1182
    %v1267 = vpack.c.b16 %v1189, %v1183
    %v1268 = vpack.c.b16 %v1190, %v1184
    %v1269 = vpack.c.b16 %v1191, %v1185
    %v1270 = vpack.c.b16 %v1192, %v1186
    %v1271 = vpack.c.b16 %v1193, %v1187
    %v1272 = vpack.c.b16 %v1200, %v1194
    %v1273 = vpack.c.b16 %v1201, %v1195
    %v1274 = vpack.c.b16 %v1202, %v1196
    %v1275 = vpack.c.b16 %v1203, %v1197
    %v1276 = vpack.c.b16 %v1204, %v1198
    %v1277 = vpack.c.b16 %v1205, %v1199
    %v1278 = vpack.c.b16 %v1212, %v1206
    %v1279 = vpack.c.b16 %v1213, %v1207
    %v1280 = vpack.c.b16 %v1214, %v1208
    %v1281 = vpack.c.b16 %v1215, %v1209
    %v1282 = vpack.c.b16 %v1216, %v1210
    %v1283 = vpack.c.b16 %v1217, %v1211
    %v1284 = vpack.c.b16 %v1224, %v1218
    %v1285 = vpack.c.b16 %v1225, %v1219
    %v1286 = vpack.c.b16 %v1226, %v1220
    %v1287 = vpack.c.b16 %v1227, %v1221
    %v1288 = vpack.c.b16 %v1228, %v1222
    %v1289 = vpack.c.b16 %v1229, %v1223
    %v1290 = vpack.c.b16 %v1236, %v1230
    %v1291 = vpack.c.b16 %v1237, %v1231
    %v1292 = vpack.c.b16 %v1238, %v1232
    %v1293 = vpack.c.b16 %v1239, %v1233
    %v1294 = vpack.c.b16 %v1240, %v1234
    %v1295 = vpack.c.b16 %v1241, %v1235
    %v1296 = vpack.c.b16 %v1248, %v1242
    %v1297 = vpack.c.b16 %v1249, %v1243
    %v1298 = vpack.c.b16 %v1250, %v1244
    %v1299 = vpack.c.b16 %v1251, %v1245
    %v1300 = vpack.c.b16 %v1252, %v1246
    %v1301 = vpack.c.b16 %v1253, %v1247
    %1350 = vmatprep.subr.bf16.mxu0 %v1297
    %1351 = vmatpush1.bf16.msra.mxu0 %v1296
    %1352 = vmatprep.subr.bf16.mxu0 %v1291
    %1353 = vmatpush1.bf16.msra.mxu0 %v1290
    %1354 = vmatprep.subr.bf16.mxu0 %v1285
    %1355 = vmatpush1.bf16.msra.mxu0 %v1284
    %1356 = vmatprep.subr.bf16.mxu0 %v1279
    %1357 = vmatpush1.bf16.msra.mxu0 %v1278
    %1358 = vmatprep.subr.bf16.mxu0 %v1273
    %1359 = vmatpush1.bf16.msra.mxu0 %v1272
    %1360 = vmatprep.subr.bf16.mxu0 %v1267
    %1361 = vmatpush1.bf16.msra.mxu0 %v1266
    %1362 = vmatprep.subr.bf16.mxu0 %v1261
    %1363 = vmatpush1.bf16.msra.mxu0 %v1260
    %1364 = vmatprep.subr.bf16.mxu0 %v1255
    %1365 = vmatpush1.bf16.msra.mxu0 %v1254
    %1366 = vmatprep.subr.bf16.mxu0 0
    %1367 = vmatpush2.bf16.msra.mxu0 0
    %1368 = vmatprep.subr.bf16.mxu0 0
    %1369 = vmatpush2.bf16.msra.mxu0 0
    %1370 = vmatprep.subr.bf16.mxu0 0
    %1371 = vmatpush2.bf16.msra.mxu0 0
    %1372 = vmatprep.subr.bf16.mxu0 0
    %1373 = vmatpush2.bf16.msra.mxu0 0
    %1374 = vmatprep.subr.bf16.mxu0 0
    %1375 = vmatpush2.bf16.msra.mxu0 0
    %1376 = vmatprep.subr.bf16.mxu0 0
    %1377 = vmatpush2.bf16.msra.mxu0 0
    %1378 = vmatprep.subr.bf16.mxu0 0
    %1379 = vmatpush2.bf16.msra.mxu0 0
    %1380 = vmatprep.subr.bf16.mxu0 0
    %1381 = vmatpush2.bf16.msra.mxu0 0
    %1382 = vmatprep.mubr.bf16.mxu0 0
    %1383 = vmatmul.mubr.bf16.gmra.mxu0 %v1054
    %v1384 = vpop.f32.mrf.mxu0
    %v1385 = vadd.f32 0.0, %v1384
    %v1386 = vpop.f32.mrf.mxu0
    %v1387 = vadd.f32 0.0, %v1386
    %v1388 = vpop.f32.mrf.mxu0
    %v1389 = vadd.f32 0.0, %v1388
    %v1390 = vpop.f32.mrf.mxu0
    %v1391 = vadd.f32 0.0, %v1390
    %1392 = vmatprep.mubr.bf16.mxu0 0
    %1393 = vmatmul.mubr.bf16.gmra.mxu0 %v1055
    %v1394 = vpop.f32.mrf.mxu0
    %v1395 = vadd.f32 0.0, %v1394
    %v1396 = vpop.f32.mrf.mxu0
    %v1397 = vadd.f32 0.0, %v1396
    %v1398 = vpop.f32.mrf.mxu0
    %v1399 = vadd.f32 0.0, %v1398
    %v1400 = vpop.f32.mrf.mxu0
    %v1401 = vadd.f32 0.0, %v1400
    %1402 = vmatprep.mubr.bf16.mxu0 0
    %1403 = vmatmul.mubr.bf16.gmra.mxu0 %v1056
    %v1404 = vpop.f32.mrf.mxu0
    %v1405 = vadd.f32 0.0, %v1404
    %v1406 = vpop.f32.mrf.mxu0
    %v1407 = vadd.f32 0.0, %v1406
    %v1408 = vpop.f32.mrf.mxu0
    %v1409 = vadd.f32 0.0, %v1408
    %v1410 = vpop.f32.mrf.mxu0
    %v1411 = vadd.f32 0.0, %v1410
    %1412 = vmatprep.mubr.bf16.mxu0 0
    %1413 = vmatmul.mubr.bf16.gmra.mxu0 %v1057
    %v1414 = vpop.f32.mrf.mxu0
    %v1415 = vadd.f32 0.0, %v1414
    %v1416 = vpop.f32.mrf.mxu0
    %v1417 = vadd.f32 0.0, %v1416
    %v1418 = vpop.f32.mrf.mxu0
    %v1419 = vadd.f32 0.0, %v1418
    %v1420 = vpop.f32.mrf.mxu0
    %v1421 = vadd.f32 0.0, %v1420
    %1422 = vmatprep.mubr.bf16.mxu0 0
    %1423 = vmatmul.mubr.bf16.gmra.mxu0 %v1058
    %v1424 = vpop.f32.mrf.mxu0
    %v1425 = vadd.f32 0.0, %v1424
    %v1426 = vpop.f32.mrf.mxu0
    %v1427 = vadd.f32 0.0, %v1426
    %v1428 = vpop.f32.mrf.mxu0
    %v1429 = vadd.f32 0.0, %v1428
    %v1430 = vpop.f32.mrf.mxu0
    %v1431 = vadd.f32 0.0, %v1430
    %1432 = vmatprep.mubr.bf16.mxu0 0
    %1433 = vmatmul.mubr.bf16.gmra.mxu0 %v1059
    %v1434 = vpop.f32.mrf.mxu0
    %v1435 = vadd.f32 0.0, %v1434
    %v1436 = vpop.f32.mrf.mxu0
    %v1437 = vadd.f32 0.0, %v1436
    %v1438 = vpop.f32.mrf.mxu0
    %v1439 = vadd.f32 0.0, %v1438
    %v1440 = vpop.f32.mrf.mxu0
    %v1441 = vadd.f32 0.0, %v1440
    %1442 = vmatprep.mubr.bf16.mxu0 0
    %1443 = vmatmul.mubr.bf16.gmra.mxu0 %v1060
    %v1444 = vpop.f32.mrf.mxu0
    %v1445 = vadd.f32 0.0, %v1444
    %v1446 = vpop.f32.mrf.mxu0
    %v1447 = vadd.f32 0.0, %v1446
    %v1448 = vpop.f32.mrf.mxu0
    %v1449 = vadd.f32 0.0, %v1448
    %v1450 = vpop.f32.mrf.mxu0
    %v1451 = vadd.f32 0.0, %v1450
    %1452 = vmatprep.mubr.bf16.mxu0 0
    %1453 = vmatmul.mubr.bf16.gmra.mxu0 %v1061
    %v1454 = vpop.f32.mrf.mxu0
    %v1455 = vadd.f32 0.0, %v1454
    %v1456 = vpop.f32.mrf.mxu0
    %v1457 = vadd.f32 0.0, %v1456
    %v1458 = vpop.f32.mrf.mxu0
    %v1459 = vadd.f32 0.0, %v1458
    %v1460 = vpop.f32.mrf.mxu0
    %v1461 = vadd.f32 0.0, %v1460
    %1462 = vdwg.mxu0
    %1463 = vmatprep.subr.bf16.mxu0 %v1299
    %1464 = vmatpush1.bf16.msra.mxu0 %v1298
    %1465 = vmatprep.subr.bf16.mxu0 %v1293
    %1466 = vmatpush1.bf16.msra.mxu0 %v1292
    %1467 = vmatprep.subr.bf16.mxu0 %v1287
    %1468 = vmatpush1.bf16.msra.mxu0 %v1286
    %1469 = vmatprep.subr.bf16.mxu0 %v1281
    %1470 = vmatpush1.bf16.msra.mxu0 %v1280
    %1471 = vmatprep.subr.bf16.mxu0 %v1275
    %1472 = vmatpush1.bf16.msra.mxu0 %v1274
    %1473 = vmatprep.subr.bf16.mxu0 %v1269
    %1474 = vmatpush1.bf16.msra.mxu0 %v1268
    %1475 = vmatprep.subr.bf16.mxu0 %v1263
    %1476 = vmatpush1.bf16.msra.mxu0 %v1262
    %1477 = vmatprep.subr.bf16.mxu0 %v1257
    %1478 = vmatpush1.bf16.msra.mxu0 %v1256
    %1479 = vmatprep.subr.bf16.mxu0 0
    %1480 = vmatpush2.bf16.msra.mxu0 0
    %1481 = vmatprep.subr.bf16.mxu0 0
    %1482 = vmatpush2.bf16.msra.mxu0 0
    %1483 = vmatprep.subr.bf16.mxu0 0
    %1484 = vmatpush2.bf16.msra.mxu0 0
    %1485 = vmatprep.subr.bf16.mxu0 0
    %1486 = vmatpush2.bf16.msra.mxu0 0
    %1487 = vmatprep.subr.bf16.mxu0 0
    %1488 = vmatpush2.bf16.msra.mxu0 0
    %1489 = vmatprep.subr.bf16.mxu0 0
    %1490 = vmatpush2.bf16.msra.mxu0 0
    %1491 = vmatprep.subr.bf16.mxu0 0
    %1492 = vmatpush2.bf16.msra.mxu0 0
    %1493 = vmatprep.subr.bf16.mxu0 0
    %1494 = vmatpush2.bf16.msra.mxu0 0
    %1495 = vmatprep.mubr.bf16.mxu0 0
    %1496 = vmatmul.mubr.bf16.gmra.mxu0 %v1054
    %v1497 = vpop.f32.mrf.mxu0
    %v1498 = vadd.f32 0.0, %v1497
    %v1499 = vpop.f32.mrf.mxu0
    %v1500 = vadd.f32 0.0, %v1499
    %v1501 = vpop.f32.mrf.mxu0
    %v1502 = vadd.f32 0.0, %v1501
    %v1503 = vpop.f32.mrf.mxu0
    %v1504 = vadd.f32 0.0, %v1503
    %1505 = vmatprep.mubr.bf16.mxu0 0
    %1506 = vmatmul.mubr.bf16.gmra.mxu0 %v1055
    %v1507 = vpop.f32.mrf.mxu0
    %v1508 = vadd.f32 0.0, %v1507
    %v1509 = vpop.f32.mrf.mxu0
    %v1510 = vadd.f32 0.0, %v1509
    %v1511 = vpop.f32.mrf.mxu0
    %v1512 = vadd.f32 0.0, %v1511
    %v1513 = vpop.f32.mrf.mxu0
    %v1514 = vadd.f32 0.0, %v1513
    %1515 = vmatprep.mubr.bf16.mxu0 0
    %1516 = vmatmul.mubr.bf16.gmra.mxu0 %v1056
    %v1517 = vpop.f32.mrf.mxu0
    %v1518 = vadd.f32 0.0, %v1517
    %v1519 = vpop.f32.mrf.mxu0
    %v1520 = vadd.f32 0.0, %v1519
    %v1521 = vpop.f32.mrf.mxu0
    %v1522 = vadd.f32 0.0, %v1521
    %v1523 = vpop.f32.mrf.mxu0
    %v1524 = vadd.f32 0.0, %v1523
    %1525 = vmatprep.mubr.bf16.mxu0 0
    %1526 = vmatmul.mubr.bf16.gmra.mxu0 %v1057
    %v1527 = vpop.f32.mrf.mxu0
    %v1528 = vadd.f32 0.0, %v1527
    %v1529 = vpop.f32.mrf.mxu0
    %v1530 = vadd.f32 0.0, %v1529
    %v1531 = vpop.f32.mrf.mxu0
    %v1532 = vadd.f32 0.0, %v1531
    %v1533 = vpop.f32.mrf.mxu0
    %v1534 = vadd.f32 0.0, %v1533
    %1535 = vmatprep.mubr.bf16.mxu0 0
    %1536 = vmatmul.mubr.bf16.gmra.mxu0 %v1058
    %v1537 = vpop.f32.mrf.mxu0
    %v1538 = vadd.f32 0.0, %v1537
    %v1539 = vpop.f32.mrf.mxu0
    %v1540 = vadd.f32 0.0, %v1539
    %v1541 = vpop.f32.mrf.mxu0
    %v1542 = vadd.f32 0.0, %v1541
    %v1543 = vpop.f32.mrf.mxu0
    %v1544 = vadd.f32 0.0, %v1543
    %1545 = vmatprep.mubr.bf16.mxu0 0
    %1546 = vmatmul.mubr.bf16.gmra.mxu0 %v1059
    %v1547 = vpop.f32.mrf.mxu0
    %v1548 = vadd.f32 0.0, %v1547
    %v1549 = vpop.f32.mrf.mxu0
    %v1550 = vadd.f32 0.0, %v1549
    %v1551 = vpop.f32.mrf.mxu0
    %v1552 = vadd.f32 0.0, %v1551
    %v1553 = vpop.f32.mrf.mxu0
    %v1554 = vadd.f32 0.0, %v1553
    %1555 = vmatprep.mubr.bf16.mxu0 0
    %1556 = vmatmul.mubr.bf16.gmra.mxu0 %v1060
    %v1557 = vpop.f32.mrf.mxu0
    %v1558 = vadd.f32 0.0, %v1557
    %v1559 = vpop.f32.mrf.mxu0
    %v1560 = vadd.f32 0.0, %v1559
    %v1561 = vpop.f32.mrf.mxu0
    %v1562 = vadd.f32 0.0, %v1561
    %v1563 = vpop.f32.mrf.mxu0
    %v1564 = vadd.f32 0.0, %v1563
    %1565 = vmatprep.mubr.bf16.mxu0 0
    %1566 = vmatmul.mubr.bf16.gmra.mxu0 %v1061
    %v1567 = vpop.f32.mrf.mxu0
    %v1568 = vadd.f32 0.0, %v1567
    %v1569 = vpop.f32.mrf.mxu0
    %v1570 = vadd.f32 0.0, %v1569
    %v1571 = vpop.f32.mrf.mxu0
    %v1572 = vadd.f32 0.0, %v1571
    %v1573 = vpop.f32.mrf.mxu0
    %v1574 = vadd.f32 0.0, %v1573
    %1575 = vdwg.mxu0
    %1576 = vmatprep.subr.bf16.mxu0 %v1301
    %1577 = vmatpush1.bf16.msra.mxu0 %v1300
    %1578 = vmatprep.subr.bf16.mxu0 %v1295
    %1579 = vmatpush1.bf16.msra.mxu0 %v1294
    %1580 = vmatprep.subr.bf16.mxu0 %v1289
    %1581 = vmatpush1.bf16.msra.mxu0 %v1288
    %1582 = vmatprep.subr.bf16.mxu0 %v1283
    %1583 = vmatpush1.bf16.msra.mxu0 %v1282
    %1584 = vmatprep.subr.bf16.mxu0 %v1277
    %1585 = vmatpush1.bf16.msra.mxu0 %v1276
    %1586 = vmatprep.subr.bf16.mxu0 %v1271
    %1587 = vmatpush1.bf16.msra.mxu0 %v1270
    %1588 = vmatprep.subr.bf16.mxu0 %v1265
    %1589 = vmatpush1.bf16.msra.mxu0 %v1264
    %1590 = vmatprep.subr.bf16.mxu0 %v1259
    %1591 = vmatpush1.bf16.msra.mxu0 %v1258
    %1592 = vmatprep.subr.bf16.mxu0 0
    %1593 = vmatpush2.bf16.msra.mxu0 0
    %1594 = vmatprep.subr.bf16.mxu0 0
    %1595 = vmatpush2.bf16.msra.mxu0 0
    %1596 = vmatprep.subr.bf16.mxu0 0
    %1597 = vmatpush2.bf16.msra.mxu0 0
    %1598 = vmatprep.subr.bf16.mxu0 0
    %1599 = vmatpush2.bf16.msra.mxu0 0
    %1600 = vmatprep.subr.bf16.mxu0 0
    %1601 = vmatpush2.bf16.msra.mxu0 0
    %1602 = vmatprep.subr.bf16.mxu0 0
    %1603 = vmatpush2.bf16.msra.mxu0 0
    %1604 = vmatprep.subr.bf16.mxu0 0
    %1605 = vmatpush2.bf16.msra.mxu0 0
    %1606 = vmatprep.subr.bf16.mxu0 0
    %1607 = vmatpush2.bf16.msra.mxu0 0
    %1608 = vmatprep.mubr.bf16.mxu0 0
    %1609 = vmatmul.mubr.bf16.gmra.mxu0 %v1054
    %v1610 = vpop.f32.mrf.mxu0
    %v1611 = vadd.f32 0.0, %v1610
    %v1612 = vpop.f32.mrf.mxu0
    %v1613 = vadd.f32 0.0, %v1612
    %v1614 = vpop.f32.mrf.mxu0
    %v1615 = vadd.f32 0.0, %v1614
    %v1616 = vpop.f32.mrf.mxu0
    %v1617 = vadd.f32 0.0, %v1616
    %1618 = vmatprep.mubr.bf16.mxu0 0
    %1619 = vmatmul.mubr.bf16.gmra.mxu0 %v1055
    %v1620 = vpop.f32.mrf.mxu0
    %v1621 = vadd.f32 0.0, %v1620
    %v1622 = vpop.f32.mrf.mxu0
    %v1623 = vadd.f32 0.0, %v1622
    %v1624 = vpop.f32.mrf.mxu0
    %v1625 = vadd.f32 0.0, %v1624
    %v1626 = vpop.f32.mrf.mxu0
    %v1627 = vadd.f32 0.0, %v1626
    %1628 = vmatprep.mubr.bf16.mxu0 0
    %1629 = vmatmul.mubr.bf16.gmra.mxu0 %v1056
    %v1630 = vpop.f32.mrf.mxu0
    %v1631 = vadd.f32 0.0, %v1630
    %v1632 = vpop.f32.mrf.mxu0
    %v1633 = vadd.f32 0.0, %v1632
    %v1634 = vpop.f32.mrf.mxu0
    %v1635 = vadd.f32 0.0, %v1634
    %v1636 = vpop.f32.mrf.mxu0
    %v1637 = vadd.f32 0.0, %v1636
    %1638 = vmatprep.mubr.bf16.mxu0 0
    %1639 = vmatmul.mubr.bf16.gmra.mxu0 %v1057
    %v1640 = vpop.f32.mrf.mxu0
    %v1641 = vadd.f32 0.0, %v1640
    %v1642 = vpop.f32.mrf.mxu0
    %v1643 = vadd.f32 0.0, %v1642
    %v1644 = vpop.f32.mrf.mxu0
    %v1645 = vadd.f32 0.0, %v1644
    %v1646 = vpop.f32.mrf.mxu0
    %v1647 = vadd.f32 0.0, %v1646
    %1648 = vmatprep.mubr.bf16.mxu0 0
    %1649 = vmatmul.mubr.bf16.gmra.mxu0 %v1058
    %v1650 = vpop.f32.mrf.mxu0
    %v1651 = vadd.f32 0.0, %v1650
    %v1652 = vpop.f32.mrf.mxu0
    %v1653 = vadd.f32 0.0, %v1652
    %v1654 = vpop.f32.mrf.mxu0
    %v1655 = vadd.f32 0.0, %v1654
    %v1656 = vpop.f32.mrf.mxu0
    %v1657 = vadd.f32 0.0, %v1656
    %1658 = vmatprep.mubr.bf16.mxu0 0
    %1659 = vmatmul.mubr.bf16.gmra.mxu0 %v1059
    %v1660 = vpop.f32.mrf.mxu0
    %v1661 = vadd.f32 0.0, %v1660
    %v1662 = vpop.f32.mrf.mxu0
    %v1663 = vadd.f32 0.0, %v1662
    %v1664 = vpop.f32.mrf.mxu0
    %v1665 = vadd.f32 0.0, %v1664
    %v1666 = vpop.f32.mrf.mxu0
    %v1667 = vadd.f32 0.0, %v1666
    %1668 = vmatprep.mubr.bf16.mxu0 0
    %1669 = vmatmul.mubr.bf16.gmra.mxu0 %v1060
    %v1670 = vpop.f32.mrf.mxu0
    %v1671 = vadd.f32 0.0, %v1670
    %v1672 = vpop.f32.mrf.mxu0
    %v1673 = vadd.f32 0.0, %v1672
    %v1674 = vpop.f32.mrf.mxu0
    %v1675 = vadd.f32 0.0, %v1674
    %v1676 = vpop.f32.mrf.mxu0
    %v1677 = vadd.f32 0.0, %v1676
    %1678 = vmatprep.mubr.bf16.mxu0 0
    %1679 = vmatmul.mubr.bf16.gmra.mxu0 %v1061
    %v1680 = vpop.f32.mrf.mxu0
    %v1681 = vadd.f32 0.0, %v1680
    %v1682 = vpop.f32.mrf.mxu0
    %v1683 = vadd.f32 0.0, %v1682
    %v1684 = vpop.f32.mrf.mxu0
    %v1685 = vadd.f32 0.0, %v1684
    %v1686 = vpop.f32.mrf.mxu0
    %v1687 = vadd.f32 0.0, %v1686
    %1688 = vdwg.mxu0
    %v1689 = vld [vmem:[%s5] sm:$0xff]
    %v1690 = vld [vmem:[%s5 + $0x8] sm:$0xff]
    %v1691 = vld [vmem:[%s5 + $0x10] sm:$0xff]
    %v1692 = vld [vmem:[%s5 + $0x18] sm:$0xff]
    %v1693 = vld [vmem:[%s5 + $0x20] sm:$0xff]
    %v1694 = vld [vmem:[%s5 + $0x28] sm:$0xff]
    %v1695 = vld [vmem:[%s5 + $0x30] sm:$0xff]
    %v1696 = vld [vmem:[%s5 + $0x38] sm:$0xff]
    %v1697 = vld [vmem:[%s5 + $0x40] sm:$0xff]
    %v1698 = vld [vmem:[%s5 + $0x48] sm:$0xff]
    %v1699 = vld [vmem:[%s5 + $0x50] sm:$0xff]
    %v1700 = vld [vmem:[%s5 + $0x58] sm:$0xff]
    %v1701 = vld [vmem:[%s5 + $0x60] sm:$0xff]
    %v1702 = vld [vmem:[%s5 + $0x68] sm:$0xff]
    %v1703 = vld [vmem:[%s5 + $0x70] sm:$0xff]
    %v1704 = vld [vmem:[%s5 + $0x78] sm:$0xff]
    %v1705 = vld [vmem:[%s6] sm:$0xff]
    %v1706 = vld [vmem:[%s6 + $0x8] sm:$0xff]
    %v1707 = vld [vmem:[%s6 + $0x10] sm:$0xff]
    %v1708 = vld [vmem:[%s6 + $0x18] sm:$0xff]
    %v1709 = vld [vmem:[%s6 + $0x20] sm:$0xff]
    %v1710 = vld [vmem:[%s6 + $0x28] sm:$0xff]
    %v1711 = vld [vmem:[%s6 + $0x30] sm:$0xff]
    %v1712 = vld [vmem:[%s6 + $0x38] sm:$0xff]
    %v1713 = vld [vmem:[%s6 + $0x40] sm:$0xff]
    %v1714 = vld [vmem:[%s6 + $0x48] sm:$0xff]
    %v1715 = vld [vmem:[%s6 + $0x50] sm:$0xff]
    %v1716 = vld [vmem:[%s6 + $0x58] sm:$0xff]
    %v1717 = vld [vmem:[%s6 + $0x60] sm:$0xff]
    %v1718 = vld [vmem:[%s6 + $0x68] sm:$0xff]
    %v1719 = vld [vmem:[%s6 + $0x70] sm:$0xff]
    %v1720 = vld [vmem:[%s6 + $0x78] sm:$0xff]
    %v1721 = vld [vmem:[%s1] sm:$0xff]
    %v1722 = vld [vmem:[%s1 + $0x8] sm:$0xff]
    %v1723 = vld [vmem:[%s1 + $0x10] sm:$0xff]
    %v1724 = vld [vmem:[%s1 + $0x18] sm:$0xff]
    %v1725 = vld [vmem:[%s1 + $0x20] sm:$0xff]
    %v1726 = vld [vmem:[%s1 + $0x28] sm:$0xff]
    %v1727 = vld [vmem:[%s1 + $0x30] sm:$0xff]
    %v1728 = vld [vmem:[%s1 + $0x38] sm:$0xff]
    %v1729 = vld [vmem:[%s1 + $0x40] sm:$0xff]
    %v1730 = vld [vmem:[%s1 + $0x48] sm:$0xff]
    %v1731 = vld [vmem:[%s1 + $0x50] sm:$0xff]
    %v1732 = vld [vmem:[%s1 + $0x58] sm:$0xff]
    %v1733 = vld [vmem:[%s1 + $0x60] sm:$0xff]
    %v1734 = vld [vmem:[%s1 + $0x68] sm:$0xff]
    %v1735 = vld [vmem:[%s1 + $0x70] sm:$0xff]
    %v1736 = vld [vmem:[%s1 + $0x78] sm:$0xff]
    %v1737 = vld [vmem:[%s1 + $0x80] sm:$0xff]
    %v1738 = vld [vmem:[%s1 + $0x88] sm:$0xff]
    %v1739 = vld [vmem:[%s1 + $0x90] sm:$0xff]
    %v1740 = vld [vmem:[%s1 + $0x98] sm:$0xff]
    %v1741 = vld [vmem:[%s1 + $0xa0] sm:$0xff]
    %v1742 = vld [vmem:[%s1 + $0xa8] sm:$0xff]
    %v1743 = vld [vmem:[%s1 + $0xb0] sm:$0xff]
    %v1744 = vld [vmem:[%s1 + $0xb8] sm:$0xff]
    %v1745 = vld [vmem:[%s1 + $0xc0] sm:$0xff]
    %v1746 = vld [vmem:[%s1 + $0xc8] sm:$0xff]
    %v1747 = vld [vmem:[%s1 + $0xd0] sm:$0xff]
    %v1748 = vld [vmem:[%s1 + $0xd8] sm:$0xff]
    %v1749 = vld [vmem:[%s1 + $0xe0] sm:$0xff]
    %v1750 = vld [vmem:[%s1 + $0xe8] sm:$0xff]
    %v1751 = vld [vmem:[%s1 + $0xf0] sm:$0xff]
    %v1752 = vld [vmem:[%s1 + $0xf8] sm:$0xff]
    %s1753 = sld [smem:[#allocation3]]
    %s1754 = sld [smem:[#allocation3 + $0x1]]
    %v1755 = vlaneseq
    %v1756 = vand.u32 %v1755, 127
    %vm1757 = vcmp.ge.s32.totalorder %v77, %v1756
    %vm1758 = vcmp.ge.s32.totalorder %v95, %v1756
    %vm1759 = vcmp.ge.s32.totalorder %v96, %v1756
    %vm1760 = vcmp.ge.s32.totalorder %v97, %v1756
    %vm1761 = vcmp.ge.s32.totalorder %v98, %v1756
    %vm1762 = vcmp.ge.s32.totalorder %v99, %v1756
    %vm1763 = vcmp.ge.s32.totalorder %v100, %v1756
    %vm1764 = vcmp.ge.s32.totalorder %v101, %v1756
    %vm1765 = vcmp.ge.s32.totalorder %v102, %v1756
    %vm1766 = vcmp.ge.s32.totalorder %v103, %v1756
    %vm1767 = vcmp.ge.s32.totalorder %v104, %v1756
    %vm1768 = vcmp.ge.s32.totalorder %v105, %v1756
    %vm1769 = vcmp.ge.s32.totalorder %v106, %v1756
    %vm1770 = vcmp.ge.s32.totalorder %v107, %v1756
    %vm1771 = vcmp.ge.s32.totalorder %v108, %v1756
    %vm1772 = vcmp.ge.s32.totalorder %v109, %v1756
    %v1773 = vmul.f32 %v1385, %v1385
    %v1774 = vmul.f32 %v1389, %v1389
    %v1775 = vmul.f32 %v1395, %v1395
    %v1776 = vmul.f32 %v1399, %v1399
    %v1777 = vmul.f32 %v1405, %v1405
    %v1778 = vmul.f32 %v1409, %v1409
    %v1779 = vmul.f32 %v1415, %v1415
    %v1780 = vmul.f32 %v1419, %v1419
    %v1781 = vmul.f32 %v1425, %v1425
    %v1782 = vmul.f32 %v1429, %v1429
    %v1783 = vmul.f32 %v1435, %v1435
    %v1784 = vmul.f32 %v1439, %v1439
    %v1785 = vmul.f32 %v1445, %v1445
    %v1786 = vmul.f32 %v1449, %v1449
    %v1787 = vmul.f32 %v1455, %v1455
    %v1788 = vmul.f32 %v1459, %v1459
    %1789 = vadd.xlane.f32.xlu0 %v1773
    %v1790 = vpop.xlane.xlu0 %1789
    %1791 = vadd.xlane.f32.xlu0 %v1774
    %v1792 = vpop.xlane.xlu0 %1791
    %1793 = vadd.xlane.f32.xlu0 %v1775
    %v1794 = vpop.xlane.xlu0 %1793
    %1795 = vadd.xlane.f32.xlu0 %v1776
    %v1796 = vpop.xlane.xlu0 %1795
    %1797 = vadd.xlane.f32.xlu0 %v1777
    %v1798 = vpop.xlane.xlu0 %1797
    %1799 = vadd.xlane.f32.xlu0 %v1778
    %v1800 = vpop.xlane.xlu0 %1799
    %1801 = vadd.xlane.f32.xlu0 %v1779
    %v1802 = vpop.xlane.xlu0 %1801
    %1803 = vadd.xlane.f32.xlu0 %v1780
    %v1804 = vpop.xlane.xlu0 %1803
    %1805 = vadd.xlane.f32.xlu0 %v1781
    %v1806 = vpop.xlane.xlu0 %1805
    %1807 = vadd.xlane.f32.xlu0 %v1782
    %v1808 = vpop.xlane.xlu0 %1807
    %1809 = vadd.xlane.f32.xlu0 %v1783
    %v1810 = vpop.xlane.xlu0 %1809
    %1811 = vadd.xlane.f32.xlu0 %v1784
    %v1812 = vpop.xlane.xlu0 %1811
    %1813 = vadd.xlane.f32.xlu0 %v1785
    %v1814 = vpop.xlane.xlu0 %1813
    %1815 = vadd.xlane.f32.xlu0 %v1786
    %v1816 = vpop.xlane.xlu0 %1815
    %1817 = vadd.xlane.f32.xlu0 %v1787
    %v1818 = vpop.xlane.xlu0 %1817
    %1819 = vadd.xlane.f32.xlu0 %v1788
    %v1820 = vpop.xlane.xlu0 %1819
    %v1821 = vrcp.pop 128.0
    %v1822 = vmul.f32 %v1790, %v1821
    %v1823 = vmul.f32 %v1792, %v1821
    %v1824 = vmul.f32 %v1794, %v1821
    %v1825 = vmul.f32 %v1796, %v1821
    %v1826 = vmul.f32 %v1798, %v1821
    %v1827 = vmul.f32 %v1800, %v1821
    %v1828 = vmul.f32 %v1802, %v1821
    %v1829 = vmul.f32 %v1804, %v1821
    %v1830 = vmul.f32 %v1806, %v1821
    %v1831 = vmul.f32 %v1808, %v1821
    %v1832 = vmul.f32 %v1810, %v1821
    %v1833 = vmul.f32 %v1812, %v1821
    %v1834 = vmul.f32 %v1814, %v1821
    %v1835 = vmul.f32 %v1816, %v1821
    %v1836 = vmul.f32 %v1818, %v1821
    %v1837 = vmul.f32 %v1820, %v1821
    %v1838 = vadd.f32 %v1822, 1.1920929e-07
    %v1839 = vadd.f32 %v1823, 1.1920929e-07
    %v1840 = vadd.f32 %v1824, 1.1920929e-07
    %v1841 = vadd.f32 %v1825, 1.1920929e-07
    %v1842 = vadd.f32 %v1826, 1.1920929e-07
    %v1843 = vadd.f32 %v1827, 1.1920929e-07
    %v1844 = vadd.f32 %v1828, 1.1920929e-07
    %v1845 = vadd.f32 %v1829, 1.1920929e-07
    %v1846 = vadd.f32 %v1830, 1.1920929e-07
    %v1847 = vadd.f32 %v1831, 1.1920929e-07
    %v1848 = vadd.f32 %v1832, 1.1920929e-07
    %v1849 = vadd.f32 %v1833, 1.1920929e-07
    %v1850 = vadd.f32 %v1834, 1.1920929e-07
    %v1851 = vadd.f32 %v1835, 1.1920929e-07
    %v1852 = vadd.f32 %v1836, 1.1920929e-07
    %v1853 = vadd.f32 %v1837, 1.1920929e-07
    %v1854 = vrsqrt.pop %v1838
    %v1855 = vrsqrt.pop %v1839
    %v1856 = vrsqrt.pop %v1840
    %v1857 = vrsqrt.pop %v1841
    %v1858 = vrsqrt.pop %v1842
    %v1859 = vrsqrt.pop %v1843
    %v1860 = vrsqrt.pop %v1844
    %v1861 = vrsqrt.pop %v1845
    %v1862 = vrsqrt.pop %v1846
    %v1863 = vrsqrt.pop %v1847
    %v1864 = vrsqrt.pop %v1848
    %v1865 = vrsqrt.pop %v1849
    %v1866 = vrsqrt.pop %v1850
    %v1867 = vrsqrt.pop %v1851
    %v1868 = vrsqrt.pop %v1852
    %v1869 = vrsqrt.pop %v1853
    %v1870 = vmul.f32 %v1854, 0.12
    %v1871 = vmul.f32 %v1855, 0.12
    %v1872 = vmul.f32 %v1856, 0.12
    %v1873 = vmul.f32 %v1857, 0.12
    %v1874 = vmul.f32 %v1858, 0.12
    %v1875 = vmul.f32 %v1859, 0.12
    %v1876 = vmul.f32 %v1860, 0.12
    %v1877 = vmul.f32 %v1861, 0.12
    %v1878 = vmul.f32 %v1862, 0.12
    %v1879 = vmul.f32 %v1863, 0.12
    %v1880 = vmul.f32 %v1864, 0.12
    %v1881 = vmul.f32 %v1865, 0.12
    %v1882 = vmul.f32 %v1866, 0.12
    %v1883 = vmul.f32 %v1867, 0.12
    %v1884 = vmul.f32 %v1868, 0.12
    %v1885 = vmul.f32 %v1869, 0.12
    %v1886 = vmul.f32 %v1385, %v1870
    %v1887 = vmul.f32 %v1389, %v1871
    %v1888 = vmul.f32 %v1395, %v1872
    %v1889 = vmul.f32 %v1399, %v1873
    %v1890 = vmul.f32 %v1405, %v1874
    %v1891 = vmul.f32 %v1409, %v1875
    %v1892 = vmul.f32 %v1415, %v1876
    %v1893 = vmul.f32 %v1419, %v1877
    %v1894 = vmul.f32 %v1425, %v1878
    %v1895 = vmul.f32 %v1429, %v1879
    %v1896 = vmul.f32 %v1435, %v1880
    %v1897 = vmul.f32 %v1439, %v1881
    %v1898 = vmul.f32 %v1445, %v1882
    %v1899 = vmul.f32 %v1449, %v1883
    %v1900 = vmul.f32 %v1455, %v1884
    %v1901 = vmul.f32 %v1459, %v1885
    %v1902 = vmul.f32 %v1498, %v1498
    %v1903 = vmul.f32 %v1502, %v1502
    %v1904 = vmul.f32 %v1508, %v1508
    %v1905 = vmul.f32 %v1512, %v1512
    %v1906 = vmul.f32 %v1518, %v1518
    %v1907 = vmul.f32 %v1522, %v1522
    %v1908 = vmul.f32 %v1528, %v1528
    %v1909 = vmul.f32 %v1532, %v1532
    %v1910 = vmul.f32 %v1538, %v1538
    %v1911 = vmul.f32 %v1542, %v1542
    %v1912 = vmul.f32 %v1548, %v1548
    %v1913 = vmul.f32 %v1552, %v1552
    %v1914 = vmul.f32 %v1558, %v1558
    %v1915 = vmul.f32 %v1562, %v1562
    %v1916 = vmul.f32 %v1568, %v1568
    %v1917 = vmul.f32 %v1572, %v1572
    %1918 = vadd.xlane.f32.xlu0 %v1902
    %v1919 = vpop.xlane.xlu0 %1918
    %1920 = vadd.xlane.f32.xlu0 %v1903
    %v1921 = vpop.xlane.xlu0 %1920
    %1922 = vadd.xlane.f32.xlu0 %v1904
    %v1923 = vpop.xlane.xlu0 %1922
    %1924 = vadd.xlane.f32.xlu0 %v1905
    %v1925 = vpop.xlane.xlu0 %1924
    %1926 = vadd.xlane.f32.xlu0 %v1906
    %v1927 = vpop.xlane.xlu0 %1926
    %1928 = vadd.xlane.f32.xlu0 %v1907
    %v1929 = vpop.xlane.xlu0 %1928
    %1930 = vadd.xlane.f32.xlu0 %v1908
    %v1931 = vpop.xlane.xlu0 %1930
    %1932 = vadd.xlane.f32.xlu0 %v1909
    %v1933 = vpop.xlane.xlu0 %1932
    %1934 = vadd.xlane.f32.xlu0 %v1910
    %v1935 = vpop.xlane.xlu0 %1934
    %1936 = vadd.xlane.f32.xlu0 %v1911
    %v1937 = vpop.xlane.xlu0 %1936
    %1938 = vadd.xlane.f32.xlu0 %v1912
    %v1939 = vpop.xlane.xlu0 %1938
    %1940 = vadd.xlane.f32.xlu0 %v1913
    %v1941 = vpop.xlane.xlu0 %1940
    %1942 = vadd.xlane.f32.xlu0 %v1914
    %v1943 = vpop.xlane.xlu0 %1942
    %1944 = vadd.xlane.f32.xlu0 %v1915
    %v1945 = vpop.xlane.xlu0 %1944
    %1946 = vadd.xlane.f32.xlu0 %v1916
    %v1947 = vpop.xlane.xlu0 %1946
    %1948 = vadd.xlane.f32.xlu0 %v1917
    %v1949 = vpop.xlane.xlu0 %1948
    %v1950 = vmul.f32 %v1919, %v1821
    %v1951 = vmul.f32 %v1921, %v1821
    %v1952 = vmul.f32 %v1923, %v1821
    %v1953 = vmul.f32 %v1925, %v1821
    %v1954 = vmul.f32 %v1927, %v1821
    %v1955 = vmul.f32 %v1929, %v1821
    %v1956 = vmul.f32 %v1931, %v1821
    %v1957 = vmul.f32 %v1933, %v1821
    %v1958 = vmul.f32 %v1935, %v1821
    %v1959 = vmul.f32 %v1937, %v1821
    %v1960 = vmul.f32 %v1939, %v1821
    %v1961 = vmul.f32 %v1941, %v1821
    %v1962 = vmul.f32 %v1943, %v1821
    %v1963 = vmul.f32 %v1945, %v1821
    %v1964 = vmul.f32 %v1947, %v1821
    %v1965 = vmul.f32 %v1949, %v1821
    %v1966 = vadd.f32 %v1950, 1.1920929e-07
    %v1967 = vadd.f32 %v1951, 1.1920929e-07
    %v1968 = vadd.f32 %v1952, 1.1920929e-07
    %v1969 = vadd.f32 %v1953, 1.1920929e-07
    %v1970 = vadd.f32 %v1954, 1.1920929e-07
    %v1971 = vadd.f32 %v1955, 1.1920929e-07
    %v1972 = vadd.f32 %v1956, 1.1920929e-07
    %v1973 = vadd.f32 %v1957, 1.1920929e-07
    %v1974 = vadd.f32 %v1958, 1.1920929e-07
    %v1975 = vadd.f32 %v1959, 1.1920929e-07
    %v1976 = vadd.f32 %v1960, 1.1920929e-07
    %v1977 = vadd.f32 %v1961, 1.1920929e-07
    %v1978 = vadd.f32 %v1962, 1.1920929e-07
    %v1979 = vadd.f32 %v1963, 1.1920929e-07
    %v1980 = vadd.f32 %v1964, 1.1920929e-07
    %v1981 = vadd.f32 %v1965, 1.1920929e-07
    %v1982 = vrsqrt.pop %v1966
    %v1983 = vrsqrt.pop %v1967
    %v1984 = vrsqrt.pop %v1968
    %v1985 = vrsqrt.pop %v1969
    %v1986 = vrsqrt.pop %v1970
    %v1987 = vrsqrt.pop %v1971
    %v1988 = vrsqrt.pop %v1972
    %v1989 = vrsqrt.pop %v1973
    %v1990 = vrsqrt.pop %v1974
    %v1991 = vrsqrt.pop %v1975
    %v1992 = vrsqrt.pop %v1976
    %v1993 = vrsqrt.pop %v1977
    %v1994 = vrsqrt.pop %v1978
    %v1995 = vrsqrt.pop %v1979
    %v1996 = vrsqrt.pop %v1980
    %v1997 = vrsqrt.pop %v1981
    %v1998 = vmul.f32 %v1498, %v1982
    %v1999 = vmul.f32 %v1502, %v1983
    %v2000 = vmul.f32 %v1508, %v1984
    %v2001 = vmul.f32 %v1512, %v1985
    %v2002 = vmul.f32 %v1518, %v1986
    %v2003 = vmul.f32 %v1522, %v1987
    %v2004 = vmul.f32 %v1528, %v1988
    %v2005 = vmul.f32 %v1532, %v1989
    %v2006 = vmul.f32 %v1538, %v1990
    %v2007 = vmul.f32 %v1542, %v1991
    %v2008 = vmul.f32 %v1548, %v1992
    %v2009 = vmul.f32 %v1552, %v1993
    %v2010 = vmul.f32 %v1558, %v1994
    %v2011 = vmul.f32 %v1562, %v1995
    %v2012 = vmul.f32 %v1568, %v1996
    %v2013 = vmul.f32 %v1572, %v1997
    %v2014 = vmul.f32 %v1886, %v1689
    %v2015 = vmul.f32 %v1887, %v1690
    %v2016 = vmul.f32 %v1888, %v1691
    %v2017 = vmul.f32 %v1889, %v1692
    %v2018 = vmul.f32 %v1890, %v1693
    %v2019 = vmul.f32 %v1891, %v1694
    %v2020 = vmul.f32 %v1892, %v1695
    %v2021 = vmul.f32 %v1893, %v1696
    %v2022 = vmul.f32 %v1894, %v1697
    %v2023 = vmul.f32 %v1895, %v1698
    %v2024 = vmul.f32 %v1896, %v1699
    %v2025 = vmul.f32 %v1897, %v1700
    %v2026 = vmul.f32 %v1898, %v1701
    %v2027 = vmul.f32 %v1899, %v1702
    %v2028 = vmul.f32 %v1900, %v1703
    %v2029 = vmul.f32 %v1901, %v1704
    %2030 = vrot.lane.b32.xlu0 %v1886, 64
    %v2031 = vpop.permute.xlu0 %2030
    %2032 = vrot.lane.b32.xlu0 %v1887, 64
    %v2033 = vpop.permute.xlu0 %2032
    %2034 = vrot.lane.b32.xlu0 %v1888, 64
    %v2035 = vpop.permute.xlu0 %2034
    %2036 = vrot.lane.b32.xlu0 %v1889, 64
    %v2037 = vpop.permute.xlu0 %2036
    %2038 = vrot.lane.b32.xlu0 %v1890, 64
    %v2039 = vpop.permute.xlu0 %2038
    %2040 = vrot.lane.b32.xlu0 %v1891, 64
    %v2041 = vpop.permute.xlu0 %2040
    %2042 = vrot.lane.b32.xlu0 %v1892, 64
    %v2043 = vpop.permute.xlu0 %2042
    %2044 = vrot.lane.b32.xlu0 %v1893, 64
    %v2045 = vpop.permute.xlu0 %2044
    %2046 = vrot.lane.b32.xlu0 %v1894, 64
    %v2047 = vpop.permute.xlu0 %2046
    %2048 = vrot.lane.b32.xlu0 %v1895, 64
    %v2049 = vpop.permute.xlu0 %2048
    %2050 = vrot.lane.b32.xlu0 %v1896, 64
    %v2051 = vpop.permute.xlu0 %2050
    %2052 = vrot.lane.b32.xlu0 %v1897, 64
    %v2053 = vpop.permute.xlu0 %2052
    %2054 = vrot.lane.b32.xlu0 %v1898, 64
    %v2055 = vpop.permute.xlu0 %2054
    %2056 = vrot.lane.b32.xlu0 %v1899, 64
    %v2057 = vpop.permute.xlu0 %2056
    %2058 = vrot.lane.b32.xlu0 %v1900, 64
    %v2059 = vpop.permute.xlu0 %2058
    %2060 = vrot.lane.b32.xlu0 %v1901, 64
    %v2061 = vpop.permute.xlu0 %2060
    %v2062 = vmul.f32 %v2031, %v1705
    %v2063 = vmul.f32 %v2033, %v1706
    %v2064 = vmul.f32 %v2035, %v1707
    %v2065 = vmul.f32 %v2037, %v1708
    %v2066 = vmul.f32 %v2039, %v1709
    %v2067 = vmul.f32 %v2041, %v1710
    %v2068 = vmul.f32 %v2043, %v1711
    %v2069 = vmul.f32 %v2045, %v1712
    %v2070 = vmul.f32 %v2047, %v1713
    %v2071 = vmul.f32 %v2049, %v1714
    %v2072 = vmul.f32 %v2051, %v1715
    %v2073 = vmul.f32 %v2053, %v1716
    %v2074 = vmul.f32 %v2055, %v1717
    %v2075 = vmul.f32 %v2057, %v1718
    %v2076 = vmul.f32 %v2059, %v1719
    %v2077 = vmul.f32 %v2061, %v1720
    %v2078 = vadd.f32 %v2014, %v2062
    %v2079 = vadd.f32 %v2015, %v2063
    %v2080 = vadd.f32 %v2016, %v2064
    %v2081 = vadd.f32 %v2017, %v2065
    %v2082 = vadd.f32 %v2018, %v2066
    %v2083 = vadd.f32 %v2019, %v2067
    %v2084 = vadd.f32 %v2020, %v2068
    %v2085 = vadd.f32 %v2021, %v2069
    %v2086 = vadd.f32 %v2022, %v2070
    %v2087 = vadd.f32 %v2023, %v2071
    %v2088 = vadd.f32 %v2024, %v2072
    %v2089 = vadd.f32 %v2025, %v2073
    %v2090 = vadd.f32 %v2026, %v2074
    %v2091 = vadd.f32 %v2027, %v2075
    %v2092 = vadd.f32 %v2028, %v2076
    %v2093 = vadd.f32 %v2029, %v2077
    %v2094 = vmul.f32 %v1998, %v1689
    %v2095 = vmul.f32 %v1999, %v1690
    %v2096 = vmul.f32 %v2000, %v1691
    %v2097 = vmul.f32 %v2001, %v1692
    %v2098 = vmul.f32 %v2002, %v1693
    %v2099 = vmul.f32 %v2003, %v1694
    %v2100 = vmul.f32 %v2004, %v1695
    %v2101 = vmul.f32 %v2005, %v1696
    %v2102 = vmul.f32 %v2006, %v1697
    %v2103 = vmul.f32 %v2007, %v1698
    %v2104 = vmul.f32 %v2008, %v1699
    %v2105 = vmul.f32 %v2009, %v1700
    %v2106 = vmul.f32 %v2010, %v1701
    %v2107 = vmul.f32 %v2011, %v1702
    %v2108 = vmul.f32 %v2012, %v1703
    %v2109 = vmul.f32 %v2013, %v1704
    %2110 = vrot.lane.b32.xlu0 %v1998, 64
    %v2111 = vpop.permute.xlu0 %2110
    %2112 = vrot.lane.b32.xlu0 %v1999, 64
    %v2113 = vpop.permute.xlu0 %2112
    %2114 = vrot.lane.b32.xlu0 %v2000, 64
    %v2115 = vpop.permute.xlu0 %2114
    %2116 = vrot.lane.b32.xlu0 %v2001, 64
    %v2117 = vpop.permute.xlu0 %2116
    %2118 = vrot.lane.b32.xlu0 %v2002, 64
    %v2119 = vpop.permute.xlu0 %2118
    %2120 = vrot.lane.b32.xlu0 %v2003, 64
    %v2121 = vpop.permute.xlu0 %2120
    %2122 = vrot.lane.b32.xlu0 %v2004, 64
    %v2123 = vpop.permute.xlu0 %2122
    %2124 = vrot.lane.b32.xlu0 %v2005, 64
    %v2125 = vpop.permute.xlu0 %2124
    %2126 = vrot.lane.b32.xlu0 %v2006, 64
    %v2127 = vpop.permute.xlu0 %2126
    %2128 = vrot.lane.b32.xlu0 %v2007, 64
    %v2129 = vpop.permute.xlu0 %2128
    %2130 = vrot.lane.b32.xlu0 %v2008, 64
    %v2131 = vpop.permute.xlu0 %2130
    %2132 = vrot.lane.b32.xlu0 %v2009, 64
    %v2133 = vpop.permute.xlu0 %2132
    %2134 = vrot.lane.b32.xlu0 %v2010, 64
    %v2135 = vpop.permute.xlu0 %2134
    %2136 = vrot.lane.b32.xlu0 %v2011, 64
    %v2137 = vpop.permute.xlu0 %2136
    %2138 = vrot.lane.b32.xlu0 %v2012, 64
    %v2139 = vpop.permute.xlu0 %2138
    %2140 = vrot.lane.b32.xlu0 %v2013, 64
    %v2141 = vpop.permute.xlu0 %2140
    %v2142 = vmul.f32 %v2111, %v1705
    %v2143 = vmul.f32 %v2113, %v1706
    %v2144 = vmul.f32 %v2115, %v1707
    %v2145 = vmul.f32 %v2117, %v1708
    %v2146 = vmul.f32 %v2119, %v1709
    %v2147 = vmul.f32 %v2121, %v1710
    %v2148 = vmul.f32 %v2123, %v1711
    %v2149 = vmul.f32 %v2125, %v1712
    %v2150 = vmul.f32 %v2127, %v1713
    %v2151 = vmul.f32 %v2129, %v1714
    %v2152 = vmul.f32 %v2131, %v1715
    %v2153 = vmul.f32 %v2133, %v1716
    %v2154 = vmul.f32 %v2135, %v1717
    %v2155 = vmul.f32 %v2137, %v1718
    %v2156 = vmul.f32 %v2139, %v1719
    %v2157 = vmul.f32 %v2141, %v1720
    %v2158 = vadd.f32 %v2094, %v2142
    %v2159 = vadd.f32 %v2095, %v2143
    %v2160 = vadd.f32 %v2096, %v2144
    %v2161 = vadd.f32 %v2097, %v2145
    %v2162 = vadd.f32 %v2098, %v2146
    %v2163 = vadd.f32 %v2099, %v2147
    %v2164 = vadd.f32 %v2100, %v2148
    %v2165 = vadd.f32 %v2101, %v2149
    %v2166 = vadd.f32 %v2102, %v2150
    %v2167 = vadd.f32 %v2103, %v2151
    %v2168 = vadd.f32 %v2104, %v2152
    %v2169 = vadd.f32 %v2105, %v2153
    %v2170 = vadd.f32 %v2106, %v2154
    %v2171 = vadd.f32 %v2107, %v2155
    %v2172 = vadd.f32 %v2108, %v2156
    %v2173 = vadd.f32 %v2109, %v2157
    %v2174 = vstv %s1753
    %v2175 = vmul.f32 %v2174, %v1611
    %v2176 = vmul.f32 %v2174, %v1615
    %v2177 = vmul.f32 %v2174, %v1621
    %v2178 = vmul.f32 %v2174, %v1625
    %v2179 = vmul.f32 %v2174, %v1631
    %v2180 = vmul.f32 %v2174, %v1635
    %v2181 = vmul.f32 %v2174, %v1641
    %v2182 = vmul.f32 %v2174, %v1645
    %v2183 = vmul.f32 %v2174, %v1651
    %v2184 = vmul.f32 %v2174, %v1655
    %v2185 = vmul.f32 %v2174, %v1661
    %v2186 = vmul.f32 %v2174, %v1665
    %v2187 = vmul.f32 %v2174, %v1671
    %v2188 = vmul.f32 %v2174, %v1675
    %v2189 = vmul.f32 %v2174, %v1681
    %v2190 = vmul.f32 %v2174, %v1685
    %v2191 = vstv %s1754
    %v2192 = vmul.f32 %v2191, %v1721
    %v2193 = vmul.f32 %v2191, %v1723
    %v2194 = vmul.f32 %v2191, %v1725
    %v2195 = vmul.f32 %v2191, %v1727
    %v2196 = vmul.f32 %v2191, %v1729
    %v2197 = vmul.f32 %v2191, %v1731
    %v2198 = vmul.f32 %v2191, %v1733
    %v2199 = vmul.f32 %v2191, %v1735
    %v2200 = vmul.f32 %v2191, %v1737
    %v2201 = vmul.f32 %v2191, %v1739
    %v2202 = vmul.f32 %v2191, %v1741
    %v2203 = vmul.f32 %v2191, %v1743
    %v2204 = vmul.f32 %v2191, %v1745
    %v2205 = vmul.f32 %v2191, %v1747
    %v2206 = vmul.f32 %v2191, %v1749
    %v2207 = vmul.f32 %v2191, %v1751
    %v2208 = vadd.f32 %v2175, %v2192
    %v2209 = vadd.f32 %v2176, %v2193
    %v2210 = vadd.f32 %v2177, %v2194
    %v2211 = vadd.f32 %v2178, %v2195
    %v2212 = vadd.f32 %v2179, %v2196
    %v2213 = vadd.f32 %v2180, %v2197
    %v2214 = vadd.f32 %v2181, %v2198
    %v2215 = vadd.f32 %v2182, %v2199
    %v2216 = vadd.f32 %v2183, %v2200
    %v2217 = vadd.f32 %v2184, %v2201
    %v2218 = vadd.f32 %v2185, %v2202
    %v2219 = vadd.f32 %v2186, %v2203
    %v2220 = vadd.f32 %v2187, %v2204
    %v2221 = vadd.f32 %v2188, %v2205
    %v2222 = vadd.f32 %v2189, %v2206
    %v2223 = vadd.f32 %v2190, %v2207
    %v2224 = vpack.c.bf16 %v2079, %v2078
    %v2225 = vpack.c.bf16 %v2081, %v2080
    %v2226 = vpack.c.bf16 %v2083, %v2082
    %v2227 = vpack.c.bf16 %v2085, %v2084
    %v2228 = vpack.c.bf16 %v2087, %v2086
    %v2229 = vpack.c.bf16 %v2089, %v2088
    %v2230 = vpack.c.bf16 %v2091, %v2090
    %v2231 = vpack.c.bf16 %v2093, %v2092
    %v2232 = vpack.c.bf16 %v2159, %v2158
    %v2233 = vpack.c.bf16 %v2161, %v2160
    %v2234 = vpack.c.bf16 %v2163, %v2162
    %v2235 = vpack.c.bf16 %v2165, %v2164
    %v2236 = vpack.c.bf16 %v2167, %v2166
    %v2237 = vpack.c.bf16 %v2169, %v2168
    %v2238 = vpack.c.bf16 %v2171, %v2170
    %v2239 = vpack.c.bf16 %v2173, %v2172
    %2240 = vmatprep.subr.bf16.mxu0 0
    %2241 = vmatpush1.bf16.xpose.msra.mxu0 %v2239
    %2242 = vmatprep.subr.bf16.mxu0 0
    %2243 = vmatpush1.bf16.xpose.msra.mxu0 %v2238
    %2244 = vmatprep.subr.bf16.mxu0 0
    %2245 = vmatpush1.bf16.xpose.msra.mxu0 %v2237
    %2246 = vmatprep.subr.bf16.mxu0 0
    %2247 = vmatpush1.bf16.xpose.msra.mxu0 %v2236
    %2248 = vmatprep.subr.bf16.mxu0 0
    %2249 = vmatpush1.bf16.xpose.msra.mxu0 %v2235
    %2250 = vmatprep.subr.bf16.mxu0 0
    %2251 = vmatpush1.bf16.xpose.msra.mxu0 %v2234
    %2252 = vmatprep.subr.bf16.mxu0 0
    %2253 = vmatpush1.bf16.xpose.msra.mxu0 %v2233
    %2254 = vmatprep.subr.bf16.mxu0 0
    %2255 = vmatpush1.bf16.xpose.msra.mxu0 %v2232
    %2256 = vmatprep.subr.bf16.mxu0 0
    %2257 = vmatpush2.bf16.xpose.msra.mxu0 0
    %2258 = vmatprep.subr.bf16.mxu0 0
    %2259 = vmatpush2.bf16.xpose.msra.mxu0 0
    %2260 = vmatprep.subr.bf16.mxu0 0
    %2261 = vmatpush2.bf16.xpose.msra.mxu0 0
    %2262 = vmatprep.subr.bf16.mxu0 0
    %2263 = vmatpush2.bf16.xpose.msra.mxu0 0
    %2264 = vmatprep.subr.bf16.mxu0 0
    %2265 = vmatpush2.bf16.xpose.msra.mxu0 0
    %2266 = vmatprep.subr.bf16.mxu0 0
    %2267 = vmatpush2.bf16.xpose.msra.mxu0 0
    %2268 = vmatprep.subr.bf16.mxu0 0
    %2269 = vmatpush2.bf16.xpose.msra.mxu0 0
    %2270 = vmatprep.subr.bf16.mxu0 0
    %2271 = vmatpush2.bf16.xpose.msra.mxu0 0
    %2272 = vmatprep.mubr.bf16.mxu0 0
    %2273 = vmatmul.mubr.bf16.gmra.mxu0 %v2224
    %v2274 = vpop.f32.mrf.mxu0
    %v2275 = vadd.f32 0.0, %v2274
    %v2276 = vpop.f32.mrf.mxu0
    %v2277 = vpop.f32.mrf.mxu0
    %v2278 = vadd.f32 0.0, %v2277
    %v2279 = vpop.f32.mrf.mxu0
    %2280 = vmatprep.mubr.bf16.mxu0 0
    %2281 = vmatmul.mubr.bf16.gmra.mxu0 %v2225
    %v2282 = vpop.f32.mrf.mxu0
    %v2283 = vadd.f32 0.0, %v2282
    %v2284 = vpop.f32.mrf.mxu0
    %v2285 = vpop.f32.mrf.mxu0
    %v2286 = vadd.f32 0.0, %v2285
    %v2287 = vpop.f32.mrf.mxu0
    %2288 = vmatprep.mubr.bf16.mxu0 0
    %2289 = vmatmul.mubr.bf16.gmra.mxu0 %v2226
    %v2290 = vpop.f32.mrf.mxu0
    %v2291 = vadd.f32 0.0, %v2290
    %v2292 = vpop.f32.mrf.mxu0
    %v2293 = vpop.f32.mrf.mxu0
    %v2294 = vadd.f32 0.0, %v2293
    %v2295 = vpop.f32.mrf.mxu0
    %2296 = vmatprep.mubr.bf16.mxu0 0
    %2297 = vmatmul.mubr.bf16.gmra.mxu0 %v2227
    %v2298 = vpop.f32.mrf.mxu0
    %v2299 = vadd.f32 0.0, %v2298
    %v2300 = vpop.f32.mrf.mxu0
    %v2301 = vpop.f32.mrf.mxu0
    %v2302 = vadd.f32 0.0, %v2301
    %v2303 = vpop.f32.mrf.mxu0
    %2304 = vmatprep.mubr.bf16.mxu0 0
    %2305 = vmatmul.mubr.bf16.gmra.mxu0 %v2228
    %v2306 = vpop.f32.mrf.mxu0
    %v2307 = vadd.f32 0.0, %v2306
    %v2308 = vpop.f32.mrf.mxu0
    %v2309 = vpop.f32.mrf.mxu0
    %v2310 = vadd.f32 0.0, %v2309
    %v2311 = vpop.f32.mrf.mxu0
    %2312 = vmatprep.mubr.bf16.mxu0 0
    %2313 = vmatmul.mubr.bf16.gmra.mxu0 %v2229
    %v2314 = vpop.f32.mrf.mxu0
    %v2315 = vadd.f32 0.0, %v2314
    %v2316 = vpop.f32.mrf.mxu0
    %v2317 = vpop.f32.mrf.mxu0
    %v2318 = vadd.f32 0.0, %v2317
    %v2319 = vpop.f32.mrf.mxu0
    %2320 = vmatprep.mubr.bf16.mxu0 0
    %2321 = vmatmul.mubr.bf16.gmra.mxu0 %v2230
    %v2322 = vpop.f32.mrf.mxu0
    %v2323 = vadd.f32 0.0, %v2322
    %v2324 = vpop.f32.mrf.mxu0
    %v2325 = vpop.f32.mrf.mxu0
    %v2326 = vadd.f32 0.0, %v2325
    %v2327 = vpop.f32.mrf.mxu0
    %2328 = vmatprep.mubr.bf16.mxu0 0
    %2329 = vmatmul.mubr.bf16.gmra.mxu0 %v2231
    %v2330 = vpop.f32.mrf.mxu0
    %v2331 = vadd.f32 0.0, %v2330
    %v2332 = vpop.f32.mrf.mxu0
    %v2333 = vpop.f32.mrf.mxu0
    %v2334 = vadd.f32 0.0, %v2333
    %v2335 = vpop.f32.mrf.mxu0
    %2336 = vdwg.mxu0
    %2337 = vmax.xlane.f32.xlu0 %v2275
    %v2338 = vpop.xlane.xlu0 %2337
    %2339 = vmax.xlane.f32.xlu0 %v2278
    %v2340 = vpop.xlane.xlu0 %2339
    %2341 = vmax.xlane.f32.xlu0 %v2283
    %v2342 = vpop.xlane.xlu0 %2341
    %2343 = vmax.xlane.f32.xlu0 %v2286
    %v2344 = vpop.xlane.xlu0 %2343
    %2345 = vmax.xlane.f32.xlu0 %v2291
    %v2346 = vpop.xlane.xlu0 %2345
    %2347 = vmax.xlane.f32.xlu0 %v2294
    %v2348 = vpop.xlane.xlu0 %2347
    %2349 = vmax.xlane.f32.xlu0 %v2299
    %v2350 = vpop.xlane.xlu0 %2349
    %2351 = vmax.xlane.f32.xlu0 %v2302
    %v2352 = vpop.xlane.xlu0 %2351
    %2353 = vmax.xlane.f32.xlu0 %v2307
    %v2354 = vpop.xlane.xlu0 %2353
    %2355 = vmax.xlane.f32.xlu0 %v2310
    %v2356 = vpop.xlane.xlu0 %2355
    %2357 = vmax.xlane.f32.xlu0 %v2315
    %v2358 = vpop.xlane.xlu0 %2357
    %2359 = vmax.xlane.f32.xlu0 %v2318
    %v2360 = vpop.xlane.xlu0 %2359
    %2361 = vmax.xlane.f32.xlu0 %v2323
    %v2362 = vpop.xlane.xlu0 %2361
    %2363 = vmax.xlane.f32.xlu0 %v2326
    %v2364 = vpop.xlane.xlu0 %2363
    %2365 = vmax.xlane.f32.xlu0 %v2331
    %v2366 = vpop.xlane.xlu0 %2365
    %2367 = vmax.xlane.f32.xlu0 %v2334
    %v2368 = vpop.xlane.xlu0 %2367
    %v2369 = vsub.f32 %v2275, %v2338
    %v2370 = vsub.f32 %v2278, %v2340
    %v2371 = vsub.f32 %v2283, %v2342
    %v2372 = vsub.f32 %v2286, %v2344
    %v2373 = vsub.f32 %v2291, %v2346
    %v2374 = vsub.f32 %v2294, %v2348
    %v2375 = vsub.f32 %v2299, %v2350
    %v2376 = vsub.f32 %v2302, %v2352
    %v2377 = vsub.f32 %v2307, %v2354
    %v2378 = vsub.f32 %v2310, %v2356
    %v2379 = vsub.f32 %v2315, %v2358
    %v2380 = vsub.f32 %v2318, %v2360
    %v2381 = vsub.f32 %v2323, %v2362
    %v2382 = vsub.f32 %v2326, %v2364
    %v2383 = vsub.f32 %v2331, %v2366
    %v2384 = vsub.f32 %v2334, %v2368
    %v2385 = vmul.f32 %v2369, 1.442695
    %v2386 = vpow.pop %v2385
    %v2387 = vmul.f32 %v2370, 1.442695
    %v2388 = vpow.pop %v2387
    %v2389 = vmul.f32 %v2371, 1.442695
    %v2390 = vpow.pop %v2389
    %v2391 = vmul.f32 %v2372, 1.442695
    %v2392 = vpow.pop %v2391
    %v2393 = vmul.f32 %v2373, 1.442695
    %v2394 = vpow.pop %v2393
    %v2395 = vmul.f32 %v2374, 1.442695
    %v2396 = vpow.pop %v2395
    %v2397 = vmul.f32 %v2375, 1.442695
    %v2398 = vpow.pop %v2397
    %v2399 = vmul.f32 %v2376, 1.442695
    %v2400 = vpow.pop %v2399
    %v2401 = vmul.f32 %v2377, 1.442695
    %v2402 = vpow.pop %v2401
    %v2403 = vmul.f32 %v2378, 1.442695
    %v2404 = vpow.pop %v2403
    %v2405 = vmul.f32 %v2379, 1.442695
    %v2406 = vpow.pop %v2405
    %v2407 = vmul.f32 %v2380, 1.442695
    %v2408 = vpow.pop %v2407
    %v2409 = vmul.f32 %v2381, 1.442695
    %v2410 = vpow.pop %v2409
    %v2411 = vmul.f32 %v2382, 1.442695
    %v2412 = vpow.pop %v2411
    %v2413 = vmul.f32 %v2383, 1.442695
    %v2414 = vpow.pop %v2413
    %v2415 = vmul.f32 %v2384, 1.442695
    %v2416 = vpow.pop %v2415
    %v2417 = vsel %vm1757, %v2386, 0.0
    %v2418 = vsel %vm1758, %v2388, 0.0
    %v2419 = vsel %vm1759, %v2390, 0.0
    %v2420 = vsel %vm1760, %v2392, 0.0
    %v2421 = vsel %vm1761, %v2394, 0.0
    %v2422 = vsel %vm1762, %v2396, 0.0
    %v2423 = vsel %vm1763, %v2398, 0.0
    %v2424 = vsel %vm1764, %v2400, 0.0
    %v2425 = vsel %vm1765, %v2402, 0.0
    %v2426 = vsel %vm1766, %v2404, 0.0
    %v2427 = vsel %vm1767, %v2406, 0.0
    %v2428 = vsel %vm1768, %v2408, 0.0
    %v2429 = vsel %vm1769, %v2410, 0.0
    %v2430 = vsel %vm1770, %v2412, 0.0
    %v2431 = vsel %vm1771, %v2414, 0.0
    %v2432 = vsel %vm1772, %v2416, 0.0
    %2433 = vadd.xlane.f32.xlu0 %v2417
    %v2434 = vpop.xlane.xlu0 %2433
    %2435 = vadd.xlane.f32.xlu0 %v2418
    %v2436 = vpop.xlane.xlu0 %2435
    %2437 = vadd.xlane.f32.xlu0 %v2419
    %v2438 = vpop.xlane.xlu0 %2437
    %2439 = vadd.xlane.f32.xlu0 %v2420
    %v2440 = vpop.xlane.xlu0 %2439
    %2441 = vadd.xlane.f32.xlu0 %v2421
    %v2442 = vpop.xlane.xlu0 %2441
    %2443 = vadd.xlane.f32.xlu0 %v2422
    %v2444 = vpop.xlane.xlu0 %2443
    %2445 = vadd.xlane.f32.xlu0 %v2423
    %v2446 = vpop.xlane.xlu0 %2445
    %2447 = vadd.xlane.f32.xlu0 %v2424
    %v2448 = vpop.xlane.xlu0 %2447
    %2449 = vadd.xlane.f32.xlu0 %v2425
    %v2450 = vpop.xlane.xlu0 %2449
    %2451 = vadd.xlane.f32.xlu0 %v2426
    %v2452 = vpop.xlane.xlu0 %2451
    %2453 = vadd.xlane.f32.xlu0 %v2427
    %v2454 = vpop.xlane.xlu0 %2453
    %2455 = vadd.xlane.f32.xlu0 %v2428
    %v2456 = vpop.xlane.xlu0 %2455
    %2457 = vadd.xlane.f32.xlu0 %v2429
    %v2458 = vpop.xlane.xlu0 %2457
    %2459 = vadd.xlane.f32.xlu0 %v2430
    %v2460 = vpop.xlane.xlu0 %2459
    %2461 = vadd.xlane.f32.xlu0 %v2431
    %v2462 = vpop.xlane.xlu0 %2461
    %2463 = vadd.xlane.f32.xlu0 %v2432
    %v2464 = vpop.xlane.xlu0 %2463
    %v2465 = vpack.c.bf16 %v2418, %v2417
    %v2466 = vpack.c.bf16 %v2420, %v2419
    %v2467 = vpack.c.bf16 %v2422, %v2421
    %v2468 = vpack.c.bf16 %v2424, %v2423
    %v2469 = vpack.c.bf16 %v2426, %v2425
    %v2470 = vpack.c.bf16 %v2428, %v2427
    %v2471 = vpack.c.bf16 %v2430, %v2429
    %v2472 = vpack.c.bf16 %v2432, %v2431
    %v2473 = vpack.c.bf16 %v2209, %v2208
    %v2474 = vpack.c.bf16 %v2211, %v2210
    %v2475 = vpack.c.bf16 %v2213, %v2212
    %v2476 = vpack.c.bf16 %v2215, %v2214
    %v2477 = vpack.c.bf16 %v2217, %v2216
    %v2478 = vpack.c.bf16 %v2219, %v2218
    %v2479 = vpack.c.bf16 %v2221, %v2220
    %v2480 = vpack.c.bf16 %v2223, %v2222
    %2481 = vmatprep.subr.bf16.mxu0 0
    %2482 = vmatpush1.bf16.msra.mxu0 %v2480
    %2483 = vmatprep.subr.bf16.mxu0 0
    %2484 = vmatpush1.bf16.msra.mxu0 %v2479
    %2485 = vmatprep.subr.bf16.mxu0 0
    %2486 = vmatpush1.bf16.msra.mxu0 %v2478
    %2487 = vmatprep.subr.bf16.mxu0 0
    %2488 = vmatpush1.bf16.msra.mxu0 %v2477
    %2489 = vmatprep.subr.bf16.mxu0 0
    %2490 = vmatpush1.bf16.msra.mxu0 %v2476
    %2491 = vmatprep.subr.bf16.mxu0 0
    %2492 = vmatpush1.bf16.msra.mxu0 %v2475
    %2493 = vmatprep.subr.bf16.mxu0 0
    %2494 = vmatpush1.bf16.msra.mxu0 %v2474
    %2495 = vmatprep.subr.bf16.mxu0 0
    %2496 = vmatpush1.bf16.msra.mxu0 %v2473
    %2497 = vmatprep.subr.bf16.mxu0 0
    %2498 = vmatpush2.bf16.msra.mxu0 0
    %2499 = vmatprep.subr.bf16.mxu0 0
    %2500 = vmatpush2.bf16.msra.mxu0 0
    %2501 = vmatprep.subr.bf16.mxu0 0
    %2502 = vmatpush2.bf16.msra.mxu0 0
    %2503 = vmatprep.subr.bf16.mxu0 0
    %2504 = vmatpush2.bf16.msra.mxu0 0
    %2505 = vmatprep.subr.bf16.mxu0 0
    %2506 = vmatpush2.bf16.msra.mxu0 0
    %2507 = vmatprep.subr.bf16.mxu0 0
    %2508 = vmatpush2.bf16.msra.mxu0 0
    %2509 = vmatprep.subr.bf16.mxu0 0
    %2510 = vmatpush2.bf16.msra.mxu0 0
    %2511 = vmatprep.subr.bf16.mxu0 0
    %2512 = vmatpush2.bf16.msra.mxu0 0
    %2513 = vmatprep.mubr.bf16.mxu0 0
    %2514 = vmatmul.mubr.bf16.gmra.mxu0 %v2465
    %v2515 = vpop.f32.mrf.mxu0
    %v2516 = vadd.f32 0.0, %v2515
    %v2517 = vpop.f32.mrf.mxu0
    %v2518 = vpop.f32.mrf.mxu0
    %v2519 = vadd.f32 0.0, %v2518
    %v2520 = vpop.f32.mrf.mxu0
    %2521 = vmatprep.mubr.bf16.mxu0 0
    %2522 = vmatmul.mubr.bf16.gmra.mxu0 %v2466
    %v2523 = vpop.f32.mrf.mxu0
    %v2524 = vadd.f32 0.0, %v2523
    %v2525 = vpop.f32.mrf.mxu0
    %v2526 = vpop.f32.mrf.mxu0
    %v2527 = vadd.f32 0.0, %v2526
    %v2528 = vpop.f32.mrf.mxu0
    %2529 = vmatprep.mubr.bf16.mxu0 0
    %2530 = vmatmul.mubr.bf16.gmra.mxu0 %v2467
    %v2531 = vpop.f32.mrf.mxu0
    %v2532 = vadd.f32 0.0, %v2531
    %v2533 = vpop.f32.mrf.mxu0
    %v2534 = vpop.f32.mrf.mxu0
    %v2535 = vadd.f32 0.0, %v2534
    %v2536 = vpop.f32.mrf.mxu0
    %2537 = vmatprep.mubr.bf16.mxu0 0
    %2538 = vmatmul.mubr.bf16.gmra.mxu0 %v2468
    %v2539 = vpop.f32.mrf.mxu0
    %v2540 = vadd.f32 0.0, %v2539
    %v2541 = vpop.f32.mrf.mxu0
    %v2542 = vpop.f32.mrf.mxu0
    %v2543 = vadd.f32 0.0, %v2542
    %v2544 = vpop.f32.mrf.mxu0
    %2545 = vmatprep.mubr.bf16.mxu0 0
    %2546 = vmatmul.mubr.bf16.gmra.mxu0 %v2469
    %v2547 = vpop.f32.mrf.mxu0
    %v2548 = vadd.f32 0.0, %v2547
    %v2549 = vpop.f32.mrf.mxu0
    %v2550 = vpop.f32.mrf.mxu0
    %v2551 = vadd.f32 0.0, %v2550
    %v2552 = vpop.f32.mrf.mxu0
    %2553 = vmatprep.mubr.bf16.mxu0 0
    %2554 = vmatmul.mubr.bf16.gmra.mxu0 %v2470
    %v2555 = vpop.f32.mrf.mxu0
    %v2556 = vadd.f32 0.0, %v2555
    %v2557 = vpop.f32.mrf.mxu0
    %v2558 = vpop.f32.mrf.mxu0
    %v2559 = vadd.f32 0.0, %v2558
    %v2560 = vpop.f32.mrf.mxu0
    %2561 = vmatprep.mubr.bf16.mxu0 0
    %2562 = vmatmul.mubr.bf16.gmra.mxu0 %v2471
    %v2563 = vpop.f32.mrf.mxu0
    %v2564 = vadd.f32 0.0, %v2563
    %v2565 = vpop.f32.mrf.mxu0
    %v2566 = vpop.f32.mrf.mxu0
    %v2567 = vadd.f32 0.0, %v2566
    %v2568 = vpop.f32.mrf.mxu0
    %2569 = vmatprep.mubr.bf16.mxu0 0
    %2570 = vmatmul.mubr.bf16.gmra.mxu0 %v2472
    %v2571 = vpop.f32.mrf.mxu0
    %v2572 = vadd.f32 0.0, %v2571
    %v2573 = vpop.f32.mrf.mxu0
    %v2574 = vpop.f32.mrf.mxu0
    %v2575 = vadd.f32 0.0, %v2574
    %v2576 = vpop.f32.mrf.mxu0
    %2577 = vdwg.mxu0
    %v2578 = vrcp.pop %v2434
    %v2579 = vrcp.pop %v2436
    %v2580 = vrcp.pop %v2438
    %v2581 = vrcp.pop %v2440
    %v2582 = vrcp.pop %v2442
    %v2583 = vrcp.pop %v2444
    %v2584 = vrcp.pop %v2446
    %v2585 = vrcp.pop %v2448
    %v2586 = vrcp.pop %v2450
    %v2587 = vrcp.pop %v2452
    %v2588 = vrcp.pop %v2454
    %v2589 = vrcp.pop %v2456
    %v2590 = vrcp.pop %v2458
    %v2591 = vrcp.pop %v2460
    %v2592 = vrcp.pop %v2462
    %v2593 = vrcp.pop %v2464
    %v2594 = vmul.f32 %v2516, %v2578
    %v2595 = vmul.f32 %v2519, %v2579
    %v2596 = vmul.f32 %v2524, %v2580
    %v2597 = vmul.f32 %v2527, %v2581
    %v2598 = vmul.f32 %v2532, %v2582
    %v2599 = vmul.f32 %v2535, %v2583
    %v2600 = vmul.f32 %v2540, %v2584
    %v2601 = vmul.f32 %v2543, %v2585
    %v2602 = vmul.f32 %v2548, %v2586
    %v2603 = vmul.f32 %v2551, %v2587
    %v2604 = vmul.f32 %v2556, %v2588
    %v2605 = vmul.f32 %v2559, %v2589
    %v2606 = vmul.f32 %v2564, %v2590
    %v2607 = vmul.f32 %v2567, %v2591
    %v2608 = vmul.f32 %v2572, %v2592
    %v2609 = vmul.f32 %v2575, %v2593
    %v2610 = vpack.c.bf16 %v2595, %v2594
    %v2611 = vpack.c.bf16 %v2597, %v2596
    %v2612 = vpack.c.bf16 %v2599, %v2598
    %v2613 = vpack.c.bf16 %v2601, %v2600
    %v2614 = vpack.c.bf16 %v2603, %v2602
    %v2615 = vpack.c.bf16 %v2605, %v2604
    %v2616 = vpack.c.bf16 %v2607, %v2606
    %v2617 = vpack.c.bf16 %v2609, %v2608
    %v2626 = vunpack.c.l.b16 %v2610
    %v2627 = vunpack.c.h.b16 %v2610
    %v2628 = vunpack.c.l.b16 %v2611
    %v2629 = vunpack.c.h.b16 %v2611
    %v2630 = vunpack.c.l.b16 %v2612
    %v2631 = vunpack.c.h.b16 %v2612
    %v2632 = vunpack.c.l.b16 %v2613
    %v2633 = vunpack.c.h.b16 %v2613
    %v2634 = vunpack.c.l.b16 %v2614
    %v2635 = vunpack.c.h.b16 %v2614
    %v2636 = vunpack.c.l.b16 %v2615
    %v2637 = vunpack.c.h.b16 %v2615
    %v2638 = vunpack.c.l.b16 %v2616
    %v2639 = vunpack.c.h.b16 %v2616
    %v2640 = vunpack.c.l.b16 %v2617
    %v2641 = vunpack.c.h.b16 %v2617
    %v2642 = vpack.c.b16 %v2626, %v2626
    %v2643 = vpack.c.b16 %v2627, %v2627
    %v2644 = vpack.c.b16 %v2628, %v2628
    %v2645 = vpack.c.b16 %v2629, %v2629
    %v2646 = vpack.c.b16 %v2630, %v2630
    %v2647 = vpack.c.b16 %v2631, %v2631
    %v2648 = vpack.c.b16 %v2632, %v2632
    %v2649 = vpack.c.b16 %v2633, %v2633
    %v2650 = vpack.c.b16 %v2634, %v2634
    %v2651 = vpack.c.b16 %v2635, %v2635
    %v2652 = vpack.c.b16 %v2636, %v2636
    %v2653 = vpack.c.b16 %v2637, %v2637
    %v2654 = vpack.c.b16 %v2638, %v2638
    %v2655 = vpack.c.b16 %v2639, %v2639
    %v2656 = vpack.c.b16 %v2640, %v2640
    %v2657 = vpack.c.b16 %v2641, %v2641
    %2674 = vst [vmem:[#allocation2] sm:$0xf] %v2642
    %2675 = vst [vmem:[#allocation2 + $0x8] sm:$0xf] %v2643
    %2676 = vst [vmem:[#allocation2 + $0x10] sm:$0xf] %v2644
    %2677 = vst [vmem:[#allocation2 + $0x18] sm:$0xf] %v2645
    %2678 = vst [vmem:[#allocation2 + $0x20] sm:$0xf] %v2646
    %2679 = vst [vmem:[#allocation2 + $0x28] sm:$0xf] %v2647
    %2680 = vst [vmem:[#allocation2 + $0x30] sm:$0xf] %v2648
    %2681 = vst [vmem:[#allocation2 + $0x38] sm:$0xf] %v2649
    %2682 = vst [vmem:[#allocation2 + $0x40] sm:$0xf] %v2650
    %2683 = vst [vmem:[#allocation2 + $0x48] sm:$0xf] %v2651
    %2684 = vst [vmem:[#allocation2 + $0x50] sm:$0xf] %v2652
    %2685 = vst [vmem:[#allocation2 + $0x58] sm:$0xf] %v2653
    %2686 = vst [vmem:[#allocation2 + $0x60] sm:$0xf] %v2654
    %2687 = vst [vmem:[#allocation2 + $0x68] sm:$0xf] %v2655
    %2688 = vst [vmem:[#allocation2 + $0x70] sm:$0xf] %v2656
    %2689 = vst [vmem:[#allocation2 + $0x78] sm:$0xf] %v2657
    %v2690 = vmul.f32 %v1387, %v1387
    %v2691 = vmul.f32 %v1391, %v1391
    %v2692 = vmul.f32 %v1397, %v1397
    %v2693 = vmul.f32 %v1401, %v1401
    %v2694 = vmul.f32 %v1407, %v1407
    %v2695 = vmul.f32 %v1411, %v1411
    %v2696 = vmul.f32 %v1417, %v1417
    %v2697 = vmul.f32 %v1421, %v1421
    %v2698 = vmul.f32 %v1427, %v1427
    %v2699 = vmul.f32 %v1431, %v1431
    %v2700 = vmul.f32 %v1437, %v1437
    %v2701 = vmul.f32 %v1441, %v1441
    %v2702 = vmul.f32 %v1447, %v1447
    %v2703 = vmul.f32 %v1451, %v1451
    %v2704 = vmul.f32 %v1457, %v1457
    %v2705 = vmul.f32 %v1461, %v1461
    %2706 = vadd.xlane.f32.xlu0 %v2690
    %v2707 = vpop.xlane.xlu0 %2706
    %2708 = vadd.xlane.f32.xlu0 %v2691
    %v2709 = vpop.xlane.xlu0 %2708
    %2710 = vadd.xlane.f32.xlu0 %v2692
    %v2711 = vpop.xlane.xlu0 %2710
    %2712 = vadd.xlane.f32.xlu0 %v2693
    %v2713 = vpop.xlane.xlu0 %2712
    %2714 = vadd.xlane.f32.xlu0 %v2694
    %v2715 = vpop.xlane.xlu0 %2714
    %2716 = vadd.xlane.f32.xlu0 %v2695
    %v2717 = vpop.xlane.xlu0 %2716
    %2718 = vadd.xlane.f32.xlu0 %v2696
    %v2719 = vpop.xlane.xlu0 %2718
    %2720 = vadd.xlane.f32.xlu0 %v2697
    %v2721 = vpop.xlane.xlu0 %2720
    %2722 = vadd.xlane.f32.xlu0 %v2698
    %v2723 = vpop.xlane.xlu0 %2722
    %2724 = vadd.xlane.f32.xlu0 %v2699
    %v2725 = vpop.xlane.xlu0 %2724
    %2726 = vadd.xlane.f32.xlu0 %v2700
    %v2727 = vpop.xlane.xlu0 %2726
    %2728 = vadd.xlane.f32.xlu0 %v2701
    %v2729 = vpop.xlane.xlu0 %2728
    %2730 = vadd.xlane.f32.xlu0 %v2702
    %v2731 = vpop.xlane.xlu0 %2730
    %2732 = vadd.xlane.f32.xlu0 %v2703
    %v2733 = vpop.xlane.xlu0 %2732
    %2734 = vadd.xlane.f32.xlu0 %v2704
    %v2735 = vpop.xlane.xlu0 %2734
    %2736 = vadd.xlane.f32.xlu0 %v2705
    %v2737 = vpop.xlane.xlu0 %2736
    %v2738 = vmul.f32 %v2707, %v1821
    %v2739 = vmul.f32 %v2709, %v1821
    %v2740 = vmul.f32 %v2711, %v1821
    %v2741 = vmul.f32 %v2713, %v1821
    %v2742 = vmul.f32 %v2715, %v1821
    %v2743 = vmul.f32 %v2717, %v1821
    %v2744 = vmul.f32 %v2719, %v1821
    %v2745 = vmul.f32 %v2721, %v1821
    %v2746 = vmul.f32 %v2723, %v1821
    %v2747 = vmul.f32 %v2725, %v1821
    %v2748 = vmul.f32 %v2727, %v1821
    %v2749 = vmul.f32 %v2729, %v1821
    %v2750 = vmul.f32 %v2731, %v1821
    %v2751 = vmul.f32 %v2733, %v1821
    %v2752 = vmul.f32 %v2735, %v1821
    %v2753 = vmul.f32 %v2737, %v1821
    %v2754 = vadd.f32 %v2738, 1.1920929e-07
    %v2755 = vadd.f32 %v2739, 1.1920929e-07
    %v2756 = vadd.f32 %v2740, 1.1920929e-07
    %v2757 = vadd.f32 %v2741, 1.1920929e-07
    %v2758 = vadd.f32 %v2742, 1.1920929e-07
    %v2759 = vadd.f32 %v2743, 1.1920929e-07
    %v2760 = vadd.f32 %v2744, 1.1920929e-07
    %v2761 = vadd.f32 %v2745, 1.1920929e-07
    %v2762 = vadd.f32 %v2746, 1.1920929e-07
    %v2763 = vadd.f32 %v2747, 1.1920929e-07
    %v2764 = vadd.f32 %v2748, 1.1920929e-07
    %v2765 = vadd.f32 %v2749, 1.1920929e-07
    %v2766 = vadd.f32 %v2750, 1.1920929e-07
    %v2767 = vadd.f32 %v2751, 1.1920929e-07
    %v2768 = vadd.f32 %v2752, 1.1920929e-07
    %v2769 = vadd.f32 %v2753, 1.1920929e-07
    %v2770 = vrsqrt.pop %v2754
    %v2771 = vrsqrt.pop %v2755
    %v2772 = vrsqrt.pop %v2756
    %v2773 = vrsqrt.pop %v2757
    %v2774 = vrsqrt.pop %v2758
    %v2775 = vrsqrt.pop %v2759
    %v2776 = vrsqrt.pop %v2760
    %v2777 = vrsqrt.pop %v2761
    %v2778 = vrsqrt.pop %v2762
    %v2779 = vrsqrt.pop %v2763
    %v2780 = vrsqrt.pop %v2764
    %v2781 = vrsqrt.pop %v2765
    %v2782 = vrsqrt.pop %v2766
    %v2783 = vrsqrt.pop %v2767
    %v2784 = vrsqrt.pop %v2768
    %v2785 = vrsqrt.pop %v2769
    %v2786 = vmul.f32 %v2770, 0.12
    %v2787 = vmul.f32 %v2771, 0.12
    %v2788 = vmul.f32 %v2772, 0.12
    %v2789 = vmul.f32 %v2773, 0.12
    %v2790 = vmul.f32 %v2774, 0.12
    %v2791 = vmul.f32 %v2775, 0.12
    %v2792 = vmul.f32 %v2776, 0.12
    %v2793 = vmul.f32 %v2777, 0.12
    %v2794 = vmul.f32 %v2778, 0.12
    %v2795 = vmul.f32 %v2779, 0.12
    %v2796 = vmul.f32 %v2780, 0.12
    %v2797 = vmul.f32 %v2781, 0.12
    %v2798 = vmul.f32 %v2782, 0.12
    %v2799 = vmul.f32 %v2783, 0.12
    %v2800 = vmul.f32 %v2784, 0.12
    %v2801 = vmul.f32 %v2785, 0.12
    %v2802 = vmul.f32 %v1387, %v2786
    %v2803 = vmul.f32 %v1391, %v2787
    %v2804 = vmul.f32 %v1397, %v2788
    %v2805 = vmul.f32 %v1401, %v2789
    %v2806 = vmul.f32 %v1407, %v2790
    %v2807 = vmul.f32 %v1411, %v2791
    %v2808 = vmul.f32 %v1417, %v2792
    %v2809 = vmul.f32 %v1421, %v2793
    %v2810 = vmul.f32 %v1427, %v2794
    %v2811 = vmul.f32 %v1431, %v2795
    %v2812 = vmul.f32 %v1437, %v2796
    %v2813 = vmul.f32 %v1441, %v2797
    %v2814 = vmul.f32 %v1447, %v2798
    %v2815 = vmul.f32 %v1451, %v2799
    %v2816 = vmul.f32 %v1457, %v2800
    %v2817 = vmul.f32 %v1461, %v2801
    %v2818 = vmul.f32 %v1500, %v1500
    %v2819 = vmul.f32 %v1504, %v1504
    %v2820 = vmul.f32 %v1510, %v1510
    %v2821 = vmul.f32 %v1514, %v1514
    %v2822 = vmul.f32 %v1520, %v1520
    %v2823 = vmul.f32 %v1524, %v1524
    %v2824 = vmul.f32 %v1530, %v1530
    %v2825 = vmul.f32 %v1534, %v1534
    %v2826 = vmul.f32 %v1540, %v1540
    %v2827 = vmul.f32 %v1544, %v1544
    %v2828 = vmul.f32 %v1550, %v1550
    %v2829 = vmul.f32 %v1554, %v1554
    %v2830 = vmul.f32 %v1560, %v1560
    %v2831 = vmul.f32 %v1564, %v1564
    %v2832 = vmul.f32 %v1570, %v1570
    %v2833 = vmul.f32 %v1574, %v1574
    %2834 = vadd.xlane.f32.xlu0 %v2818
    %v2835 = vpop.xlane.xlu0 %2834
    %2836 = vadd.xlane.f32.xlu0 %v2819
    %v2837 = vpop.xlane.xlu0 %2836
    %2838 = vadd.xlane.f32.xlu0 %v2820
    %v2839 = vpop.xlane.xlu0 %2838
    %2840 = vadd.xlane.f32.xlu0 %v2821
    %v2841 = vpop.xlane.xlu0 %2840
    %2842 = vadd.xlane.f32.xlu0 %v2822
    %v2843 = vpop.xlane.xlu0 %2842
    %2844 = vadd.xlane.f32.xlu0 %v2823
    %v2845 = vpop.xlane.xlu0 %2844
    %2846 = vadd.xlane.f32.xlu0 %v2824
    %v2847 = vpop.xlane.xlu0 %2846
    %2848 = vadd.xlane.f32.xlu0 %v2825
    %v2849 = vpop.xlane.xlu0 %2848
    %2850 = vadd.xlane.f32.xlu0 %v2826
    %v2851 = vpop.xlane.xlu0 %2850
    %2852 = vadd.xlane.f32.xlu0 %v2827
    %v2853 = vpop.xlane.xlu0 %2852
    %2854 = vadd.xlane.f32.xlu0 %v2828
    %v2855 = vpop.xlane.xlu0 %2854
    %2856 = vadd.xlane.f32.xlu0 %v2829
    %v2857 = vpop.xlane.xlu0 %2856
    %2858 = vadd.xlane.f32.xlu0 %v2830
    %v2859 = vpop.xlane.xlu0 %2858
    %2860 = vadd.xlane.f32.xlu0 %v2831
    %v2861 = vpop.xlane.xlu0 %2860
    %2862 = vadd.xlane.f32.xlu0 %v2832
    %v2863 = vpop.xlane.xlu0 %2862
    %2864 = vadd.xlane.f32.xlu0 %v2833
    %v2865 = vpop.xlane.xlu0 %2864
    %v2866 = vmul.f32 %v2835, %v1821
    %v2867 = vmul.f32 %v2837, %v1821
    %v2868 = vmul.f32 %v2839, %v1821
    %v2869 = vmul.f32 %v2841, %v1821
    %v2870 = vmul.f32 %v2843, %v1821
    %v2871 = vmul.f32 %v2845, %v1821
    %v2872 = vmul.f32 %v2847, %v1821
    %v2873 = vmul.f32 %v2849, %v1821
    %v2874 = vmul.f32 %v2851, %v1821
    %v2875 = vmul.f32 %v2853, %v1821
    %v2876 = vmul.f32 %v2855, %v1821
    %v2877 = vmul.f32 %v2857, %v1821
    %v2878 = vmul.f32 %v2859, %v1821
    %v2879 = vmul.f32 %v2861, %v1821
    %v2880 = vmul.f32 %v2863, %v1821
    %v2881 = vmul.f32 %v2865, %v1821
    %v2882 = vadd.f32 %v2866, 1.1920929e-07
    %v2883 = vadd.f32 %v2867, 1.1920929e-07
    %v2884 = vadd.f32 %v2868, 1.1920929e-07
    %v2885 = vadd.f32 %v2869, 1.1920929e-07
    %v2886 = vadd.f32 %v2870, 1.1920929e-07
    %v2887 = vadd.f32 %v2871, 1.1920929e-07
    %v2888 = vadd.f32 %v2872, 1.1920929e-07
    %v2889 = vadd.f32 %v2873, 1.1920929e-07
    %v2890 = vadd.f32 %v2874, 1.1920929e-07
    %v2891 = vadd.f32 %v2875, 1.1920929e-07
    %v2892 = vadd.f32 %v2876, 1.1920929e-07
    %v2893 = vadd.f32 %v2877, 1.1920929e-07
    %v2894 = vadd.f32 %v2878, 1.1920929e-07
    %v2895 = vadd.f32 %v2879, 1.1920929e-07
    %v2896 = vadd.f32 %v2880, 1.1920929e-07
    %v2897 = vadd.f32 %v2881, 1.1920929e-07
    %v2898 = vrsqrt.pop %v2882
    %v2899 = vrsqrt.pop %v2883
    %v2900 = vrsqrt.pop %v2884
    %v2901 = vrsqrt.pop %v2885
    %v2902 = vrsqrt.pop %v2886
    %v2903 = vrsqrt.pop %v2887
    %v2904 = vrsqrt.pop %v2888
    %v2905 = vrsqrt.pop %v2889
    %v2906 = vrsqrt.pop %v2890
    %v2907 = vrsqrt.pop %v2891
    %v2908 = vrsqrt.pop %v2892
    %v2909 = vrsqrt.pop %v2893
    %v2910 = vrsqrt.pop %v2894
    %v2911 = vrsqrt.pop %v2895
    %v2912 = vrsqrt.pop %v2896
    %v2913 = vrsqrt.pop %v2897
    %v2914 = vmul.f32 %v1500, %v2898
    %v2915 = vmul.f32 %v1504, %v2899
    %v2916 = vmul.f32 %v1510, %v2900
    %v2917 = vmul.f32 %v1514, %v2901
    %v2918 = vmul.f32 %v1520, %v2902
    %v2919 = vmul.f32 %v1524, %v2903
    %v2920 = vmul.f32 %v1530, %v2904
    %v2921 = vmul.f32 %v1534, %v2905
    %v2922 = vmul.f32 %v1540, %v2906
    %v2923 = vmul.f32 %v1544, %v2907
    %v2924 = vmul.f32 %v1550, %v2908
    %v2925 = vmul.f32 %v1554, %v2909
    %v2926 = vmul.f32 %v1560, %v2910
    %v2927 = vmul.f32 %v1564, %v2911
    %v2928 = vmul.f32 %v1570, %v2912
    %v2929 = vmul.f32 %v1574, %v2913
    %v2930 = vmul.f32 %v2802, %v1689
    %v2931 = vmul.f32 %v2803, %v1690
    %v2932 = vmul.f32 %v2804, %v1691
    %v2933 = vmul.f32 %v2805, %v1692
    %v2934 = vmul.f32 %v2806, %v1693
    %v2935 = vmul.f32 %v2807, %v1694
    %v2936 = vmul.f32 %v2808, %v1695
    %v2937 = vmul.f32 %v2809, %v1696
    %v2938 = vmul.f32 %v2810, %v1697
    %v2939 = vmul.f32 %v2811, %v1698
    %v2940 = vmul.f32 %v2812, %v1699
    %v2941 = vmul.f32 %v2813, %v1700
    %v2942 = vmul.f32 %v2814, %v1701
    %v2943 = vmul.f32 %v2815, %v1702
    %v2944 = vmul.f32 %v2816, %v1703
    %v2945 = vmul.f32 %v2817, %v1704
    %2946 = vrot.lane.b32.xlu0 %v2802, 64
    %v2947 = vpop.permute.xlu0 %2946
    %2948 = vrot.lane.b32.xlu0 %v2803, 64
    %v2949 = vpop.permute.xlu0 %2948
    %2950 = vrot.lane.b32.xlu0 %v2804, 64
    %v2951 = vpop.permute.xlu0 %2950
    %2952 = vrot.lane.b32.xlu0 %v2805, 64
    %v2953 = vpop.permute.xlu0 %2952
    %2954 = vrot.lane.b32.xlu0 %v2806, 64
    %v2955 = vpop.permute.xlu0 %2954
    %2956 = vrot.lane.b32.xlu0 %v2807, 64
    %v2957 = vpop.permute.xlu0 %2956
    %2958 = vrot.lane.b32.xlu0 %v2808, 64
    %v2959 = vpop.permute.xlu0 %2958
    %2960 = vrot.lane.b32.xlu0 %v2809, 64
    %v2961 = vpop.permute.xlu0 %2960
    %2962 = vrot.lane.b32.xlu0 %v2810, 64
    %v2963 = vpop.permute.xlu0 %2962
    %2964 = vrot.lane.b32.xlu0 %v2811, 64
    %v2965 = vpop.permute.xlu0 %2964
    %2966 = vrot.lane.b32.xlu0 %v2812, 64
    %v2967 = vpop.permute.xlu0 %2966
    %2968 = vrot.lane.b32.xlu0 %v2813, 64
    %v2969 = vpop.permute.xlu0 %2968
    %2970 = vrot.lane.b32.xlu0 %v2814, 64
    %v2971 = vpop.permute.xlu0 %2970
    %2972 = vrot.lane.b32.xlu0 %v2815, 64
    %v2973 = vpop.permute.xlu0 %2972
    %2974 = vrot.lane.b32.xlu0 %v2816, 64
    %v2975 = vpop.permute.xlu0 %2974
    %2976 = vrot.lane.b32.xlu0 %v2817, 64
    %v2977 = vpop.permute.xlu0 %2976
    %v2978 = vmul.f32 %v2947, %v1705
    %v2979 = vmul.f32 %v2949, %v1706
    %v2980 = vmul.f32 %v2951, %v1707
    %v2981 = vmul.f32 %v2953, %v1708
    %v2982 = vmul.f32 %v2955, %v1709
    %v2983 = vmul.f32 %v2957, %v1710
    %v2984 = vmul.f32 %v2959, %v1711
    %v2985 = vmul.f32 %v2961, %v1712
    %v2986 = vmul.f32 %v2963, %v1713
    %v2987 = vmul.f32 %v2965, %v1714
    %v2988 = vmul.f32 %v2967, %v1715
    %v2989 = vmul.f32 %v2969, %v1716
    %v2990 = vmul.f32 %v2971, %v1717
    %v2991 = vmul.f32 %v2973, %v1718
    %v2992 = vmul.f32 %v2975, %v1719
    %v2993 = vmul.f32 %v2977, %v1720
    %v2994 = vadd.f32 %v2930, %v2978
    %v2995 = vadd.f32 %v2931, %v2979
    %v2996 = vadd.f32 %v2932, %v2980
    %v2997 = vadd.f32 %v2933, %v2981
    %v2998 = vadd.f32 %v2934, %v2982
    %v2999 = vadd.f32 %v2935, %v2983
    %v3000 = vadd.f32 %v2936, %v2984
    %v3001 = vadd.f32 %v2937, %v2985
    %v3002 = vadd.f32 %v2938, %v2986
    %v3003 = vadd.f32 %v2939, %v2987
    %v3004 = vadd.f32 %v2940, %v2988
    %v3005 = vadd.f32 %v2941, %v2989
    %v3006 = vadd.f32 %v2942, %v2990
    %v3007 = vadd.f32 %v2943, %v2991
    %v3008 = vadd.f32 %v2944, %v2992
    %v3009 = vadd.f32 %v2945, %v2993
    %v3010 = vmul.f32 %v2914, %v1689
    %v3011 = vmul.f32 %v2915, %v1690
    %v3012 = vmul.f32 %v2916, %v1691
    %v3013 = vmul.f32 %v2917, %v1692
    %v3014 = vmul.f32 %v2918, %v1693
    %v3015 = vmul.f32 %v2919, %v1694
    %v3016 = vmul.f32 %v2920, %v1695
    %v3017 = vmul.f32 %v2921, %v1696
    %v3018 = vmul.f32 %v2922, %v1697
    %v3019 = vmul.f32 %v2923, %v1698
    %v3020 = vmul.f32 %v2924, %v1699
    %v3021 = vmul.f32 %v2925, %v1700
    %v3022 = vmul.f32 %v2926, %v1701
    %v3023 = vmul.f32 %v2927, %v1702
    %v3024 = vmul.f32 %v2928, %v1703
    %v3025 = vmul.f32 %v2929, %v1704
    %3026 = vrot.lane.b32.xlu0 %v2914, 64
    %v3027 = vpop.permute.xlu0 %3026
    %3028 = vrot.lane.b32.xlu0 %v2915, 64
    %v3029 = vpop.permute.xlu0 %3028
    %3030 = vrot.lane.b32.xlu0 %v2916, 64
    %v3031 = vpop.permute.xlu0 %3030
    %3032 = vrot.lane.b32.xlu0 %v2917, 64
    %v3033 = vpop.permute.xlu0 %3032
    %3034 = vrot.lane.b32.xlu0 %v2918, 64
    %v3035 = vpop.permute.xlu0 %3034
    %3036 = vrot.lane.b32.xlu0 %v2919, 64
    %v3037 = vpop.permute.xlu0 %3036
    %3038 = vrot.lane.b32.xlu0 %v2920, 64
    %v3039 = vpop.permute.xlu0 %3038
    %3040 = vrot.lane.b32.xlu0 %v2921, 64
    %v3041 = vpop.permute.xlu0 %3040
    %3042 = vrot.lane.b32.xlu0 %v2922, 64
    %v3043 = vpop.permute.xlu0 %3042
    %3044 = vrot.lane.b32.xlu0 %v2923, 64
    %v3045 = vpop.permute.xlu0 %3044
    %3046 = vrot.lane.b32.xlu0 %v2924, 64
    %v3047 = vpop.permute.xlu0 %3046
    %3048 = vrot.lane.b32.xlu0 %v2925, 64
    %v3049 = vpop.permute.xlu0 %3048
    %3050 = vrot.lane.b32.xlu0 %v2926, 64
    %v3051 = vpop.permute.xlu0 %3050
    %3052 = vrot.lane.b32.xlu0 %v2927, 64
    %v3053 = vpop.permute.xlu0 %3052
    %3054 = vrot.lane.b32.xlu0 %v2928, 64
    %v3055 = vpop.permute.xlu0 %3054
    %3056 = vrot.lane.b32.xlu0 %v2929, 64
    %v3057 = vpop.permute.xlu0 %3056
    %v3058 = vmul.f32 %v3027, %v1705
    %v3059 = vmul.f32 %v3029, %v1706
    %v3060 = vmul.f32 %v3031, %v1707
    %v3061 = vmul.f32 %v3033, %v1708
    %v3062 = vmul.f32 %v3035, %v1709
    %v3063 = vmul.f32 %v3037, %v1710
    %v3064 = vmul.f32 %v3039, %v1711
    %v3065 = vmul.f32 %v3041, %v1712
    %v3066 = vmul.f32 %v3043, %v1713
    %v3067 = vmul.f32 %v3045, %v1714
    %v3068 = vmul.f32 %v3047, %v1715
    %v3069 = vmul.f32 %v3049, %v1716
    %v3070 = vmul.f32 %v3051, %v1717
    %v3071 = vmul.f32 %v3053, %v1718
    %v3072 = vmul.f32 %v3055, %v1719
    %v3073 = vmul.f32 %v3057, %v1720
    %v3074 = vadd.f32 %v3010, %v3058
    %v3075 = vadd.f32 %v3011, %v3059
    %v3076 = vadd.f32 %v3012, %v3060
    %v3077 = vadd.f32 %v3013, %v3061
    %v3078 = vadd.f32 %v3014, %v3062
    %v3079 = vadd.f32 %v3015, %v3063
    %v3080 = vadd.f32 %v3016, %v3064
    %v3081 = vadd.f32 %v3017, %v3065
    %v3082 = vadd.f32 %v3018, %v3066
    %v3083 = vadd.f32 %v3019, %v3067
    %v3084 = vadd.f32 %v3020, %v3068
    %v3085 = vadd.f32 %v3021, %v3069
    %v3086 = vadd.f32 %v3022, %v3070
    %v3087 = vadd.f32 %v3023, %v3071
    %v3088 = vadd.f32 %v3024, %v3072
    %v3089 = vadd.f32 %v3025, %v3073
    %v3090 = vmul.f32 %v2174, %v1613
    %v3091 = vmul.f32 %v2174, %v1617
    %v3092 = vmul.f32 %v2174, %v1623
    %v3093 = vmul.f32 %v2174, %v1627
    %v3094 = vmul.f32 %v2174, %v1633
    %v3095 = vmul.f32 %v2174, %v1637
    %v3096 = vmul.f32 %v2174, %v1643
    %v3097 = vmul.f32 %v2174, %v1647
    %v3098 = vmul.f32 %v2174, %v1653
    %v3099 = vmul.f32 %v2174, %v1657
    %v3100 = vmul.f32 %v2174, %v1663
    %v3101 = vmul.f32 %v2174, %v1667
    %v3102 = vmul.f32 %v2174, %v1673
    %v3103 = vmul.f32 %v2174, %v1677
    %v3104 = vmul.f32 %v2174, %v1683
    %v3105 = vmul.f32 %v2174, %v1687
    %v3106 = vmul.f32 %v2191, %v1722
    %v3107 = vmul.f32 %v2191, %v1724
    %v3108 = vmul.f32 %v2191, %v1726
    %v3109 = vmul.f32 %v2191, %v1728
    %v3110 = vmul.f32 %v2191, %v1730
    %v3111 = vmul.f32 %v2191, %v1732
    %v3112 = vmul.f32 %v2191, %v1734
    %v3113 = vmul.f32 %v2191, %v1736
    %v3114 = vmul.f32 %v2191, %v1738
    %v3115 = vmul.f32 %v2191, %v1740
    %v3116 = vmul.f32 %v2191, %v1742
    %v3117 = vmul.f32 %v2191, %v1744
    %v3118 = vmul.f32 %v2191, %v1746
    %v3119 = vmul.f32 %v2191, %v1748
    %v3120 = vmul.f32 %v2191, %v1750
    %v3121 = vmul.f32 %v2191, %v1752
    %v3122 = vadd.f32 %v3090, %v3106
    %v3123 = vadd.f32 %v3091, %v3107
    %v3124 = vadd.f32 %v3092, %v3108
    %v3125 = vadd.f32 %v3093, %v3109
    %v3126 = vadd.f32 %v3094, %v3110
    %v3127 = vadd.f32 %v3095, %v3111
    %v3128 = vadd.f32 %v3096, %v3112
    %v3129 = vadd.f32 %v3097, %v3113
    %v3130 = vadd.f32 %v3098, %v3114
    %v3131 = vadd.f32 %v3099, %v3115
    %v3132 = vadd.f32 %v3100, %v3116
    %v3133 = vadd.f32 %v3101, %v3117
    %v3134 = vadd.f32 %v3102, %v3118
    %v3135 = vadd.f32 %v3103, %v3119
    %v3136 = vadd.f32 %v3104, %v3120
    %v3137 = vadd.f32 %v3105, %v3121
    %v3138 = vpack.c.bf16 %v2995, %v2994
    %v3139 = vpack.c.bf16 %v2997, %v2996
    %v3140 = vpack.c.bf16 %v2999, %v2998
    %v3141 = vpack.c.bf16 %v3001, %v3000
    %v3142 = vpack.c.bf16 %v3003, %v3002
    %v3143 = vpack.c.bf16 %v3005, %v3004
    %v3144 = vpack.c.bf16 %v3007, %v3006
    %v3145 = vpack.c.bf16 %v3009, %v3008
    %v3146 = vpack.c.bf16 %v3075, %v3074
    %v3147 = vpack.c.bf16 %v3077, %v3076
    %v3148 = vpack.c.bf16 %v3079, %v3078
    %v3149 = vpack.c.bf16 %v3081, %v3080
    %v3150 = vpack.c.bf16 %v3083, %v3082
    %v3151 = vpack.c.bf16 %v3085, %v3084
    %v3152 = vpack.c.bf16 %v3087, %v3086
    %v3153 = vpack.c.bf16 %v3089, %v3088
    %3154 = vmatprep.subr.bf16.mxu0 0
    %3155 = vmatpush1.bf16.xpose.msra.mxu0 %v3153
    %3156 = vmatprep.subr.bf16.mxu0 0
    %3157 = vmatpush1.bf16.xpose.msra.mxu0 %v3152
    %3158 = vmatprep.subr.bf16.mxu0 0
    %3159 = vmatpush1.bf16.xpose.msra.mxu0 %v3151
    %3160 = vmatprep.subr.bf16.mxu0 0
    %3161 = vmatpush1.bf16.xpose.msra.mxu0 %v3150
    %3162 = vmatprep.subr.bf16.mxu0 0
    %3163 = vmatpush1.bf16.xpose.msra.mxu0 %v3149
    %3164 = vmatprep.subr.bf16.mxu0 0
    %3165 = vmatpush1.bf16.xpose.msra.mxu0 %v3148
    %3166 = vmatprep.subr.bf16.mxu0 0
    %3167 = vmatpush1.bf16.xpose.msra.mxu0 %v3147
    %3168 = vmatprep.subr.bf16.mxu0 0
    %3169 = vmatpush1.bf16.xpose.msra.mxu0 %v3146
    %3170 = vmatprep.subr.bf16.mxu0 0
    %3171 = vmatpush2.bf16.xpose.msra.mxu0 0
    %3172 = vmatprep.subr.bf16.mxu0 0
    %3173 = vmatpush2.bf16.xpose.msra.mxu0 0
    %3174 = vmatprep.subr.bf16.mxu0 0
    %3175 = vmatpush2.bf16.xpose.msra.mxu0 0
    %3176 = vmatprep.subr.bf16.mxu0 0
    %3177 = vmatpush2.bf16.xpose.msra.mxu0 0
    %3178 = vmatprep.subr.bf16.mxu0 0
    %3179 = vmatpush2.bf16.xpose.msra.mxu0 0
    %3180 = vmatprep.subr.bf16.mxu0 0
    %3181 = vmatpush2.bf16.xpose.msra.mxu0 0
    %3182 = vmatprep.subr.bf16.mxu0 0
    %3183 = vmatpush2.bf16.xpose.msra.mxu0 0
    %3184 = vmatprep.subr.bf16.mxu0 0
    %3185 = vmatpush2.bf16.xpose.msra.mxu0 0
    %3186 = vmatprep.mubr.bf16.mxu0 0
    %3187 = vmatmul.mubr.bf16.gmra.mxu0 %v3138
    %v3188 = vpop.f32.mrf.mxu0
    %v3189 = vadd.f32 0.0, %v3188
    %v3190 = vpop.f32.mrf.mxu0
    %v3191 = vpop.f32.mrf.mxu0
    %v3192 = vadd.f32 0.0, %v3191
    %v3193 = vpop.f32.mrf.mxu0
    %3194 = vmatprep.mubr.bf16.mxu0 0
    %3195 = vmatmul.mubr.bf16.gmra.mxu0 %v3139
    %v3196 = vpop.f32.mrf.mxu0
    %v3197 = vadd.f32 0.0, %v3196
    %v3198 = vpop.f32.mrf.mxu0
    %v3199 = vpop.f32.mrf.mxu0
    %v3200 = vadd.f32 0.0, %v3199
    %v3201 = vpop.f32.mrf.mxu0
    %3202 = vmatprep.mubr.bf16.mxu0 0
    %3203 = vmatmul.mubr.bf16.gmra.mxu0 %v3140
    %v3204 = vpop.f32.mrf.mxu0
    %v3205 = vadd.f32 0.0, %v3204
    %v3206 = vpop.f32.mrf.mxu0
    %v3207 = vpop.f32.mrf.mxu0
    %v3208 = vadd.f32 0.0, %v3207
    %v3209 = vpop.f32.mrf.mxu0
    %3210 = vmatprep.mubr.bf16.mxu0 0
    %3211 = vmatmul.mubr.bf16.gmra.mxu0 %v3141
    %v3212 = vpop.f32.mrf.mxu0
    %v3213 = vadd.f32 0.0, %v3212
    %v3214 = vpop.f32.mrf.mxu0
    %v3215 = vpop.f32.mrf.mxu0
    %v3216 = vadd.f32 0.0, %v3215
    %v3217 = vpop.f32.mrf.mxu0
    %3218 = vmatprep.mubr.bf16.mxu0 0
    %3219 = vmatmul.mubr.bf16.gmra.mxu0 %v3142
    %v3220 = vpop.f32.mrf.mxu0
    %v3221 = vadd.f32 0.0, %v3220
    %v3222 = vpop.f32.mrf.mxu0
    %v3223 = vpop.f32.mrf.mxu0
    %v3224 = vadd.f32 0.0, %v3223
    %v3225 = vpop.f32.mrf.mxu0
    %3226 = vmatprep.mubr.bf16.mxu0 0
    %3227 = vmatmul.mubr.bf16.gmra.mxu0 %v3143
    %v3228 = vpop.f32.mrf.mxu0
    %v3229 = vadd.f32 0.0, %v3228
    %v3230 = vpop.f32.mrf.mxu0
    %v3231 = vpop.f32.mrf.mxu0
    %v3232 = vadd.f32 0.0, %v3231
    %v3233 = vpop.f32.mrf.mxu0
    %3234 = vmatprep.mubr.bf16.mxu0 0
    %3235 = vmatmul.mubr.bf16.gmra.mxu0 %v3144
    %v3236 = vpop.f32.mrf.mxu0
    %v3237 = vadd.f32 0.0, %v3236
    %v3238 = vpop.f32.mrf.mxu0
    %v3239 = vpop.f32.mrf.mxu0
    %v3240 = vadd.f32 0.0, %v3239
    %v3241 = vpop.f32.mrf.mxu0
    %3242 = vmatprep.mubr.bf16.mxu0 0
    %3243 = vmatmul.mubr.bf16.gmra.mxu0 %v3145
    %v3244 = vpop.f32.mrf.mxu0
    %v3245 = vadd.f32 0.0, %v3244
    %v3246 = vpop.f32.mrf.mxu0
    %v3247 = vpop.f32.mrf.mxu0
    %v3248 = vadd.f32 0.0, %v3247
    %v3249 = vpop.f32.mrf.mxu0
    %3250 = vdwg.mxu0
    %3251 = vmax.xlane.f32.xlu0 %v3189
    %v3252 = vpop.xlane.xlu0 %3251
    %3253 = vmax.xlane.f32.xlu0 %v3192
    %v3254 = vpop.xlane.xlu0 %3253
    %3255 = vmax.xlane.f32.xlu0 %v3197
    %v3256 = vpop.xlane.xlu0 %3255
    %3257 = vmax.xlane.f32.xlu0 %v3200
    %v3258 = vpop.xlane.xlu0 %3257
    %3259 = vmax.xlane.f32.xlu0 %v3205
    %v3260 = vpop.xlane.xlu0 %3259
    %3261 = vmax.xlane.f32.xlu0 %v3208
    %v3262 = vpop.xlane.xlu0 %3261
    %3263 = vmax.xlane.f32.xlu0 %v3213
    %v3264 = vpop.xlane.xlu0 %3263
    %3265 = vmax.xlane.f32.xlu0 %v3216
    %v3266 = vpop.xlane.xlu0 %3265
    %3267 = vmax.xlane.f32.xlu0 %v3221
    %v3268 = vpop.xlane.xlu0 %3267
    %3269 = vmax.xlane.f32.xlu0 %v3224
    %v3270 = vpop.xlane.xlu0 %3269
    %3271 = vmax.xlane.f32.xlu0 %v3229
    %v3272 = vpop.xlane.xlu0 %3271
    %3273 = vmax.xlane.f32.xlu0 %v3232
    %v3274 = vpop.xlane.xlu0 %3273
    %3275 = vmax.xlane.f32.xlu0 %v3237
    %v3276 = vpop.xlane.xlu0 %3275
    %3277 = vmax.xlane.f32.xlu0 %v3240
    %v3278 = vpop.xlane.xlu0 %3277
    %3279 = vmax.xlane.f32.xlu0 %v3245
    %v3280 = vpop.xlane.xlu0 %3279
    %3281 = vmax.xlane.f32.xlu0 %v3248
    %v3282 = vpop.xlane.xlu0 %3281
    %v3283 = vsub.f32 %v3189, %v3252
    %v3284 = vsub.f32 %v3192, %v3254
    %v3285 = vsub.f32 %v3197, %v3256
    %v3286 = vsub.f32 %v3200, %v3258
    %v3287 = vsub.f32 %v3205, %v3260
    %v3288 = vsub.f32 %v3208, %v3262
    %v3289 = vsub.f32 %v3213, %v3264
    %v3290 = vsub.f32 %v3216, %v3266
    %v3291 = vsub.f32 %v3221, %v3268
    %v3292 = vsub.f32 %v3224, %v3270
    %v3293 = vsub.f32 %v3229, %v3272
    %v3294 = vsub.f32 %v3232, %v3274
    %v3295 = vsub.f32 %v3237, %v3276
    %v3296 = vsub.f32 %v3240, %v3278
    %v3297 = vsub.f32 %v3245, %v3280
    %v3298 = vsub.f32 %v3248, %v3282
    %v3299 = vmul.f32 %v3283, 1.442695
    %v3300 = vpow.pop %v3299
    %v3301 = vmul.f32 %v3284, 1.442695
    %v3302 = vpow.pop %v3301
    %v3303 = vmul.f32 %v3285, 1.442695
    %v3304 = vpow.pop %v3303
    %v3305 = vmul.f32 %v3286, 1.442695
    %v3306 = vpow.pop %v3305
    %v3307 = vmul.f32 %v3287, 1.442695
    %v3308 = vpow.pop %v3307
    %v3309 = vmul.f32 %v3288, 1.442695
    %v3310 = vpow.pop %v3309
    %v3311 = vmul.f32 %v3289, 1.442695
    %v3312 = vpow.pop %v3311
    %v3313 = vmul.f32 %v3290, 1.442695
    %v3314 = vpow.pop %v3313
    %v3315 = vmul.f32 %v3291, 1.442695
    %v3316 = vpow.pop %v3315
    %v3317 = vmul.f32 %v3292, 1.442695
    %v3318 = vpow.pop %v3317
    %v3319 = vmul.f32 %v3293, 1.442695
    %v3320 = vpow.pop %v3319
    %v3321 = vmul.f32 %v3294, 1.442695
    %v3322 = vpow.pop %v3321
    %v3323 = vmul.f32 %v3295, 1.442695
    %v3324 = vpow.pop %v3323
    %v3325 = vmul.f32 %v3296, 1.442695
    %v3326 = vpow.pop %v3325
    %v3327 = vmul.f32 %v3297, 1.442695
    %v3328 = vpow.pop %v3327
    %v3329 = vmul.f32 %v3298, 1.442695
    %v3330 = vpow.pop %v3329
    %v3331 = vsel %vm1757, %v3300, 0.0
    %v3332 = vsel %vm1758, %v3302, 0.0
    %v3333 = vsel %vm1759, %v3304, 0.0
    %v3334 = vsel %vm1760, %v3306, 0.0
    %v3335 = vsel %vm1761, %v3308, 0.0
    %v3336 = vsel %vm1762, %v3310, 0.0
    %v3337 = vsel %vm1763, %v3312, 0.0
    %v3338 = vsel %vm1764, %v3314, 0.0
    %v3339 = vsel %vm1765, %v3316, 0.0
    %v3340 = vsel %vm1766, %v3318, 0.0
    %v3341 = vsel %vm1767, %v3320, 0.0
    %v3342 = vsel %vm1768, %v3322, 0.0
    %v3343 = vsel %vm1769, %v3324, 0.0
    %v3344 = vsel %vm1770, %v3326, 0.0
    %v3345 = vsel %vm1771, %v3328, 0.0
    %v3346 = vsel %vm1772, %v3330, 0.0
    %3347 = vadd.xlane.f32.xlu0 %v3331
    %v3348 = vpop.xlane.xlu0 %3347
    %3349 = vadd.xlane.f32.xlu0 %v3332
    %v3350 = vpop.xlane.xlu0 %3349
    %3351 = vadd.xlane.f32.xlu0 %v3333
    %v3352 = vpop.xlane.xlu0 %3351
    %3353 = vadd.xlane.f32.xlu0 %v3334
    %v3354 = vpop.xlane.xlu0 %3353
    %3355 = vadd.xlane.f32.xlu0 %v3335
    %v3356 = vpop.xlane.xlu0 %3355
    %3357 = vadd.xlane.f32.xlu0 %v3336
    %v3358 = vpop.xlane.xlu0 %3357
    %3359 = vadd.xlane.f32.xlu0 %v3337
    %v3360 = vpop.xlane.xlu0 %3359
    %3361 = vadd.xlane.f32.xlu0 %v3338
    %v3362 = vpop.xlane.xlu0 %3361
    %3363 = vadd.xlane.f32.xlu0 %v3339
    %v3364 = vpop.xlane.xlu0 %3363
    %3365 = vadd.xlane.f32.xlu0 %v3340
    %v3366 = vpop.xlane.xlu0 %3365
    %3367 = vadd.xlane.f32.xlu0 %v3341
    %v3368 = vpop.xlane.xlu0 %3367
    %3369 = vadd.xlane.f32.xlu0 %v3342
    %v3370 = vpop.xlane.xlu0 %3369
    %3371 = vadd.xlane.f32.xlu0 %v3343
    %v3372 = vpop.xlane.xlu0 %3371
    %3373 = vadd.xlane.f32.xlu0 %v3344
    %v3374 = vpop.xlane.xlu0 %3373
    %3375 = vadd.xlane.f32.xlu0 %v3345
    %v3376 = vpop.xlane.xlu0 %3375
    %3377 = vadd.xlane.f32.xlu0 %v3346
    %v3378 = vpop.xlane.xlu0 %3377
    %v3379 = vpack.c.bf16 %v3332, %v3331
    %v3380 = vpack.c.bf16 %v3334, %v3333
    %v3381 = vpack.c.bf16 %v3336, %v3335
    %v3382 = vpack.c.bf16 %v3338, %v3337
    %v3383 = vpack.c.bf16 %v3340, %v3339
    %v3384 = vpack.c.bf16 %v3342, %v3341
    %v3385 = vpack.c.bf16 %v3344, %v3343
    %v3386 = vpack.c.bf16 %v3346, %v3345
    %v3387 = vpack.c.bf16 %v3123, %v3122
    %v3388 = vpack.c.bf16 %v3125, %v3124
    %v3389 = vpack.c.bf16 %v3127, %v3126
    %v3390 = vpack.c.bf16 %v3129, %v3128
    %v3391 = vpack.c.bf16 %v3131, %v3130
    %v3392 = vpack.c.bf16 %v3133, %v3132
    %v3393 = vpack.c.bf16 %v3135, %v3134
    %v3394 = vpack.c.bf16 %v3137, %v3136
    %3395 = vmatprep.subr.bf16.mxu0 0
    %3396 = vmatpush1.bf16.msra.mxu0 %v3394
    %3397 = vmatprep.subr.bf16.mxu0 0
    %3398 = vmatpush1.bf16.msra.mxu0 %v3393
    %3399 = vmatprep.subr.bf16.mxu0 0
    %3400 = vmatpush1.bf16.msra.mxu0 %v3392
    %3401 = vmatprep.subr.bf16.mxu0 0
    %3402 = vmatpush1.bf16.msra.mxu0 %v3391
    %3403 = vmatprep.subr.bf16.mxu0 0
    %3404 = vmatpush1.bf16.msra.mxu0 %v3390
    %3405 = vmatprep.subr.bf16.mxu0 0
    %3406 = vmatpush1.bf16.msra.mxu0 %v3389
    %3407 = vmatprep.subr.bf16.mxu0 0
    %3408 = vmatpush1.bf16.msra.mxu0 %v3388
    %3409 = vmatprep.subr.bf16.mxu0 0
    %3410 = vmatpush1.bf16.msra.mxu0 %v3387
    %3411 = vmatprep.subr.bf16.mxu0 0
    %3412 = vmatpush2.bf16.msra.mxu0 0
    %3413 = vmatprep.subr.bf16.mxu0 0
    %3414 = vmatpush2.bf16.msra.mxu0 0
    %3415 = vmatprep.subr.bf16.mxu0 0
    %3416 = vmatpush2.bf16.msra.mxu0 0
    %3417 = vmatprep.subr.bf16.mxu0 0
    %3418 = vmatpush2.bf16.msra.mxu0 0
    %3419 = vmatprep.subr.bf16.mxu0 0
    %3420 = vmatpush2.bf16.msra.mxu0 0
    %3421 = vmatprep.subr.bf16.mxu0 0
    %3422 = vmatpush2.bf16.msra.mxu0 0
    %3423 = vmatprep.subr.bf16.mxu0 0
    %3424 = vmatpush2.bf16.msra.mxu0 0
    %3425 = vmatprep.subr.bf16.mxu0 0
    %3426 = vmatpush2.bf16.msra.mxu0 0
    %3427 = vmatprep.mubr.bf16.mxu0 0
    %3428 = vmatmul.mubr.bf16.gmra.mxu0 %v3379
    %v3429 = vpop.f32.mrf.mxu0
    %v3430 = vadd.f32 0.0, %v3429
    %v3431 = vpop.f32.mrf.mxu0
    %v3432 = vpop.f32.mrf.mxu0
    %v3433 = vadd.f32 0.0, %v3432
    %v3434 = vpop.f32.mrf.mxu0
    %3435 = vmatprep.mubr.bf16.mxu0 0
    %3436 = vmatmul.mubr.bf16.gmra.mxu0 %v3380
    %v3437 = vpop.f32.mrf.mxu0
    %v3438 = vadd.f32 0.0, %v3437
    %v3439 = vpop.f32.mrf.mxu0
    %v3440 = vpop.f32.mrf.mxu0
    %v3441 = vadd.f32 0.0, %v3440
    %v3442 = vpop.f32.mrf.mxu0
    %3443 = vmatprep.mubr.bf16.mxu0 0
    %3444 = vmatmul.mubr.bf16.gmra.mxu0 %v3381
    %v3445 = vpop.f32.mrf.mxu0
    %v3446 = vadd.f32 0.0, %v3445
    %v3447 = vpop.f32.mrf.mxu0
    %v3448 = vpop.f32.mrf.mxu0
    %v3449 = vadd.f32 0.0, %v3448
    %v3450 = vpop.f32.mrf.mxu0
    %3451 = vmatprep.mubr.bf16.mxu0 0
    %3452 = vmatmul.mubr.bf16.gmra.mxu0 %v3382
    %v3453 = vpop.f32.mrf.mxu0
    %v3454 = vadd.f32 0.0, %v3453
    %v3455 = vpop.f32.mrf.mxu0
    %v3456 = vpop.f32.mrf.mxu0
    %v3457 = vadd.f32 0.0, %v3456
    %v3458 = vpop.f32.mrf.mxu0
    %3459 = vmatprep.mubr.bf16.mxu0 0
    %3460 = vmatmul.mubr.bf16.gmra.mxu0 %v3383
    %v3461 = vpop.f32.mrf.mxu0
    %v3462 = vadd.f32 0.0, %v3461
    %v3463 = vpop.f32.mrf.mxu0
    %v3464 = vpop.f32.mrf.mxu0
    %v3465 = vadd.f32 0.0, %v3464
    %v3466 = vpop.f32.mrf.mxu0
    %3467 = vmatprep.mubr.bf16.mxu0 0
    %3468 = vmatmul.mubr.bf16.gmra.mxu0 %v3384
    %v3469 = vpop.f32.mrf.mxu0
    %v3470 = vadd.f32 0.0, %v3469
    %v3471 = vpop.f32.mrf.mxu0
    %v3472 = vpop.f32.mrf.mxu0
    %v3473 = vadd.f32 0.0, %v3472
    %v3474 = vpop.f32.mrf.mxu0
    %3475 = vmatprep.mubr.bf16.mxu0 0
    %3476 = vmatmul.mubr.bf16.gmra.mxu0 %v3385
    %v3477 = vpop.f32.mrf.mxu0
    %v3478 = vadd.f32 0.0, %v3477
    %v3479 = vpop.f32.mrf.mxu0
    %v3480 = vpop.f32.mrf.mxu0
    %v3481 = vadd.f32 0.0, %v3480
    %v3482 = vpop.f32.mrf.mxu0
    %3483 = vmatprep.mubr.bf16.mxu0 0
    %3484 = vmatmul.mubr.bf16.gmra.mxu0 %v3386
    %v3485 = vpop.f32.mrf.mxu0
    %v3486 = vadd.f32 0.0, %v3485
    %v3487 = vpop.f32.mrf.mxu0
    %v3488 = vpop.f32.mrf.mxu0
    %v3489 = vadd.f32 0.0, %v3488
    %v3490 = vpop.f32.mrf.mxu0
    %3491 = vdwg.mxu0
    %v3492 = vrcp.pop %v3348
    %v3493 = vrcp.pop %v3350
    %v3494 = vrcp.pop %v3352
    %v3495 = vrcp.pop %v3354
    %v3496 = vrcp.pop %v3356
    %v3497 = vrcp.pop %v3358
    %v3498 = vrcp.pop %v3360
    %v3499 = vrcp.pop %v3362
    %v3500 = vrcp.pop %v3364
    %v3501 = vrcp.pop %v3366
    %v3502 = vrcp.pop %v3368
    %v3503 = vrcp.pop %v3370
    %v3504 = vrcp.pop %v3372
    %v3505 = vrcp.pop %v3374
    %v3506 = vrcp.pop %v3376
    %v3507 = vrcp.pop %v3378
    %v3508 = vmul.f32 %v3430, %v3492
    %v3509 = vmul.f32 %v3433, %v3493
    %v3510 = vmul.f32 %v3438, %v3494
    %v3511 = vmul.f32 %v3441, %v3495
    %v3512 = vmul.f32 %v3446, %v3496
    %v3513 = vmul.f32 %v3449, %v3497
    %v3514 = vmul.f32 %v3454, %v3498
    %v3515 = vmul.f32 %v3457, %v3499
    %v3516 = vmul.f32 %v3462, %v3500
    %v3517 = vmul.f32 %v3465, %v3501
    %v3518 = vmul.f32 %v3470, %v3502
    %v3519 = vmul.f32 %v3473, %v3503
    %v3520 = vmul.f32 %v3478, %v3504
    %v3521 = vmul.f32 %v3481, %v3505
    %v3522 = vmul.f32 %v3486, %v3506
    %v3523 = vmul.f32 %v3489, %v3507
    %v3524 = vpack.c.bf16 %v3509, %v3508
    %v3525 = vpack.c.bf16 %v3511, %v3510
    %v3526 = vpack.c.bf16 %v3513, %v3512
    %v3527 = vpack.c.bf16 %v3515, %v3514
    %v3528 = vpack.c.bf16 %v3517, %v3516
    %v3529 = vpack.c.bf16 %v3519, %v3518
    %v3530 = vpack.c.bf16 %v3521, %v3520
    %v3531 = vpack.c.bf16 %v3523, %v3522
    %v3540 = vunpack.c.l.b16 %v3524
    %v3541 = vunpack.c.h.b16 %v3524
    %v3542 = vunpack.c.l.b16 %v3525
    %v3543 = vunpack.c.h.b16 %v3525
    %v3544 = vunpack.c.l.b16 %v3526
    %v3545 = vunpack.c.h.b16 %v3526
    %v3546 = vunpack.c.l.b16 %v3527
    %v3547 = vunpack.c.h.b16 %v3527
    %v3548 = vunpack.c.l.b16 %v3528
    %v3549 = vunpack.c.h.b16 %v3528
    %v3550 = vunpack.c.l.b16 %v3529
    %v3551 = vunpack.c.h.b16 %v3529
    %v3552 = vunpack.c.l.b16 %v3530
    %v3553 = vunpack.c.h.b16 %v3530
    %v3554 = vunpack.c.l.b16 %v3531
    %v3555 = vunpack.c.h.b16 %v3531
    %v3556 = vpack.c.b16 %v3540, %v3540
    %v3557 = vpack.c.b16 %v3541, %v3541
    %v3558 = vpack.c.b16 %v3542, %v3542
    %v3559 = vpack.c.b16 %v3543, %v3543
    %v3560 = vpack.c.b16 %v3544, %v3544
    %v3561 = vpack.c.b16 %v3545, %v3545
    %v3562 = vpack.c.b16 %v3546, %v3546
    %v3563 = vpack.c.b16 %v3547, %v3547
    %v3564 = vpack.c.b16 %v3548, %v3548
    %v3565 = vpack.c.b16 %v3549, %v3549
    %v3566 = vpack.c.b16 %v3550, %v3550
    %v3567 = vpack.c.b16 %v3551, %v3551
    %v3568 = vpack.c.b16 %v3552, %v3552
    %v3569 = vpack.c.b16 %v3553, %v3553
    %v3570 = vpack.c.b16 %v3554, %v3554
    %v3571 = vpack.c.b16 %v3555, %v3555
    %3588 = vst [vmem:[#allocation2 + $0x4] sm:$0xf] %v3556
    %3589 = vst [vmem:[#allocation2 + $0xc] sm:$0xf] %v3557
    %3590 = vst [vmem:[#allocation2 + $0x14] sm:$0xf] %v3558
    %3591 = vst [vmem:[#allocation2 + $0x1c] sm:$0xf] %v3559
    %3592 = vst [vmem:[#allocation2 + $0x24] sm:$0xf] %v3560
    %3593 = vst [vmem:[#allocation2 + $0x2c] sm:$0xf] %v3561
    %3594 = vst [vmem:[#allocation2 + $0x34] sm:$0xf] %v3562
    %3595 = vst [vmem:[#allocation2 + $0x3c] sm:$0xf] %v3563
    %3596 = vst [vmem:[#allocation2 + $0x44] sm:$0xf] %v3564
    %3597 = vst [vmem:[#allocation2 + $0x4c] sm:$0xf] %v3565
    %3598 = vst [vmem:[#allocation2 + $0x54] sm:$0xf] %v3566
    %3599 = vst [vmem:[#allocation2 + $0x5c] sm:$0xf] %v3567
    %3600 = vst [vmem:[#allocation2 + $0x64] sm:$0xf] %v3568
    %3601 = vst [vmem:[#allocation2 + $0x6c] sm:$0xf] %v3569
    %3602 = vst [vmem:[#allocation2 + $0x74] sm:$0xf] %v3570
    %3603 = vst [vmem:[#allocation2 + $0x7c] sm:$0xf] %v3571
    %v3604 = vld [vmem:[#allocation2] sm:$0xff]
    %v3605 = vld [vmem:[#allocation2 + $0x8] sm:$0xff]
    %v3606 = vld [vmem:[#allocation2 + $0x10] sm:$0xff]
    %v3607 = vld [vmem:[#allocation2 + $0x18] sm:$0xff]
    %v3608 = vld [vmem:[#allocation2 + $0x20] sm:$0xff]
    %v3609 = vld [vmem:[#allocation2 + $0x28] sm:$0xff]
    %v3610 = vld [vmem:[#allocation2 + $0x30] sm:$0xff]
    %v3611 = vld [vmem:[#allocation2 + $0x38] sm:$0xff]
    %v3612 = vld [vmem:[#allocation2 + $0x40] sm:$0xff]
    %v3613 = vld [vmem:[#allocation2 + $0x48] sm:$0xff]
    %v3614 = vld [vmem:[#allocation2 + $0x50] sm:$0xff]
    %v3615 = vld [vmem:[#allocation2 + $0x58] sm:$0xff]
    %v3616 = vld [vmem:[#allocation2 + $0x60] sm:$0xff]
    %v3617 = vld [vmem:[#allocation2 + $0x68] sm:$0xff]
    %v3618 = vld [vmem:[#allocation2 + $0x70] sm:$0xff]
    %v3619 = vld [vmem:[#allocation2 + $0x78] sm:$0xff]
    %v3620 = vld [vmem:[%s3] sm:$0xf]
    %v3621 = vld [vmem:[%s3 + $0x4] sm:$0xf]
    %v3622 = vld [vmem:[%s3 + $0x8] sm:$0xf]
    %v3623 = vld [vmem:[%s3 + $0xc] sm:$0xf]
    %v3624 = vld [vmem:[%s3 + $0x10] sm:$0xf]
    %v3625 = vld [vmem:[%s3 + $0x14] sm:$0xf]
    %v3626 = vld [vmem:[%s3 + $0x18] sm:$0xf]
    %v3627 = vld [vmem:[%s3 + $0x1c] sm:$0xf]
    %v3628 = vld [vmem:[%s3 + $0x20] sm:$0xf]
    %v3629 = vld [vmem:[%s3 + $0x24] sm:$0xf]
    %v3630 = vld [vmem:[%s3 + $0x28] sm:$0xf]
    %v3631 = vld [vmem:[%s3 + $0x2c] sm:$0xf]
    %v3632 = vld [vmem:[%s3 + $0x30] sm:$0xf]
    %v3633 = vld [vmem:[%s3 + $0x34] sm:$0xf]
    %v3634 = vld [vmem:[%s3 + $0x38] sm:$0xf]
    %v3635 = vld [vmem:[%s3 + $0x3c] sm:$0xf]
    %v3636 = vld [vmem:[%s3 + $0x40] sm:$0xf]
    %v3637 = vld [vmem:[%s3 + $0x44] sm:$0xf]
    %v3638 = vld [vmem:[%s3 + $0x48] sm:$0xf]
    %v3639 = vld [vmem:[%s3 + $0x4c] sm:$0xf]
    %v3640 = vld [vmem:[%s3 + $0x50] sm:$0xf]
    %v3641 = vld [vmem:[%s3 + $0x54] sm:$0xf]
    %v3642 = vld [vmem:[%s3 + $0x58] sm:$0xf]
    %v3643 = vld [vmem:[%s3 + $0x5c] sm:$0xf]
    %v3644 = vld [vmem:[%s3 + $0x60] sm:$0xf]
    %v3645 = vld [vmem:[%s3 + $0x64] sm:$0xf]
    %v3646 = vld [vmem:[%s3 + $0x68] sm:$0xf]
    %v3647 = vld [vmem:[%s3 + $0x6c] sm:$0xf]
    %v3648 = vld [vmem:[%s3 + $0x70] sm:$0xf]
    %v3649 = vld [vmem:[%s3 + $0x74] sm:$0xf]
    %v3650 = vld [vmem:[%s3 + $0x78] sm:$0xf]
    %v3651 = vld [vmem:[%s3 + $0x7c] sm:$0xf]
    %v3668 = vunpack.c.l.b16 %v3604
    %v3669 = vunpack.c.h.b16 %v3604
    %v3670 = vunpack.c.l.b16 %v3605
    %v3671 = vunpack.c.h.b16 %v3605
    %v3672 = vunpack.c.l.b16 %v3606
    %v3673 = vunpack.c.h.b16 %v3606
    %v3674 = vunpack.c.l.b16 %v3607
    %v3675 = vunpack.c.h.b16 %v3607
    %v3676 = vunpack.c.l.b16 %v3608
    %v3677 = vunpack.c.h.b16 %v3608
    %v3678 = vunpack.c.l.b16 %v3609
    %v3679 = vunpack.c.h.b16 %v3609
    %v3680 = vunpack.c.l.b16 %v3610
    %v3681 = vunpack.c.h.b16 %v3610
    %v3682 = vunpack.c.l.b16 %v3611
    %v3683 = vunpack.c.h.b16 %v3611
    %v3684 = vunpack.c.l.b16 %v3612
    %v3685 = vunpack.c.h.b16 %v3612
    %v3686 = vunpack.c.l.b16 %v3613
    %v3687 = vunpack.c.h.b16 %v3613
    %v3688 = vunpack.c.l.b16 %v3614
    %v3689 = vunpack.c.h.b16 %v3614
    %v3690 = vunpack.c.l.b16 %v3615
    %v3691 = vunpack.c.h.b16 %v3615
    %v3692 = vunpack.c.l.b16 %v3616
    %v3693 = vunpack.c.h.b16 %v3616
    %v3694 = vunpack.c.l.b16 %v3617
    %v3695 = vunpack.c.h.b16 %v3617
    %v3696 = vunpack.c.l.b16 %v3618
    %v3697 = vunpack.c.h.b16 %v3618
    %v3698 = vunpack.c.l.b16 %v3619
    %v3699 = vunpack.c.h.b16 %v3619
    %v3700 = vpack.c.b16 %v3670, %v3668
    %v3701 = vpack.c.b16 %v3671, %v3669
    %v3702 = vpack.c.b16 %v3674, %v3672
    %v3703 = vpack.c.b16 %v3675, %v3673
    %v3704 = vpack.c.b16 %v3678, %v3676
    %v3705 = vpack.c.b16 %v3679, %v3677
    %v3706 = vpack.c.b16 %v3682, %v3680
    %v3707 = vpack.c.b16 %v3683, %v3681
    %v3708 = vpack.c.b16 %v3686, %v3684
    %v3709 = vpack.c.b16 %v3687, %v3685
    %v3710 = vpack.c.b16 %v3690, %v3688
    %v3711 = vpack.c.b16 %v3691, %v3689
    %v3712 = vpack.c.b16 %v3694, %v3692
    %v3713 = vpack.c.b16 %v3695, %v3693
    %v3714 = vpack.c.b16 %v3698, %v3696
    %v3715 = vpack.c.b16 %v3699, %v3697
    %v3764 = vunpack.c.l.b16 %v3620
    %v3765 = vunpack.c.l.b16 %v3621
    %v3766 = vunpack.c.l.b16 %v3622
    %v3767 = vunpack.c.l.b16 %v3623
    %v3768 = vunpack.c.l.b16 %v3624
    %v3769 = vunpack.c.l.b16 %v3625
    %v3770 = vunpack.c.l.b16 %v3626
    %v3771 = vunpack.c.l.b16 %v3627
    %v3772 = vunpack.c.l.b16 %v3628
    %v3773 = vunpack.c.l.b16 %v3629
    %v3774 = vunpack.c.l.b16 %v3630
    %v3775 = vunpack.c.l.b16 %v3631
    %v3776 = vunpack.c.l.b16 %v3632
    %v3777 = vunpack.c.l.b16 %v3633
    %v3778 = vunpack.c.l.b16 %v3634
    %v3779 = vunpack.c.l.b16 %v3635
    %v3780 = vunpack.c.l.b16 %v3636
    %v3781 = vunpack.c.l.b16 %v3637
    %v3782 = vunpack.c.l.b16 %v3638
    %v3783 = vunpack.c.l.b16 %v3639
    %v3784 = vunpack.c.l.b16 %v3640
    %v3785 = vunpack.c.l.b16 %v3641
    %v3786 = vunpack.c.l.b16 %v3642
    %v3787 = vunpack.c.l.b16 %v3643
    %v3788 = vunpack.c.l.b16 %v3644
    %v3789 = vunpack.c.l.b16 %v3645
    %v3790 = vunpack.c.l.b16 %v3646
    %v3791 = vunpack.c.l.b16 %v3647
    %v3792 = vunpack.c.l.b16 %v3648
    %v3793 = vunpack.c.l.b16 %v3649
    %v3794 = vunpack.c.l.b16 %v3650
    %v3795 = vunpack.c.l.b16 %v3651
    %v3796 = vpack.c.b16 %v3765, %v3764
    %v3797 = vpack.c.b16 %v3767, %v3766
    %v3798 = vpack.c.b16 %v3769, %v3768
    %v3799 = vpack.c.b16 %v3771, %v3770
    %v3800 = vpack.c.b16 %v3773, %v3772
    %v3801 = vpack.c.b16 %v3775, %v3774
    %v3802 = vpack.c.b16 %v3777, %v3776
    %v3803 = vpack.c.b16 %v3779, %v3778
    %v3804 = vpack.c.b16 %v3781, %v3780
    %v3805 = vpack.c.b16 %v3783, %v3782
    %v3806 = vpack.c.b16 %v3785, %v3784
    %v3807 = vpack.c.b16 %v3787, %v3786
    %v3808 = vpack.c.b16 %v3789, %v3788
    %v3809 = vpack.c.b16 %v3791, %v3790
    %v3810 = vpack.c.b16 %v3793, %v3792
    %v3811 = vpack.c.b16 %v3795, %v3794
    %3828 = vmatprep.subr.bf16.mxu0 0
    %3829 = vmatpush1.bf16.msra.mxu0 %v3803
    %3830 = vmatprep.subr.bf16.mxu0 0
    %3831 = vmatpush1.bf16.msra.mxu0 %v3802
    %3832 = vmatprep.subr.bf16.mxu0 0
    %3833 = vmatpush1.bf16.msra.mxu0 %v3801
    %3834 = vmatprep.subr.bf16.mxu0 0
    %3835 = vmatpush1.bf16.msra.mxu0 %v3800
    %3836 = vmatprep.subr.bf16.mxu0 0
    %3837 = vmatpush1.bf16.msra.mxu0 %v3799
    %3838 = vmatprep.subr.bf16.mxu0 0
    %3839 = vmatpush1.bf16.msra.mxu0 %v3798
    %3840 = vmatprep.subr.bf16.mxu0 0
    %3841 = vmatpush1.bf16.msra.mxu0 %v3797
    %3842 = vmatprep.subr.bf16.mxu0 0
    %3843 = vmatpush1.bf16.msra.mxu0 %v3796
    %3844 = vmatprep.subr.bf16.mxu0 0
    %3845 = vmatpush2.bf16.msra.mxu0 %v3811
    %3846 = vmatprep.subr.bf16.mxu0 0
    %3847 = vmatpush2.bf16.msra.mxu0 %v3810
    %3848 = vmatprep.subr.bf16.mxu0 0
    %3849 = vmatpush2.bf16.msra.mxu0 %v3809
    %3850 = vmatprep.subr.bf16.mxu0 0
    %3851 = vmatpush2.bf16.msra.mxu0 %v3808
    %3852 = vmatprep.subr.bf16.mxu0 0
    %3853 = vmatpush2.bf16.msra.mxu0 %v3807
    %3854 = vmatprep.subr.bf16.mxu0 0
    %3855 = vmatpush2.bf16.msra.mxu0 %v3806
    %3856 = vmatprep.subr.bf16.mxu0 0
    %3857 = vmatpush2.bf16.msra.mxu0 %v3805
    %3858 = vmatprep.subr.bf16.mxu0 0
    %3859 = vmatpush2.bf16.msra.mxu0 %v3804
    %3860 = vmatprep.mubr.bf16.mxu0 %v3701
    %3861 = vmatmul.mubr.bf16.gmra.mxu0 %v3700
    %v3862 = vpop.f32.mrf.mxu0
    %v3863 = vadd.f32 0.0, %v3862
    %v3864 = vpop.f32.mrf.mxu0
    %v3865 = vpop.f32.mrf.mxu0
    %v3866 = vadd.f32 0.0, %v3865
    %v3867 = vpop.f32.mrf.mxu0
    %3868 = vmatprep.mubr.bf16.mxu0 %v3703
    %3869 = vmatmul.mubr.bf16.gmra.mxu0 %v3702
    %v3870 = vpop.f32.mrf.mxu0
    %v3871 = vadd.f32 0.0, %v3870
    %v3872 = vpop.f32.mrf.mxu0
    %v3873 = vpop.f32.mrf.mxu0
    %v3874 = vadd.f32 0.0, %v3873
    %v3875 = vpop.f32.mrf.mxu0
    %3876 = vmatprep.mubr.bf16.mxu0 %v3705
    %3877 = vmatmul.mubr.bf16.gmra.mxu0 %v3704
    %v3878 = vpop.f32.mrf.mxu0
    %v3879 = vadd.f32 0.0, %v3878
    %v3880 = vpop.f32.mrf.mxu0
    %v3881 = vpop.f32.mrf.mxu0
    %v3882 = vadd.f32 0.0, %v3881
    %v3883 = vpop.f32.mrf.mxu0
    %3884 = vmatprep.mubr.bf16.mxu0 %v3707
    %3885 = vmatmul.mubr.bf16.gmra.mxu0 %v3706
    %v3886 = vpop.f32.mrf.mxu0
    %v3887 = vadd.f32 0.0, %v3886
    %v3888 = vpop.f32.mrf.mxu0
    %v3889 = vpop.f32.mrf.mxu0
    %v3890 = vadd.f32 0.0, %v3889
    %v3891 = vpop.f32.mrf.mxu0
    %3892 = vmatprep.mubr.bf16.mxu0 %v3709
    %3893 = vmatmul.mubr.bf16.gmra.mxu0 %v3708
    %v3894 = vpop.f32.mrf.mxu0
    %v3895 = vadd.f32 0.0, %v3894
    %v3896 = vpop.f32.mrf.mxu0
    %v3897 = vpop.f32.mrf.mxu0
    %v3898 = vadd.f32 0.0, %v3897
    %v3899 = vpop.f32.mrf.mxu0
    %3900 = vmatprep.mubr.bf16.mxu0 %v3711
    %3901 = vmatmul.mubr.bf16.gmra.mxu0 %v3710
    %v3902 = vpop.f32.mrf.mxu0
    %v3903 = vadd.f32 0.0, %v3902
    %v3904 = vpop.f32.mrf.mxu0
    %v3905 = vpop.f32.mrf.mxu0
    %v3906 = vadd.f32 0.0, %v3905
    %v3907 = vpop.f32.mrf.mxu0
    %3908 = vmatprep.mubr.bf16.mxu0 %v3713
    %3909 = vmatmul.mubr.bf16.gmra.mxu0 %v3712
    %v3910 = vpop.f32.mrf.mxu0
    %v3911 = vadd.f32 0.0, %v3910
    %v3912 = vpop.f32.mrf.mxu0
    %v3913 = vpop.f32.mrf.mxu0
    %v3914 = vadd.f32 0.0, %v3913
    %v3915 = vpop.f32.mrf.mxu0
    %3916 = vmatprep.mubr.bf16.mxu0 %v3715
    %3917 = vmatmul.mubr.bf16.gmra.mxu0 %v3714
    %v3918 = vpop.f32.mrf.mxu0
    %v3919 = vadd.f32 0.0, %v3918
    %v3920 = vpop.f32.mrf.mxu0
    %v3921 = vpop.f32.mrf.mxu0
    %v3922 = vadd.f32 0.0, %v3921
    %v3923 = vpop.f32.mrf.mxu0
    %3924 = vdwg.mxu0
    %v3925 = vmul.f32 %v3863, %v3863
    %v3926 = vmul.f32 %v3866, %v3866
    %v3927 = vmul.f32 %v3871, %v3871
    %v3928 = vmul.f32 %v3874, %v3874
    %v3929 = vmul.f32 %v3879, %v3879
    %v3930 = vmul.f32 %v3882, %v3882
    %v3931 = vmul.f32 %v3887, %v3887
    %v3932 = vmul.f32 %v3890, %v3890
    %v3933 = vmul.f32 %v3895, %v3895
    %v3934 = vmul.f32 %v3898, %v3898
    %v3935 = vmul.f32 %v3903, %v3903
    %v3936 = vmul.f32 %v3906, %v3906
    %v3937 = vmul.f32 %v3911, %v3911
    %v3938 = vmul.f32 %v3914, %v3914
    %v3939 = vmul.f32 %v3919, %v3919
    %v3940 = vmul.f32 %v3922, %v3922
    %3941 = vadd.xlane.f32.xlu0 %v3925
    %v3942 = vpop.xlane.xlu0 %3941
    %3943 = vadd.xlane.f32.xlu0 %v3926
    %v3944 = vpop.xlane.xlu0 %3943
    %3945 = vadd.xlane.f32.xlu0 %v3927
    %v3946 = vpop.xlane.xlu0 %3945
    %3947 = vadd.xlane.f32.xlu0 %v3928
    %v3948 = vpop.xlane.xlu0 %3947
    %3949 = vadd.xlane.f32.xlu0 %v3929
    %v3950 = vpop.xlane.xlu0 %3949
    %3951 = vadd.xlane.f32.xlu0 %v3930
    %v3952 = vpop.xlane.xlu0 %3951
    %3953 = vadd.xlane.f32.xlu0 %v3931
    %v3954 = vpop.xlane.xlu0 %3953
    %3955 = vadd.xlane.f32.xlu0 %v3932
    %v3956 = vpop.xlane.xlu0 %3955
    %3957 = vadd.xlane.f32.xlu0 %v3933
    %v3958 = vpop.xlane.xlu0 %3957
    %3959 = vadd.xlane.f32.xlu0 %v3934
    %v3960 = vpop.xlane.xlu0 %3959
    %3961 = vadd.xlane.f32.xlu0 %v3935
    %v3962 = vpop.xlane.xlu0 %3961
    %3963 = vadd.xlane.f32.xlu0 %v3936
    %v3964 = vpop.xlane.xlu0 %3963
    %3965 = vadd.xlane.f32.xlu0 %v3937
    %v3966 = vpop.xlane.xlu0 %3965
    %3967 = vadd.xlane.f32.xlu0 %v3938
    %v3968 = vpop.xlane.xlu0 %3967
    %3969 = vadd.xlane.f32.xlu0 %v3939
    %v3970 = vpop.xlane.xlu0 %3969
    %3971 = vadd.xlane.f32.xlu0 %v3940
    %v3972 = vpop.xlane.xlu0 %3971
    %v3973 = vrsqrt.pop %v3942
    %v3974 = vmul.f32 %v3942, %v3973
    %vm3975 = vcmp.eq.f32.partialorder %v3942, inf
    %v3976 = vsel %vm3975, %v3942, %v3974
    %vm3977 = vcmp.eq.f32.partialorder %v3942, 0.0
    %v3978 = vand.u32 %v3942, 2147483648
    %v3979 = vsel %vm3977, %v3978, %v3976
    %v3980 = vrsqrt.pop %v3944
    %v3981 = vmul.f32 %v3944, %v3980
    %vm3982 = vcmp.eq.f32.partialorder %v3944, inf
    %v3983 = vsel %vm3982, %v3944, %v3981
    %vm3984 = vcmp.eq.f32.partialorder %v3944, 0.0
    %v3985 = vand.u32 %v3944, 2147483648
    %v3986 = vsel %vm3984, %v3985, %v3983
    %v3987 = vrsqrt.pop %v3946
    %v3988 = vmul.f32 %v3946, %v3987
    %vm3989 = vcmp.eq.f32.partialorder %v3946, inf
    %v3990 = vsel %vm3989, %v3946, %v3988
    %vm3991 = vcmp.eq.f32.partialorder %v3946, 0.0
    %v3992 = vand.u32 %v3946, 2147483648
    %v3993 = vsel %vm3991, %v3992, %v3990
    %v3994 = vrsqrt.pop %v3948
    %v3995 = vmul.f32 %v3948, %v3994
    %vm3996 = vcmp.eq.f32.partialorder %v3948, inf
    %v3997 = vsel %vm3996, %v3948, %v3995
    %vm3998 = vcmp.eq.f32.partialorder %v3948, 0.0
    %v3999 = vand.u32 %v3948, 2147483648
    %v4000 = vsel %vm3998, %v3999, %v3997
    %v4001 = vrsqrt.pop %v3950
    %v4002 = vmul.f32 %v3950, %v4001
    %vm4003 = vcmp.eq.f32.partialorder %v3950, inf
    %v4004 = vsel %vm4003, %v3950, %v4002
    %vm4005 = vcmp.eq.f32.partialorder %v3950, 0.0
    %v4006 = vand.u32 %v3950, 2147483648
    %v4007 = vsel %vm4005, %v4006, %v4004
    %v4008 = vrsqrt.pop %v3952
    %v4009 = vmul.f32 %v3952, %v4008
    %vm4010 = vcmp.eq.f32.partialorder %v3952, inf
    %v4011 = vsel %vm4010, %v3952, %v4009
    %vm4012 = vcmp.eq.f32.partialorder %v3952, 0.0
    %v4013 = vand.u32 %v3952, 2147483648
    %v4014 = vsel %vm4012, %v4013, %v4011
    %v4015 = vrsqrt.pop %v3954
    %v4016 = vmul.f32 %v3954, %v4015
    %vm4017 = vcmp.eq.f32.partialorder %v3954, inf
    %v4018 = vsel %vm4017, %v3954, %v4016
    %vm4019 = vcmp.eq.f32.partialorder %v3954, 0.0
    %v4020 = vand.u32 %v3954, 2147483648
    %v4021 = vsel %vm4019, %v4020, %v4018
    %v4022 = vrsqrt.pop %v3956
    %v4023 = vmul.f32 %v3956, %v4022
    %vm4024 = vcmp.eq.f32.partialorder %v3956, inf
    %v4025 = vsel %vm4024, %v3956, %v4023
    %vm4026 = vcmp.eq.f32.partialorder %v3956, 0.0
    %v4027 = vand.u32 %v3956, 2147483648
    %v4028 = vsel %vm4026, %v4027, %v4025
    %v4029 = vrsqrt.pop %v3958
    %v4030 = vmul.f32 %v3958, %v4029
    %vm4031 = vcmp.eq.f32.partialorder %v3958, inf
    %v4032 = vsel %vm4031, %v3958, %v4030
    %vm4033 = vcmp.eq.f32.partialorder %v3958, 0.0
    %v4034 = vand.u32 %v3958, 2147483648
    %v4035 = vsel %vm4033, %v4034, %v4032
    %v4036 = vrsqrt.pop %v3960
    %v4037 = vmul.f32 %v3960, %v4036
    %vm4038 = vcmp.eq.f32.partialorder %v3960, inf
    %v4039 = vsel %vm4038, %v3960, %v4037
    %vm4040 = vcmp.eq.f32.partialorder %v3960, 0.0
    %v4041 = vand.u32 %v3960, 2147483648
    %v4042 = vsel %vm4040, %v4041, %v4039
    %v4043 = vrsqrt.pop %v3962
    %v4044 = vmul.f32 %v3962, %v4043
    %vm4045 = vcmp.eq.f32.partialorder %v3962, inf
    %v4046 = vsel %vm4045, %v3962, %v4044
    %vm4047 = vcmp.eq.f32.partialorder %v3962, 0.0
    %v4048 = vand.u32 %v3962, 2147483648
    %v4049 = vsel %vm4047, %v4048, %v4046
    %v4050 = vrsqrt.pop %v3964
    %v4051 = vmul.f32 %v3964, %v4050
    %vm4052 = vcmp.eq.f32.partialorder %v3964, inf
    %v4053 = vsel %vm4052, %v3964, %v4051
    %vm4054 = vcmp.eq.f32.partialorder %v3964, 0.0
    %v4055 = vand.u32 %v3964, 2147483648
    %v4056 = vsel %vm4054, %v4055, %v4053
    %v4057 = vrsqrt.pop %v3966
    %v4058 = vmul.f32 %v3966, %v4057
    %vm4059 = vcmp.eq.f32.partialorder %v3966, inf
    %v4060 = vsel %vm4059, %v3966, %v4058
    %vm4061 = vcmp.eq.f32.partialorder %v3966, 0.0
    %v4062 = vand.u32 %v3966, 2147483648
    %v4063 = vsel %vm4061, %v4062, %v4060
    %v4064 = vrsqrt.pop %v3968
    %v4065 = vmul.f32 %v3968, %v4064
    %vm4066 = vcmp.eq.f32.partialorder %v3968, inf
    %v4067 = vsel %vm4066, %v3968, %v4065
    %vm4068 = vcmp.eq.f32.partialorder %v3968, 0.0
    %v4069 = vand.u32 %v3968, 2147483648
    %v4070 = vsel %vm4068, %v4069, %v4067
    %v4071 = vrsqrt.pop %v3970
    %v4072 = vmul.f32 %v3970, %v4071
    %vm4073 = vcmp.eq.f32.partialorder %v3970, inf
    %v4074 = vsel %vm4073, %v3970, %v4072
    %vm4075 = vcmp.eq.f32.partialorder %v3970, 0.0
    %v4076 = vand.u32 %v3970, 2147483648
    %v4077 = vsel %vm4075, %v4076, %v4074
    %v4078 = vrsqrt.pop %v3972
    %v4079 = vmul.f32 %v3972, %v4078
    %vm4080 = vcmp.eq.f32.partialorder %v3972, inf
    %v4081 = vsel %vm4080, %v3972, %v4079
    %vm4082 = vcmp.eq.f32.partialorder %v3972, 0.0
    %v4083 = vand.u32 %v3972, 2147483648
    %v4084 = vsel %vm4082, %v4083, %v4081
    %v4085 = vmul.f32 %v910, %v3979
    %v4086 = vmul.f32 %v911, %v3986
    %v4087 = vmul.f32 %v912, %v3993
    %v4088 = vmul.f32 %v913, %v4000
    %v4089 = vmul.f32 %v914, %v4007
    %v4090 = vmul.f32 %v915, %v4014
    %v4091 = vmul.f32 %v916, %v4021
    %v4092 = vmul.f32 %v917, %v4028
    %v4093 = vmul.f32 %v918, %v4035
    %v4094 = vmul.f32 %v919, %v4042
    %v4095 = vmul.f32 %v920, %v4049
    %v4096 = vmul.f32 %v921, %v4056
    %v4097 = vmul.f32 %v922, %v4063
    %v4098 = vmul.f32 %v923, %v4070
    %v4099 = vmul.f32 %v924, %v4077
    %v4100 = vmul.f32 %v925, %v4084
    %v4101 = vmul.f32 %v4085, 0.5
    %v4102 = vmul.f32 %v4086, 0.5
    %v4103 = vmul.f32 %v4087, 0.5
    %v4104 = vmul.f32 %v4088, 0.5
    %v4105 = vmul.f32 %v4089, 0.5
    %v4106 = vmul.f32 %v4090, 0.5
    %v4107 = vmul.f32 %v4091, 0.5
    %v4108 = vmul.f32 %v4092, 0.5
    %v4109 = vmul.f32 %v4093, 0.5
    %v4110 = vmul.f32 %v4094, 0.5
    %v4111 = vmul.f32 %v4095, 0.5
    %v4112 = vmul.f32 %v4096, 0.5
    %v4113 = vmul.f32 %v4097, 0.5
    %v4114 = vmul.f32 %v4098, 0.5
    %v4115 = vmul.f32 %v4099, 0.5
    %v4116 = vmul.f32 %v4100, 0.5
    %v4117 = vtanh.pop %v4101
    %v4118 = vtanh.pop %v4102
    %v4119 = vtanh.pop %v4103
    %v4120 = vtanh.pop %v4104
    %v4121 = vtanh.pop %v4105
    %v4122 = vtanh.pop %v4106
    %v4123 = vtanh.pop %v4107
    %v4124 = vtanh.pop %v4108
    %v4125 = vtanh.pop %v4109
    %v4126 = vtanh.pop %v4110
    %v4127 = vtanh.pop %v4111
    %v4128 = vtanh.pop %v4112
    %v4129 = vtanh.pop %v4113
    %v4130 = vtanh.pop %v4114
    %v4131 = vtanh.pop %v4115
    %v4132 = vtanh.pop %v4116
    %v4133 = vadd.f32 %v3979, 1e-05
    %v4134 = vadd.f32 %v3986, 1e-05
    %v4135 = vadd.f32 %v3993, 1e-05
    %v4136 = vadd.f32 %v4000, 1e-05
    %v4137 = vadd.f32 %v4007, 1e-05
    %v4138 = vadd.f32 %v4014, 1e-05
    %v4139 = vadd.f32 %v4021, 1e-05
    %v4140 = vadd.f32 %v4028, 1e-05
    %v4141 = vadd.f32 %v4035, 1e-05
    %v4142 = vadd.f32 %v4042, 1e-05
    %v4143 = vadd.f32 %v4049, 1e-05
    %v4144 = vadd.f32 %v4056, 1e-05
    %v4145 = vadd.f32 %v4063, 1e-05
    %v4146 = vadd.f32 %v4070, 1e-05
    %v4147 = vadd.f32 %v4077, 1e-05
    %v4148 = vadd.f32 %v4084, 1e-05
    %v4149 = vrcp.pop %v4133
    %v4150 = vrcp.pop %v4134
    %v4151 = vrcp.pop %v4135
    %v4152 = vrcp.pop %v4136
    %v4153 = vrcp.pop %v4137
    %v4154 = vrcp.pop %v4138
    %v4155 = vrcp.pop %v4139
    %v4156 = vrcp.pop %v4140
    %v4157 = vrcp.pop %v4141
    %v4158 = vrcp.pop %v4142
    %v4159 = vrcp.pop %v4143
    %v4160 = vrcp.pop %v4144
    %v4161 = vrcp.pop %v4145
    %v4162 = vrcp.pop %v4146
    %v4163 = vrcp.pop %v4147
    %v4164 = vrcp.pop %v4148
    %v4165 = vmul.f32 %v4117, %v4149
    %v4166 = vmul.f32 %v4118, %v4150
    %v4167 = vmul.f32 %v4119, %v4151
    %v4168 = vmul.f32 %v4120, %v4152
    %v4169 = vmul.f32 %v4121, %v4153
    %v4170 = vmul.f32 %v4122, %v4154
    %v4171 = vmul.f32 %v4123, %v4155
    %v4172 = vmul.f32 %v4124, %v4156
    %v4173 = vmul.f32 %v4125, %v4157
    %v4174 = vmul.f32 %v4126, %v4158
    %v4175 = vmul.f32 %v4127, %v4159
    %v4176 = vmul.f32 %v4128, %v4160
    %v4177 = vmul.f32 %v4129, %v4161
    %v4178 = vmul.f32 %v4130, %v4162
    %v4179 = vmul.f32 %v4131, %v4163
    %v4180 = vmul.f32 %v4132, %v4164
    %v4181 = vmul.f32 %v3863, %v4165
    %v4182 = vmul.f32 %v3866, %v4166
    %v4183 = vmul.f32 %v3871, %v4167
    %v4184 = vmul.f32 %v3874, %v4168
    %v4185 = vmul.f32 %v3879, %v4169
    %v4186 = vmul.f32 %v3882, %v4170
    %v4187 = vmul.f32 %v3887, %v4171
    %v4188 = vmul.f32 %v3890, %v4172
    %v4189 = vmul.f32 %v3895, %v4173
    %v4190 = vmul.f32 %v3898, %v4174
    %v4191 = vmul.f32 %v3903, %v4175
    %v4192 = vmul.f32 %v3906, %v4176
    %v4193 = vmul.f32 %v3911, %v4177
    %v4194 = vmul.f32 %v3914, %v4178
    %v4195 = vmul.f32 %v3919, %v4179
    %v4196 = vmul.f32 %v3922, %v4180
    %v4197 = vmul.f32 %v4181, %v4181
    %v4198 = vmul.f32 %v4182, %v4182
    %v4199 = vmul.f32 %v4183, %v4183
    %v4200 = vmul.f32 %v4184, %v4184
    %v4201 = vmul.f32 %v4185, %v4185
    %v4202 = vmul.f32 %v4186, %v4186
    %v4203 = vmul.f32 %v4187, %v4187
    %v4204 = vmul.f32 %v4188, %v4188
    %v4205 = vmul.f32 %v4189, %v4189
    %v4206 = vmul.f32 %v4190, %v4190
    %v4207 = vmul.f32 %v4191, %v4191
    %v4208 = vmul.f32 %v4192, %v4192
    %v4209 = vmul.f32 %v4193, %v4193
    %v4210 = vmul.f32 %v4194, %v4194
    %v4211 = vmul.f32 %v4195, %v4195
    %v4212 = vmul.f32 %v4196, %v4196
    %4213 = vadd.xlane.f32.xlu0 %v4197
    %v4214 = vpop.xlane.xlu0 %4213
    %4215 = vadd.xlane.f32.xlu0 %v4198
    %v4216 = vpop.xlane.xlu0 %4215
    %4217 = vadd.xlane.f32.xlu0 %v4199
    %v4218 = vpop.xlane.xlu0 %4217
    %4219 = vadd.xlane.f32.xlu0 %v4200
    %v4220 = vpop.xlane.xlu0 %4219
    %4221 = vadd.xlane.f32.xlu0 %v4201
    %v4222 = vpop.xlane.xlu0 %4221
    %4223 = vadd.xlane.f32.xlu0 %v4202
    %v4224 = vpop.xlane.xlu0 %4223
    %4225 = vadd.xlane.f32.xlu0 %v4203
    %v4226 = vpop.xlane.xlu0 %4225
    %4227 = vadd.xlane.f32.xlu0 %v4204
    %v4228 = vpop.xlane.xlu0 %4227
    %4229 = vadd.xlane.f32.xlu0 %v4205
    %v4230 = vpop.xlane.xlu0 %4229
    %4231 = vadd.xlane.f32.xlu0 %v4206
    %v4232 = vpop.xlane.xlu0 %4231
    %4233 = vadd.xlane.f32.xlu0 %v4207
    %v4234 = vpop.xlane.xlu0 %4233
    %4235 = vadd.xlane.f32.xlu0 %v4208
    %v4236 = vpop.xlane.xlu0 %4235
    %4237 = vadd.xlane.f32.xlu0 %v4209
    %v4238 = vpop.xlane.xlu0 %4237
    %4239 = vadd.xlane.f32.xlu0 %v4210
    %v4240 = vpop.xlane.xlu0 %4239
    %4241 = vadd.xlane.f32.xlu0 %v4211
    %v4242 = vpop.xlane.xlu0 %4241
    %4243 = vadd.xlane.f32.xlu0 %v4212
    %v4244 = vpop.xlane.xlu0 %4243
    %v4245 = vmul.f32 %v126, %v4181
    %v4246 = vmul.f32 %v127, %v4182
    %v4247 = vmul.f32 %v128, %v4183
    %v4248 = vmul.f32 %v129, %v4184
    %v4249 = vmul.f32 %v130, %v4185
    %v4250 = vmul.f32 %v131, %v4186
    %v4251 = vmul.f32 %v132, %v4187
    %v4252 = vmul.f32 %v133, %v4188
    %v4253 = vmul.f32 %v134, %v4189
    %v4254 = vmul.f32 %v135, %v4190
    %v4255 = vmul.f32 %v136, %v4191
    %v4256 = vmul.f32 %v137, %v4192
    %v4257 = vmul.f32 %v138, %v4193
    %v4258 = vmul.f32 %v139, %v4194
    %v4259 = vmul.f32 %v140, %v4195
    %v4260 = vmul.f32 %v141, %v4196
    %4261 = vadd.xlane.f32.xlu0 %v4245
    %v4262 = vpop.xlane.xlu0 %4261
    %4263 = vadd.xlane.f32.xlu0 %v4246
    %v4264 = vpop.xlane.xlu0 %4263
    %4265 = vadd.xlane.f32.xlu0 %v4247
    %v4266 = vpop.xlane.xlu0 %4265
    %4267 = vadd.xlane.f32.xlu0 %v4248
    %v4268 = vpop.xlane.xlu0 %4267
    %4269 = vadd.xlane.f32.xlu0 %v4249
    %v4270 = vpop.xlane.xlu0 %4269
    %4271 = vadd.xlane.f32.xlu0 %v4250
    %v4272 = vpop.xlane.xlu0 %4271
    %4273 = vadd.xlane.f32.xlu0 %v4251
    %v4274 = vpop.xlane.xlu0 %4273
    %4275 = vadd.xlane.f32.xlu0 %v4252
    %v4276 = vpop.xlane.xlu0 %4275
    %4277 = vadd.xlane.f32.xlu0 %v4253
    %v4278 = vpop.xlane.xlu0 %4277
    %4279 = vadd.xlane.f32.xlu0 %v4254
    %v4280 = vpop.xlane.xlu0 %4279
    %4281 = vadd.xlane.f32.xlu0 %v4255
    %v4282 = vpop.xlane.xlu0 %4281
    %4283 = vadd.xlane.f32.xlu0 %v4256
    %v4284 = vpop.xlane.xlu0 %4283
    %4285 = vadd.xlane.f32.xlu0 %v4257
    %v4286 = vpop.xlane.xlu0 %4285
    %4287 = vadd.xlane.f32.xlu0 %v4258
    %v4288 = vpop.xlane.xlu0 %4287
    %4289 = vadd.xlane.f32.xlu0 %v4259
    %v4290 = vpop.xlane.xlu0 %4289
    %4291 = vadd.xlane.f32.xlu0 %v4260
    %v4292 = vpop.xlane.xlu0 %4291
    %v4293 = vmul.f32 %v4262, 2.0
    %v4294 = vmul.f32 %v4264, 2.0
    %v4295 = vmul.f32 %v4266, 2.0
    %v4296 = vmul.f32 %v4268, 2.0
    %v4297 = vmul.f32 %v4270, 2.0
    %v4298 = vmul.f32 %v4272, 2.0
    %v4299 = vmul.f32 %v4274, 2.0
    %v4300 = vmul.f32 %v4276, 2.0
    %v4301 = vmul.f32 %v4278, 2.0
    %v4302 = vmul.f32 %v4280, 2.0
    %v4303 = vmul.f32 %v4282, 2.0
    %v4304 = vmul.f32 %v4284, 2.0
    %v4305 = vmul.f32 %v4286, 2.0
    %v4306 = vmul.f32 %v4288, 2.0
    %v4307 = vmul.f32 %v4290, 2.0
    %v4308 = vmul.f32 %v4292, 2.0
    %v4309 = vadd.f32 %v4293, 1.0
    %v4310 = vadd.f32 %v4294, 1.0
    %v4311 = vadd.f32 %v4295, 1.0
    %v4312 = vadd.f32 %v4296, 1.0
    %v4313 = vadd.f32 %v4297, 1.0
    %v4314 = vadd.f32 %v4298, 1.0
    %v4315 = vadd.f32 %v4299, 1.0
    %v4316 = vadd.f32 %v4300, 1.0
    %v4317 = vadd.f32 %v4301, 1.0
    %v4318 = vadd.f32 %v4302, 1.0
    %v4319 = vadd.f32 %v4303, 1.0
    %v4320 = vadd.f32 %v4304, 1.0
    %v4321 = vadd.f32 %v4305, 1.0
    %v4322 = vadd.f32 %v4306, 1.0
    %v4323 = vadd.f32 %v4307, 1.0
    %v4324 = vadd.f32 %v4308, 1.0
    %v4325 = vadd.f32 %v4309, %v4214
    %v4326 = vadd.f32 %v4310, %v4216
    %v4327 = vadd.f32 %v4311, %v4218
    %v4328 = vadd.f32 %v4312, %v4220
    %v4329 = vadd.f32 %v4313, %v4222
    %v4330 = vadd.f32 %v4314, %v4224
    %v4331 = vadd.f32 %v4315, %v4226
    %v4332 = vadd.f32 %v4316, %v4228
    %v4333 = vadd.f32 %v4317, %v4230
    %v4334 = vadd.f32 %v4318, %v4232
    %v4335 = vadd.f32 %v4319, %v4234
    %v4336 = vadd.f32 %v4320, %v4236
    %v4337 = vadd.f32 %v4321, %v4238
    %v4338 = vadd.f32 %v4322, %v4240
    %v4339 = vadd.f32 %v4323, %v4242
    %v4340 = vadd.f32 %v4324, %v4244
    %v4341 = vmul.f32 %v4325, %v126
    %v4342 = vmul.f32 %v4326, %v127
    %v4343 = vmul.f32 %v4327, %v128
    %v4344 = vmul.f32 %v4328, %v129
    %v4345 = vmul.f32 %v4329, %v130
    %v4346 = vmul.f32 %v4330, %v131
    %v4347 = vmul.f32 %v4331, %v132
    %v4348 = vmul.f32 %v4332, %v133
    %v4349 = vmul.f32 %v4333, %v134
    %v4350 = vmul.f32 %v4334, %v135
    %v4351 = vmul.f32 %v4335, %v136
    %v4352 = vmul.f32 %v4336, %v137
    %v4353 = vmul.f32 %v4337, %v138
    %v4354 = vmul.f32 %v4338, %v139
    %v4355 = vmul.f32 %v4339, %v140
    %v4356 = vmul.f32 %v4340, %v141
    %v4357 = vmul.f32 %v398, %v4181
    %v4358 = vmul.f32 %v399, %v4182
    %v4359 = vmul.f32 %v400, %v4183
    %v4360 = vmul.f32 %v401, %v4184
    %v4361 = vmul.f32 %v402, %v4185
    %v4362 = vmul.f32 %v403, %v4186
    %v4363 = vmul.f32 %v404, %v4187
    %v4364 = vmul.f32 %v405, %v4188
    %v4365 = vmul.f32 %v406, %v4189
    %v4366 = vmul.f32 %v407, %v4190
    %v4367 = vmul.f32 %v408, %v4191
    %v4368 = vmul.f32 %v409, %v4192
    %v4369 = vmul.f32 %v410, %v4193
    %v4370 = vmul.f32 %v411, %v4194
    %v4371 = vmul.f32 %v412, %v4195
    %v4372 = vmul.f32 %v413, %v4196
    %v4373 = vadd.f32 %v4341, %v4357
    %v4374 = vadd.f32 %v4342, %v4358
    %v4375 = vadd.f32 %v4343, %v4359
    %v4376 = vadd.f32 %v4344, %v4360
    %v4377 = vadd.f32 %v4345, %v4361
    %v4378 = vadd.f32 %v4346, %v4362
    %v4379 = vadd.f32 %v4347, %v4363
    %v4380 = vadd.f32 %v4348, %v4364
    %v4381 = vadd.f32 %v4349, %v4365
    %v4382 = vadd.f32 %v4350, %v4366
    %v4383 = vadd.f32 %v4351, %v4367
    %v4384 = vadd.f32 %v4352, %v4368
    %v4385 = vadd.f32 %v4353, %v4369
    %v4386 = vadd.f32 %v4354, %v4370
    %v4387 = vadd.f32 %v4355, %v4371
    %v4388 = vadd.f32 %v4356, %v4372
    %v4389 = vmul.f32 %v223, %v4214
    %v4390 = vmul.f32 %v225, %v4216
    %v4391 = vmul.f32 %v227, %v4218
    %v4392 = vmul.f32 %v229, %v4220
    %v4393 = vmul.f32 %v231, %v4222
    %v4394 = vmul.f32 %v233, %v4224
    %v4395 = vmul.f32 %v235, %v4226
    %v4396 = vmul.f32 %v237, %v4228
    %v4397 = vmul.f32 %v239, %v4230
    %v4398 = vmul.f32 %v241, %v4232
    %v4399 = vmul.f32 %v243, %v4234
    %v4400 = vmul.f32 %v245, %v4236
    %v4401 = vmul.f32 %v247, %v4238
    %v4402 = vmul.f32 %v249, %v4240
    %v4403 = vmul.f32 %v251, %v4242
    %v4404 = vmul.f32 %v253, %v4244
    %v4405 = vadd.f32 %v4309, %v4389
    %v4406 = vadd.f32 %v4310, %v4390
    %v4407 = vadd.f32 %v4311, %v4391
    %v4408 = vadd.f32 %v4312, %v4392
    %v4409 = vadd.f32 %v4313, %v4393
    %v4410 = vadd.f32 %v4314, %v4394
    %v4411 = vadd.f32 %v4315, %v4395
    %v4412 = vadd.f32 %v4316, %v4396
    %v4413 = vadd.f32 %v4317, %v4397
    %v4414 = vadd.f32 %v4318, %v4398
    %v4415 = vadd.f32 %v4319, %v4399
    %v4416 = vadd.f32 %v4320, %v4400
    %v4417 = vadd.f32 %v4321, %v4401
    %v4418 = vadd.f32 %v4322, %v4402
    %v4419 = vadd.f32 %v4323, %v4403
    %v4420 = vadd.f32 %v4324, %v4404
    %v4421 = vadd.f32 %v4405, 1e-05
    %v4422 = vadd.f32 %v4406, 1e-05
    %v4423 = vadd.f32 %v4407, 1e-05
    %v4424 = vadd.f32 %v4408, 1e-05
    %v4425 = vadd.f32 %v4409, 1e-05
    %v4426 = vadd.f32 %v4410, 1e-05
    %v4427 = vadd.f32 %v4411, 1e-05
    %v4428 = vadd.f32 %v4412, 1e-05
    %v4429 = vadd.f32 %v4413, 1e-05
    %v4430 = vadd.f32 %v4414, 1e-05
    %v4431 = vadd.f32 %v4415, 1e-05
    %v4432 = vadd.f32 %v4416, 1e-05
    %v4433 = vadd.f32 %v4417, 1e-05
    %v4434 = vadd.f32 %v4418, 1e-05
    %v4435 = vadd.f32 %v4419, 1e-05
    %v4436 = vadd.f32 %v4420, 1e-05
    %v4437 = vrcp.pop %v4421
    %v4438 = vrcp.pop %v4422
    %v4439 = vrcp.pop %v4423
    %v4440 = vrcp.pop %v4424
    %v4441 = vrcp.pop %v4425
    %v4442 = vrcp.pop %v4426
    %v4443 = vrcp.pop %v4427
    %v4444 = vrcp.pop %v4428
    %v4445 = vrcp.pop %v4429
    %v4446 = vrcp.pop %v4430
    %v4447 = vrcp.pop %v4431
    %v4448 = vrcp.pop %v4432
    %v4449 = vrcp.pop %v4433
    %v4450 = vrcp.pop %v4434
    %v4451 = vrcp.pop %v4435
    %v4452 = vrcp.pop %v4436
    %v4453 = vmul.f32 %v4373, %v4437
    %v4454 = vmul.f32 %v4374, %v4438
    %v4455 = vmul.f32 %v4375, %v4439
    %v4456 = vmul.f32 %v4376, %v4440
    %v4457 = vmul.f32 %v4377, %v4441
    %v4458 = vmul.f32 %v4378, %v4442
    %v4459 = vmul.f32 %v4379, %v4443
    %v4460 = vmul.f32 %v4380, %v4444
    %v4461 = vmul.f32 %v4381, %v4445
    %v4462 = vmul.f32 %v4382, %v4446
    %v4463 = vmul.f32 %v4383, %v4447
    %v4464 = vmul.f32 %v4384, %v4448
    %v4465 = vmul.f32 %v4385, %v4449
    %v4466 = vmul.f32 %v4386, %v4450
    %v4467 = vmul.f32 %v4387, %v4451
    %v4468 = vmul.f32 %v4388, %v4452
    %4469 = vst [vmem:[#allocation6] sm:$0xff] %v4453
    %4470 = vst [vmem:[#allocation6 + $0x8] sm:$0xff] %v4454
    %4471 = vst [vmem:[#allocation6 + $0x10] sm:$0xff] %v4455
    %4472 = vst [vmem:[#allocation6 + $0x18] sm:$0xff] %v4456
    %4473 = vst [vmem:[#allocation6 + $0x20] sm:$0xff] %v4457
    %4474 = vst [vmem:[#allocation6 + $0x28] sm:$0xff] %v4458
    %4475 = vst [vmem:[#allocation6 + $0x30] sm:$0xff] %v4459
    %4476 = vst [vmem:[#allocation6 + $0x38] sm:$0xff] %v4460
    %4477 = vst [vmem:[#allocation6 + $0x40] sm:$0xff] %v4461
    %4478 = vst [vmem:[#allocation6 + $0x48] sm:$0xff] %v4462
    %4479 = vst [vmem:[#allocation6 + $0x50] sm:$0xff] %v4463
    %4480 = vst [vmem:[#allocation6 + $0x58] sm:$0xff] %v4464
    %4481 = vst [vmem:[#allocation6 + $0x60] sm:$0xff] %v4465
    %4482 = vst [vmem:[#allocation6 + $0x68] sm:$0xff] %v4466
    %4483 = vst [vmem:[#allocation6 + $0x70] sm:$0xff] %v4467
    %4484 = vst [vmem:[#allocation6 + $0x78] sm:$0xff] %v4468
    // Predicated region
    $region34: #{causal_self_attention_forward.1} parent=1 // pred_check
      _
    $region35: #{causal_self_attention_forward.1} parent=1 // pred_check_branch
      %4486 = sbr.rel (0) target = $region37
    $region36: #{causal_self_attention_forward.1} parent=1 // pred_region
      %s4488 = ssub.s32 2048, 2048
      %4489 = vsyncadd [#allocation4], %s4488
      %s4490 = sshll.u32 [#allocation6], 4
      %s4491 = int_to_ptr.vmem [resolvable:$true] %s4490
      %4496 = dma.vmem_to_hbm [thread:$0]  %s4491, 2048, %s7, [#allocation4], 128, 128, 8
    $region37: #{causal_self_attention_forward.1} parent=1 // pred_fallthru
      _
    // Predicated region
    $region38: #{causal_self_attention_forward.1} parent=1 // pred_check
      _
    $region39: #{causal_self_attention_forward.1} parent=1 // pred_check_branch
      %4498 = sbr.rel (0) target = $region41
    $region40: #{causal_self_attention_forward.1} parent=1 // pred_region
      %s4500 = ssub.s32 2048, 2048
      %4501 = vsyncadd [#allocation8], %s4500
      %s4502 = sshll.u32 [#allocation7], 4
      %s4503 = int_to_ptr.vmem [resolvable:$true] %s4502
      %4508 = dma.vmem_to_hbm [thread:$0]  %s4503, 2048, %s8, [#allocation8], 128, 128, 8
    $region41: #{causal_self_attention_forward.1} parent=1 // pred_fallthru
      _
    // Predicated region
    $region42: #{causal_self_attention_forward.1} parent=1 // pred_check
      _
    $region43: #{causal_self_attention_forward.1} parent=1 // pred_check_branch
      %4510 = sbr.rel (0) target = $region45
    $region44: #{causal_self_attention_forward.1} parent=1 // pred_region
      %4511 = dma.done [#allocation4], 2048
    $region45: #{causal_self_attention_forward.1} parent=1 // pred_fallthru
      _
    // Predicated region
    $region46: #{causal_self_attention_forward.1} parent=1 // pred_check
      _
    $region47: #{causal_self_attention_forward.1} parent=1 // pred_check_branch
      %4513 = sbr.rel (0) target = $region49
    $region48: #{causal_self_attention_forward.1} parent=1 // pred_region
      %4514 = dma.done [#allocation8], 2048
    $region49: #{causal_self_attention_forward.1} parent=1 // pred_fallthru
      _
    %4515 = vsyncpa [#allocation4], 1
    %4516 = vsyncpa [#allocation8], 1
    %4517 = vsyncpa [#allocation5], 1

</llo_original>
